<compile_context>
chip_gen: v7x
topology: tpu7x:2x2x1
jax: 0.10.0
libtpu: 0.0.40
codegen_flags: <defaults>
</compile_context>

<pallas_src>
import numpy as np
import jax
import jax.numpy as jnp
from jax.experimental import pallas as pl
from jax.experimental.pallas import tpu as pltpu


# ---------------------------------------------------------------------------
# Host-side constant helpers
# ---------------------------------------------------------------------------

def _round_up8(n):
    return ((n + 7) // 8) * 8


def _interp_matrix_np(n_in, n_out):
    """1-D linear interpolation matrix (n_out, n_in), align_corners=True."""
    if n_out == 1 or n_in == 1:
        m = np.zeros((n_out, n_in), np.float64)
        m[:, 0] = 1.0
        return m
    pos = np.arange(n_out, dtype=np.float64) * (n_in - 1) / (n_out - 1)
    lo = np.clip(np.floor(pos).astype(np.int64), 0, n_in - 1)
    hi = np.minimum(lo + 1, n_in - 1)
    frac = pos - lo
    m = np.zeros((n_out, n_in), np.float64)
    m[np.arange(n_out), lo] += 1.0 - frac
    m[np.arange(n_out), hi] += frac
    return m


def _upsample2x_matrix_np(h, w):
    """(H*W, 4*H*W) matrix M^T so that  x(C, HW) @ M^T == bilinear 2x upsample."""
    mh = _interp_matrix_np(h, 2 * h)          # (2H, H)
    mw = _interp_matrix_np(w, 2 * w)          # (2W, W)
    m = np.kron(mh, mw)                       # (2H*2W, H*W), row-major flat
    return m.T.astype(np.float32)


def _tap_masks_np(h, w, k=3):
    """(k*k, H*W) 0/1 masks: tap t is valid at output pixel (y, x) iff its source
    pixel (y+dh-pad, x+dw-pad) is inside the image (zero padding)."""
    pad = (k - 1) // 2
    masks = np.zeros((k * k, h * w), np.float32)
    for t in range(k * k):
        dh, dw = t // k, t % k
        for y in range(h):
            ys = y + dh - pad
            if not (0 <= ys < h):
                continue
            for x in range(w):
                xs = x + dw - pad
                if 0 <= xs < w:
                    masks[t, y * w + x] = 1.0
    return masks


# ---------------------------------------------------------------------------
# Fused Pallas kernel
# ---------------------------------------------------------------------------

def _make_fused_kernel(meta, b_tile):
    """Kernel over grid=(B // b_tile,).  Activation layout: (C_pad, b_tile * H*W)."""
    n_layers, k, latent = meta["n_layers"], meta["k"], meta["latent"]
    fh, fw, out_c = meta["fh"], meta["fw"], meta["out_c"]
    pad = (k - 1) // 2
    # spatial resolution at which block i's convs run (after that block's upsample)
    res = [(fh * 2 ** (i + 1), fw * 2 ** (i + 1)) for i in range(n_layers)]

    def conv3x3(x, w_cat_ref, b_ref, mask, w_sp, act):
        # x: (Cin_p, L) f32.  Rolled+masked taps are stacked (aligned: Cin_p % 8 == 0)
        # and contracted in ONE matmul against the tap-major weight (Cout_p, k*k*Cin_p).
        cin_p, L = x.shape
        assert w_cat_ref.shape[1] == k * k * cin_p
        taps = []
        for t in range(k * k):
            dh, dw = t // k, t % k
            off = (dh - pad) * w_sp + (dw - pad)
            if off == 0:
                taps.append(x)                                   # center tap: mask is all ones
            else:
                xt = pltpu.roll(x, (-off) % L, axis=1)           # XLU lane rotate (free slot)
                taps.append(xt * mask[t:t + 1, :])               # zero OOB / cross-batch lanes
        x_cat = jnp.concatenate(taps, axis=0).astype(w_cat_ref.dtype)
        acc = jnp.dot(w_cat_ref[...], x_cat, preferred_element_type=jnp.float32)
        acc = acc + b_ref[...]                                   # (Cout_p, 1) lane-broadcast
        if act == "relu":
            return jnp.maximum(acc, 0.0)
        if act == "sigmoid":
            return jax.nn.sigmoid(acc)
        return acc

    def kernel(*refs):
        idx = 0
        e_ref = refs[idx]; idx += 1                              # (B, latent) in SMEM
        w3u_ref = refs[idx]; idx += 1                            # (b_tile, latent, C0p, b_tile*hw1)
        fcbu_ref = refs[idx]; idx += 1                           # (C0p, b_tile*hw1)
        up_refs = refs[idx: idx + n_layers - 1]; idx += n_layers - 1
        mask_refs = refs[idx: idx + n_layers]; idx += n_layers
        conv_refs = refs[idx: idx + 4 * (n_layers + 1)]; idx += 4 * (n_layers + 1)
        o_ref = refs[idx]

        t_idx = pl.program_id(0)

        # Linear + Rearrange + first Upsample (all folded into w3u/fcbu on the host).
        # latent contraction = b_tile*latent scalar(SMEM) x tile FMAs; the per-batch lane
        # placement is baked into w3u, so no in-kernel concatenation is needed.
        x = fcbu_ref[...]
        for b in range(b_tile):
            for l in range(latent):
                x = x + e_ref[t_idx * b_tile + b, l] * w3u_ref[b, l]

        # Basic blocks: [Upsample2x ->] Conv -> ReLU -> Conv -> ReLU      (bn=False)
        for i in range(n_layers):
            if i > 0:
                # bilinear 2x upsample == one matmul against kron(I_btile, M^T)
                x = jnp.dot(x.astype(up_refs[i - 1].dtype), up_refs[i - 1][...],
                            preferred_element_type=jnp.float32)
            mask = mask_refs[i][...]
            w_sp = res[i][1]
            w1, b1, w2, b2 = conv_refs[4 * i: 4 * i + 4]
            x = conv3x3(x, w1, b1, mask, w_sp, "relu")
            x = conv3x3(x, w2, b2, mask, w_sp, "relu")

        # Last block: Conv -> ReLU -> Conv, then Sigmoid (runs at the final resolution).
        mask = mask_refs[n_layers - 1][...]
        w_sp = res[n_layers - 1][1]
        lw1, lb1, lw2, lb2 = conv_refs[4 * n_layers: 4 * n_layers + 4]
        x = conv3x3(x, lw1, lb1, mask, w_sp, "relu")
        x = conv3x3(x, lw2, lb2, mask, w_sp, "sigmoid")

        # Unpack the lane-batched result: one lane-dense (out_c, HW) store per element.
        hw_out = x.shape[1] // b_tile
        for b in range(b_tile):
            o_ref[b] = x[:out_c, b * hw_out:(b + 1) * hw_out].astype(o_ref.dtype)

    return kernel


def elastic_decoder_forward(e, params, *, b_tile=2, compute_dtype=jnp.bfloat16):
    """e: (B, latent) -> (B, out_c, out_h, out_w)  (NCHW, like PyTorch)."""
    meta = params["meta"]
    n_layers, k, latent = meta["n_layers"], meta["k"], meta["latent"]
    fh, fw, cout0 = meta["fh"], meta["fw"], meta["cout0"]
    out_c, out_h, out_w = meta["out_c"], meta["out_h"], meta["out_w"]
    hp = jax.lax.Precision.HIGHEST

    B = e.shape[0]
    assert B % b_tile == 0  # TODO(synk): pad ragged batches instead of asserting.
    num_tiles = B // b_tile
    hw_out = out_h * out_w
    hw1 = 4 * fh * fw
    c0_p = _round_up8(cout0)

    # ---- derive kernel-layout constants (tiny arrays) ----
    # Fold Linear + Rearrange + first Upsample:  up(W e + b) = (w3 @ M0) e + (fcb @ M0).
    mT0 = params["up_mats"][0]                                       # (fh*fw, hw1)
    w3_r = params["fc_w"].T.reshape(latent, cout0, fh * fw)          # torch (out,in) layout in
    w3u = jnp.einsum("lcp,pq->lcq", w3_r, mT0, precision=hp)
    w3u = jnp.pad(w3u, ((0, 0), (0, c0_p - cout0), (0, 0)))
    fcbu = jnp.einsum("cp,pq->cq", params["fc_b"].reshape(cout0, fh * fw), mT0, precision=hp)
    fcbu = jnp.pad(fcbu, ((0, c0_p - cout0), (0, 0)))
    # bake the per-batch-slot lane placement into the constant (scales with b_tile^2; fine small)
    w3u_packed = jnp.zeros((b_tile, latent, c0_p, b_tile * hw1), jnp.float32)
    for b in range(b_tile):
        w3u_packed = w3u_packed.at[b, :, :, b * hw1:(b + 1) * hw1].set(w3u)
    fcbu_packed = jnp.tile(fcbu, (1, b_tile))

    # block-diagonal (batch-packed) bilinear upsample matrices for blocks 1..n_layers-1
    eye_b = jnp.eye(b_tile, dtype=jnp.float32)
    up_packed = [jnp.kron(eye_b, params["up_mats"][i]).astype(compute_dtype)
                 for i in range(1, n_layers)]

    # per-resolution boundary masks, tiled over the packed batch segments
    masks = []
    h, w_sp = fh, fw
    for _ in range(n_layers):
        h, w_sp = 2 * h, 2 * w_sp
        masks.append(jnp.asarray(np.tile(_tap_masks_np(h, w_sp, k), (1, b_tile))))

    # conv weights: tap-major (Cout_p, k*k*Cin_p), channels zero-padded to multiples of 8
    def prep_conv(w, bias):
        co, ci = w.shape[0], w.shape[1]
        co_p, ci_p = _round_up8(co), _round_up8(ci)
        w_t = jnp.transpose(w, (0, 2, 3, 1))                         # (co, kh, kw, ci)
        w_t = jnp.pad(w_t, ((0, co_p - co), (0, 0), (0, 0), (0, ci_p - ci)))
        w_cat = w_t.reshape(co_p, k * k * ci_p).astype(compute_dtype)
        b_p = jnp.pad(bias, (0, co_p - co)).reshape(co_p, 1).astype(jnp.float32)
        return [w_cat, b_p]

    conv_consts = []
    for blk in params["blocks"]:
        conv_consts += prep_conv(blk["w1"], blk["b1"]) + prep_conv(blk["w2"], blk["b2"])
    conv_consts += prep_conv(params["last_w1"], params["last_b1"])
    conv_consts += prep_conv(params["last_w2"], params["last_b2"])

    consts = [w3u_packed, fcbu_packed] + up_packed + masks + conv_consts

    def const_spec(arr):
        nd = arr.ndim
        # constant across the grid -> single buffered (no double-buffer VMEM waste)
        return pl.BlockSpec(arr.shape, lambda t, _nd=nd: (0,) * _nd,
                            pipeline_mode=pl.Buffered(1))

    in_specs = [pl.BlockSpec(memory_space=pltpu.MemorySpace.SMEM)]   # e -> SMEM scalars
    in_specs += [const_spec(a) for a in consts]
    out_specs = pl.BlockSpec((b_tile, out_c, hw_out), lambda t: (t, 0, 0))

    out = pl.pallas_call(
        _make_fused_kernel(meta, b_tile),
        out_shape=jax.ShapeDtypeStruct((B, out_c, hw_out), jnp.float32),
        grid=(num_tiles,),
        in_specs=in_specs,
        out_specs=out_specs,
        compiler_params=pltpu.CompilerParams(
            dimension_semantics=("parallel",)),      # v7x: shard batch tiles over both TCs
    )(e.astype(jnp.float32), *consts)

    # (B, C, H*W) -> NCHW is a free contiguous reshape (no transpose needed).
    return out.reshape(B, out_c, out_h, out_w)


# ---------------------------------------------------------------------------
# Parameter construction (mirrors elastic_initialize_weights, PyTorch layouts)
# ---------------------------------------------------------------------------

def _xavier_uniform(key, shape, fan_in, fan_out, gain):
    bound = gain * float(np.sqrt(6.0 / (fan_in + fan_out)))
    return jax.random.uniform(key, shape, jnp.float32, -bound, bound)


def build_elastic_decoder_params(key, output_shape=(3, 16, 16),
                                 latent_size=8, n_layers=2, cin=8, k=3):
    # TODO(synk): bn=True (BatchNorm2d) path not implemented; module exercised with bn=False.
    out_c, out_h, out_w = output_shape
    fh, fw = out_h // 2 ** n_layers, out_w // 2 ** n_layers
    assert fh >= 2 and fw >= 2, "number of layers too big."
    cout0 = cin * 2 ** (n_layers - 1)
    initial_size = cout0 * fh * fw
    filters = [cout0 // 2 ** i for i in range(n_layers + 1)] + [out_c]
    relu_gain = float(np.sqrt(2.0))                  # calculate_gain('relu')

    keys = iter(jax.random.split(key, 1 + 2 * (n_layers + 1)))

    # Linear kept in the PyTorch (out_features, in_features) layout; bias 0.
    fc_w = _xavier_uniform(next(keys), (initial_size, latent_size),
                           latent_size, initial_size, 1.0)
    fc_b = jnp.zeros((initial_size,), jnp.float32)

    def conv_param(c_in, c_out):
        # Conv2d weight (Cout, Cin, k, k) ~ xavier_uniform(gain=sqrt(2)), bias 0.
        w = _xavier_uniform(next(keys), (c_out, c_in, k, k),
                            c_in * k * k, c_out * k * k, relu_gain)
        return w, jnp.zeros((c_out,), jnp.float32)

    blocks = []
    for i in range(n_layers):
        w1, b1 = conv_param(filters[i], filters[i + 1])
        w2, b2 = conv_param(filters[i + 1], filters[i + 1])
        blocks.append(dict(w1=w1, b1=b1, w2=w2, b2=b2))
    last_w1, last_b1 = conv_param(filters[-2], filters[-1])
    last_w2, last_b2 = conv_param(filters[-1], filters[-1])

    # Fixed bilinear-upsample (align_corners=True) matrices, one per basic block.
    up_mats, h, w_sp = [], fh, fw
    for _ in range(n_layers):
        up_mats.append(jnp.asarray(_upsample2x_matrix_np(h, w_sp)))
        h, w_sp = 2 * h, 2 * w_sp

    meta = dict(out_c=out_c, out_h=out_h, out_w=out_w, n_layers=n_layers,
                latent=latent_size, k=k, fh=fh, fw=fw, cout0=cout0, filters=filters)
    return dict(meta=meta, fc_w=fc_w, fc_b=fc_b, blocks=blocks,
                last_w1=last_w1, last_b1=last_b1, last_w2=last_w2, last_b2=last_b2,
                up_mats=up_mats)


# ---------------------------------------------------------------------------
# Pure-JAX reference (module-structure-faithful, full f32 precision)
# ---------------------------------------------------------------------------

def _reference_forward(e, params):
    meta = params["meta"]
    hp = jax.lax.Precision.HIGHEST
    B = e.shape[0]
    n_layers, fh, fw, cout0 = meta["n_layers"], meta["fh"], meta["fw"], meta["cout0"]

    def conv(x, w, b, act):
        co = w.shape[0]
        y = jax.lax.conv_general_dilated(
            x, jnp.transpose(w, (2, 3, 1, 0)), (1, 1), "SAME",
            dimension_numbers=("NCHW", "HWIO", "NCHW"), precision=hp)
        y = y + b.reshape(1, co, 1, 1)
        if act == "relu":
            return jnp.maximum(y, 0.0)
        if act == "sigmoid":
            return jax.nn.sigmoid(y)
        return y

    def ups(x, mT):
        b, c, h, w = x.shape
        y = jnp.einsum("bcp,pq->bcq", x.reshape(b, c, h * w), mT, precision=hp)
        return y.reshape(b, c, 2 * h, 2 * w)

    x = jnp.dot(e, params["fc_w"].T, precision=hp) + params["fc_b"]
    x = x.reshape(B, cout0, fh, fw)
    for i in range(n_layers):
        blk = params["blocks"][i]
        x = ups(x, params["up_mats"][i])
        x = conv(x, blk["w1"], blk["b1"], "relu")
        x = conv(x, blk["w2"], blk["b2"], "relu")
    x = conv(x, params["last_w1"], params["last_b1"], "relu")
    x = conv(x, params["last_w2"], params["last_b2"], "sigmoid")
    return x


# ---------------------------------------------------------------------------

if __name__ == "__main__":
    key = jax.random.PRNGKey(0)
    k_par, k_in = jax.random.split(key)

    output_shape = (3, 16, 16)
    latent_size = 8
    params = build_elastic_decoder_params(
        k_par, output_shape=output_shape, latent_size=latent_size,
        n_layers=2, cin=8, k=3)

    B = 4
    e = jax.random.normal(k_in, (B, latent_size), jnp.float32)

    ref = _reference_forward(e, params)

    # Exact path (f32 matmul operands): tight tolerance validates rolls/masks/layout.
    out_f32 = jax.block_until_ready(
        elastic_decoder_forward(e, params, b_tile=2, compute_dtype=jnp.float32))
    assert out_f32.shape == (B,) + output_shape, out_f32.shape
    assert bool(jnp.allclose(out_f32, ref, atol=5e-4, rtol=0.0)), \
        float(jnp.max(jnp.abs(out_f32 - ref)))

    # Fast path (bf16 MXU operands, f32 accumulation / VPU): bf16-appropriate tolerance.
    out = jax.block_until_ready(
        elastic_decoder_forward(e, params, b_tile=2, compute_dtype=jnp.bfloat16))
    assert out.shape == (B,) + output_shape, out.shape
    assert bool(jnp.all(jnp.isfinite(out)))
    assert bool(jnp.all((out >= 0.0) & (out <= 1.0)))          # sigmoid range
    assert bool(jnp.allclose(out, ref, atol=2e-2, rtol=0.0)), \
        float(jnp.max(jnp.abs(out - ref)))

    print("KERNEL_OK")
</pallas_src>

<mosaic_0001>
module attributes {stable_mosaic.version = 11 : i64} {
  func.func @kernel(%arg0: i32, %arg1: memref<4x8xf32, #tpu.memory_space<smem>>, %arg2: memref<2x8x16x128xf32, #tpu.memory_space<vmem>>, %arg3: memref<16x128xf32, #tpu.memory_space<vmem>>, %arg4: memref<128x512xf32, #tpu.memory_space<vmem>>, %arg5: memref<9x128xf32, #tpu.memory_space<vmem>>, %arg6: memref<9x512xf32, #tpu.memory_space<vmem>>, %arg7: memref<8x144xf32, #tpu.memory_space<vmem>>, %arg8: memref<8x1xf32, #tpu.memory_space<vmem>>, %arg9: memref<8x72xf32, #tpu.memory_space<vmem>>, %arg10: memref<8x1xf32, #tpu.memory_space<vmem>>, %arg11: memref<8x72xf32, #tpu.memory_space<vmem>>, %arg12: memref<8x1xf32, #tpu.memory_space<vmem>>, %arg13: memref<8x72xf32, #tpu.memory_space<vmem>>, %arg14: memref<8x1xf32, #tpu.memory_space<vmem>>, %arg15: memref<8x72xf32, #tpu.memory_space<vmem>>, %arg16: memref<8x1xf32, #tpu.memory_space<vmem>>, %arg17: memref<8x72xf32, #tpu.memory_space<vmem>>, %arg18: memref<8x1xf32, #tpu.memory_space<vmem>>, %arg19: memref<2x3x256xf32, #tpu.memory_space<vmem>>) attributes {dimension_semantics = [#tpu.dimension_semantics<parallel>], iteration_bounds = array<i64: 2>, scalar_prefetch = 0 : i64, scratch_operands = 0 : i64, tpu.core_type = #tpu.core_type<tc>, window_params = [{transform_indices = @transform_0, window_bounds = array<i64: 4, 8>}, {pipeline_mode = #tpu.pipeline_mode<synchronous>, transform_indices = @transform_1, window_bounds = array<i64: 2, 8, 16, 128>}, {pipeline_mode = #tpu.pipeline_mode<synchronous>, transform_indices = @transform_2, window_bounds = array<i64: 16, 128>}, {pipeline_mode = #tpu.pipeline_mode<synchronous>, transform_indices = @transform_3, window_bounds = array<i64: 128, 512>}, {pipeline_mode = #tpu.pipeline_mode<synchronous>, transform_indices = @transform_4, window_bounds = array<i64: 9, 128>}, {pipeline_mode = #tpu.pipeline_mode<synchronous>, transform_indices = @transform_5, window_bounds = array<i64: 9, 512>}, {pipeline_mode = #tpu.pipeline_mode<synchronous>, transform_indices = @transform_6, window_bounds = array<i64: 8, 144>}, {pipeline_mode = #tpu.pipeline_mode<synchronous>, transform_indices = @transform_7, window_bounds = array<i64: 8, 1>}, {pipeline_mode = #tpu.pipeline_mode<synchronous>, transform_indices = @transform_8, window_bounds = array<i64: 8, 72>}, {pipeline_mode = #tpu.pipeline_mode<synchronous>, transform_indices = @transform_9, window_bounds = array<i64: 8, 1>}, {pipeline_mode = #tpu.pipeline_mode<synchronous>, transform_indices = @transform_10, window_bounds = array<i64: 8, 72>}, {pipeline_mode = #tpu.pipeline_mode<synchronous>, transform_indices = @transform_11, window_bounds = array<i64: 8, 1>}, {pipeline_mode = #tpu.pipeline_mode<synchronous>, transform_indices = @transform_12, window_bounds = array<i64: 8, 72>}, {pipeline_mode = #tpu.pipeline_mode<synchronous>, transform_indices = @transform_13, window_bounds = array<i64: 8, 1>}, {pipeline_mode = #tpu.pipeline_mode<synchronous>, transform_indices = @transform_14, window_bounds = array<i64: 8, 72>}, {pipeline_mode = #tpu.pipeline_mode<synchronous>, transform_indices = @transform_15, window_bounds = array<i64: 8, 1>}, {pipeline_mode = #tpu.pipeline_mode<synchronous>, transform_indices = @transform_16, window_bounds = array<i64: 8, 72>}, {pipeline_mode = #tpu.pipeline_mode<synchronous>, transform_indices = @transform_17, window_bounds = array<i64: 8, 1>}, {transform_indices = @transform_18, window_bounds = array<i64: 2, 3, 256>}]} {
    %c0 = arith.constant 0 : index
    %c0_0 = arith.constant 0 : index
    %0 = vector.load %arg3[%c0, %c0_0] : memref<16x128xf32, #tpu.memory_space<vmem>>, vector<16x128xf32>
    %c2_i32 = arith.constant 2 : i32
    %1 = arith.muli %arg0, %c2_i32 : i32
    %c0_i32 = arith.constant 0 : i32
    %2 = arith.addi %1, %c0_i32 : i32
    %3 = arith.index_cast %2 : i32 to index
    %c0_1 = arith.constant 0 : index
    %4 = memref.load %arg1[%3, %c0_1] : memref<4x8xf32, #tpu.memory_space<smem>>
    %c0_2 = arith.constant 0 : index
    %c0_3 = arith.constant 0 : index
    %c0_4 = arith.constant 0 : index
    %c0_5 = arith.constant 0 : index
    %5 = vector.load %arg2[%c0_2, %c0_3, %c0_4, %c0_5] : memref<2x8x16x128xf32, #tpu.memory_space<vmem>>, vector<1x1x16x128xf32>
    %6 = vector.shape_cast %5 : vector<1x1x16x128xf32> to vector<16x128xf32>
    %7 = vector.broadcast %4 : f32 to vector<16x128xf32>
    %8 = arith.mulf %7, %6 : vector<16x128xf32>
    %9 = arith.addf %0, %8 : vector<16x128xf32>
    %c2_i32_6 = arith.constant 2 : i32
    %10 = arith.muli %arg0, %c2_i32_6 : i32
    %c0_i32_7 = arith.constant 0 : i32
    %11 = arith.addi %10, %c0_i32_7 : i32
    %12 = arith.index_cast %11 : i32 to index
    %c1 = arith.constant 1 : index
    %13 = memref.load %arg1[%12, %c1] : memref<4x8xf32, #tpu.memory_space<smem>>
    %c0_8 = arith.constant 0 : index
    %c1_9 = arith.constant 1 : index
    %c0_10 = arith.constant 0 : index
    %c0_11 = arith.constant 0 : index
    %14 = vector.load %arg2[%c0_8, %c1_9, %c0_10, %c0_11] : memref<2x8x16x128xf32, #tpu.memory_space<vmem>>, vector<1x1x16x128xf32>
    %15 = vector.shape_cast %14 : vector<1x1x16x128xf32> to vector<16x128xf32>
    %16 = vector.broadcast %13 : f32 to vector<16x128xf32>
    %17 = arith.mulf %16, %15 : vector<16x128xf32>
    %18 = arith.addf %9, %17 : vector<16x128xf32>
    %c2_i32_12 = arith.constant 2 : i32
    %19 = arith.muli %arg0, %c2_i32_12 : i32
    %c0_i32_13 = arith.constant 0 : i32
    %20 = arith.addi %19, %c0_i32_13 : i32
    %21 = arith.index_cast %20 : i32 to index
    %c2 = arith.constant 2 : index
    %22 = memref.load %arg1[%21, %c2] : memref<4x8xf32, #tpu.memory_space<smem>>
    %c0_14 = arith.constant 0 : index
    %c2_15 = arith.constant 2 : index
    %c0_16 = arith.constant 0 : index
    %c0_17 = arith.constant 0 : index
    %23 = vector.load %arg2[%c0_14, %c2_15, %c0_16, %c0_17] : memref<2x8x16x128xf32, #tpu.memory_space<vmem>>, vector<1x1x16x128xf32>
    %24 = vector.shape_cast %23 : vector<1x1x16x128xf32> to vector<16x128xf32>
    %25 = vector.broadcast %22 : f32 to vector<16x128xf32>
    %26 = arith.mulf %25, %24 : vector<16x128xf32>
    %27 = arith.addf %18, %26 : vector<16x128xf32>
    %c2_i32_18 = arith.constant 2 : i32
    %28 = arith.muli %arg0, %c2_i32_18 : i32
    %c0_i32_19 = arith.constant 0 : i32
    %29 = arith.addi %28, %c0_i32_19 : i32
    %30 = arith.index_cast %29 : i32 to index
    %c3 = arith.constant 3 : index
    %31 = memref.load %arg1[%30, %c3] : memref<4x8xf32, #tpu.memory_space<smem>>
    %c0_20 = arith.constant 0 : index
    %c3_21 = arith.constant 3 : index
    %c0_22 = arith.constant 0 : index
    %c0_23 = arith.constant 0 : index
    %32 = vector.load %arg2[%c0_20, %c3_21, %c0_22, %c0_23] : memref<2x8x16x128xf32, #tpu.memory_space<vmem>>, vector<1x1x16x128xf32>
    %33 = vector.shape_cast %32 : vector<1x1x16x128xf32> to vector<16x128xf32>
    %34 = vector.broadcast %31 : f32 to vector<16x128xf32>
    %35 = arith.mulf %34, %33 : vector<16x128xf32>
    %36 = arith.addf %27, %35 : vector<16x128xf32>
    %c2_i32_24 = arith.constant 2 : i32
    %37 = arith.muli %arg0, %c2_i32_24 : i32
    %c0_i32_25 = arith.constant 0 : i32
    %38 = arith.addi %37, %c0_i32_25 : i32
    %39 = arith.index_cast %38 : i32 to index
    %c4 = arith.constant 4 : index
    %40 = memref.load %arg1[%39, %c4] : memref<4x8xf32, #tpu.memory_space<smem>>
    %c0_26 = arith.constant 0 : index
    %c4_27 = arith.constant 4 : index
    %c0_28 = arith.constant 0 : index
    %c0_29 = arith.constant 0 : index
    %41 = vector.load %arg2[%c0_26, %c4_27, %c0_28, %c0_29] : memref<2x8x16x128xf32, #tpu.memory_space<vmem>>, vector<1x1x16x128xf32>
    %42 = vector.shape_cast %41 : vector<1x1x16x128xf32> to vector<16x128xf32>
    %43 = vector.broadcast %40 : f32 to vector<16x128xf32>
    %44 = arith.mulf %43, %42 : vector<16x128xf32>
    %45 = arith.addf %36, %44 : vector<16x128xf32>
    %c2_i32_30 = arith.constant 2 : i32
    %46 = arith.muli %arg0, %c2_i32_30 : i32
    %c0_i32_31 = arith.constant 0 : i32
    %47 = arith.addi %46, %c0_i32_31 : i32
    %48 = arith.index_cast %47 : i32 to index
    %c5 = arith.constant 5 : index
    %49 = memref.load %arg1[%48, %c5] : memref<4x8xf32, #tpu.memory_space<smem>>
    %c0_32 = arith.constant 0 : index
    %c5_33 = arith.constant 5 : index
    %c0_34 = arith.constant 0 : index
    %c0_35 = arith.constant 0 : index
    %50 = vector.load %arg2[%c0_32, %c5_33, %c0_34, %c0_35] : memref<2x8x16x128xf32, #tpu.memory_space<vmem>>, vector<1x1x16x128xf32>
    %51 = vector.shape_cast %50 : vector<1x1x16x128xf32> to vector<16x128xf32>
    %52 = vector.broadcast %49 : f32 to vector<16x128xf32>
    %53 = arith.mulf %52, %51 : vector<16x128xf32>
    %54 = arith.addf %45, %53 : vector<16x128xf32>
    %c2_i32_36 = arith.constant 2 : i32
    %55 = arith.muli %arg0, %c2_i32_36 : i32
    %c0_i32_37 = arith.constant 0 : i32
    %56 = arith.addi %55, %c0_i32_37 : i32
    %57 = arith.index_cast %56 : i32 to index
    %c6 = arith.constant 6 : index
    %58 = memref.load %arg1[%57, %c6] : memref<4x8xf32, #tpu.memory_space<smem>>
    %c0_38 = arith.constant 0 : index
    %c6_39 = arith.constant 6 : index
    %c0_40 = arith.constant 0 : index
    %c0_41 = arith.constant 0 : index
    %59 = vector.load %arg2[%c0_38, %c6_39, %c0_40, %c0_41] : memref<2x8x16x128xf32, #tpu.memory_space<vmem>>, vector<1x1x16x128xf32>
    %60 = vector.shape_cast %59 : vector<1x1x16x128xf32> to vector<16x128xf32>
    %61 = vector.broadcast %58 : f32 to vector<16x128xf32>
    %62 = arith.mulf %61, %60 : vector<16x128xf32>
    %63 = arith.addf %54, %62 : vector<16x128xf32>
    %c2_i32_42 = arith.constant 2 : i32
    %64 = arith.muli %arg0, %c2_i32_42 : i32
    %c0_i32_43 = arith.constant 0 : i32
    %65 = arith.addi %64, %c0_i32_43 : i32
    %66 = arith.index_cast %65 : i32 to index
    %c7 = arith.constant 7 : index
    %67 = memref.load %arg1[%66, %c7] : memref<4x8xf32, #tpu.memory_space<smem>>
    %c0_44 = arith.constant 0 : index
    %c7_45 = arith.constant 7 : index
    %c0_46 = arith.constant 0 : index
    %c0_47 = arith.constant 0 : index
    %68 = vector.load %arg2[%c0_44, %c7_45, %c0_46, %c0_47] : memref<2x8x16x128xf32, #tpu.memory_space<vmem>>, vector<1x1x16x128xf32>
    %69 = vector.shape_cast %68 : vector<1x1x16x128xf32> to vector<16x128xf32>
    %70 = vector.broadcast %67 : f32 to vector<16x128xf32>
    %71 = arith.mulf %70, %69 : vector<16x128xf32>
    %72 = arith.addf %63, %71 : vector<16x128xf32>
    %c2_i32_48 = arith.constant 2 : i32
    %73 = arith.muli %arg0, %c2_i32_48 : i32
    %c1_i32 = arith.constant 1 : i32
    %74 = arith.addi %73, %c1_i32 : i32
    %75 = arith.index_cast %74 : i32 to index
    %c0_49 = arith.constant 0 : index
    %76 = memref.load %arg1[%75, %c0_49] : memref<4x8xf32, #tpu.memory_space<smem>>
    %c1_50 = arith.constant 1 : index
    %c0_51 = arith.constant 0 : index
    %c0_52 = arith.constant 0 : index
    %c0_53 = arith.constant 0 : index
    %77 = vector.load %arg2[%c1_50, %c0_51, %c0_52, %c0_53] : memref<2x8x16x128xf32, #tpu.memory_space<vmem>>, vector<1x1x16x128xf32>
    %78 = vector.shape_cast %77 : vector<1x1x16x128xf32> to vector<16x128xf32>
    %79 = vector.broadcast %76 : f32 to vector<16x128xf32>
    %80 = arith.mulf %79, %78 : vector<16x128xf32>
    %81 = arith.addf %72, %80 : vector<16x128xf32>
    %c2_i32_54 = arith.constant 2 : i32
    %82 = arith.muli %arg0, %c2_i32_54 : i32
    %c1_i32_55 = arith.constant 1 : i32
    %83 = arith.addi %82, %c1_i32_55 : i32
    %84 = arith.index_cast %83 : i32 to index
    %c1_56 = arith.constant 1 : index
    %85 = memref.load %arg1[%84, %c1_56] : memref<4x8xf32, #tpu.memory_space<smem>>
    %c1_57 = arith.constant 1 : index
    %c1_58 = arith.constant 1 : index
    %c0_59 = arith.constant 0 : index
    %c0_60 = arith.constant 0 : index
    %86 = vector.load %arg2[%c1_57, %c1_58, %c0_59, %c0_60] : memref<2x8x16x128xf32, #tpu.memory_space<vmem>>, vector<1x1x16x128xf32>
    %87 = vector.shape_cast %86 : vector<1x1x16x128xf32> to vector<16x128xf32>
    %88 = vector.broadcast %85 : f32 to vector<16x128xf32>
    %89 = arith.mulf %88, %87 : vector<16x128xf32>
    %90 = arith.addf %81, %89 : vector<16x128xf32>
    %c2_i32_61 = arith.constant 2 : i32
    %91 = arith.muli %arg0, %c2_i32_61 : i32
    %c1_i32_62 = arith.constant 1 : i32
    %92 = arith.addi %91, %c1_i32_62 : i32
    %93 = arith.index_cast %92 : i32 to index
    %c2_63 = arith.constant 2 : index
    %94 = memref.load %arg1[%93, %c2_63] : memref<4x8xf32, #tpu.memory_space<smem>>
    %c1_64 = arith.constant 1 : index
    %c2_65 = arith.constant 2 : index
    %c0_66 = arith.constant 0 : index
    %c0_67 = arith.constant 0 : index
    %95 = vector.load %arg2[%c1_64, %c2_65, %c0_66, %c0_67] : memref<2x8x16x128xf32, #tpu.memory_space<vmem>>, vector<1x1x16x128xf32>
    %96 = vector.shape_cast %95 : vector<1x1x16x128xf32> to vector<16x128xf32>
    %97 = vector.broadcast %94 : f32 to vector<16x128xf32>
    %98 = arith.mulf %97, %96 : vector<16x128xf32>
    %99 = arith.addf %90, %98 : vector<16x128xf32>
    %c2_i32_68 = arith.constant 2 : i32
    %100 = arith.muli %arg0, %c2_i32_68 : i32
    %c1_i32_69 = arith.constant 1 : i32
    %101 = arith.addi %100, %c1_i32_69 : i32
    %102 = arith.index_cast %101 : i32 to index
    %c3_70 = arith.constant 3 : index
    %103 = memref.load %arg1[%102, %c3_70] : memref<4x8xf32, #tpu.memory_space<smem>>
    %c1_71 = arith.constant 1 : index
    %c3_72 = arith.constant 3 : index
    %c0_73 = arith.constant 0 : index
    %c0_74 = arith.constant 0 : index
    %104 = vector.load %arg2[%c1_71, %c3_72, %c0_73, %c0_74] : memref<2x8x16x128xf32, #tpu.memory_space<vmem>>, vector<1x1x16x128xf32>
    %105 = vector.shape_cast %104 : vector<1x1x16x128xf32> to vector<16x128xf32>
    %106 = vector.broadcast %103 : f32 to vector<16x128xf32>
    %107 = arith.mulf %106, %105 : vector<16x128xf32>
    %108 = arith.addf %99, %107 : vector<16x128xf32>
    %c2_i32_75 = arith.constant 2 : i32
    %109 = arith.muli %arg0, %c2_i32_75 : i32
    %c1_i32_76 = arith.constant 1 : i32
    %110 = arith.addi %109, %c1_i32_76 : i32
    %111 = arith.index_cast %110 : i32 to index
    %c4_77 = arith.constant 4 : index
    %112 = memref.load %arg1[%111, %c4_77] : memref<4x8xf32, #tpu.memory_space<smem>>
    %c1_78 = arith.constant 1 : index
    %c4_79 = arith.constant 4 : index
    %c0_80 = arith.constant 0 : index
    %c0_81 = arith.constant 0 : index
    %113 = vector.load %arg2[%c1_78, %c4_79, %c0_80, %c0_81] : memref<2x8x16x128xf32, #tpu.memory_space<vmem>>, vector<1x1x16x128xf32>
    %114 = vector.shape_cast %113 : vector<1x1x16x128xf32> to vector<16x128xf32>
    %115 = vector.broadcast %112 : f32 to vector<16x128xf32>
    %116 = arith.mulf %115, %114 : vector<16x128xf32>
    %117 = arith.addf %108, %116 : vector<16x128xf32>
    %c2_i32_82 = arith.constant 2 : i32
    %118 = arith.muli %arg0, %c2_i32_82 : i32
    %c1_i32_83 = arith.constant 1 : i32
    %119 = arith.addi %118, %c1_i32_83 : i32
    %120 = arith.index_cast %119 : i32 to index
    %c5_84 = arith.constant 5 : index
    %121 = memref.load %arg1[%120, %c5_84] : memref<4x8xf32, #tpu.memory_space<smem>>
    %c1_85 = arith.constant 1 : index
    %c5_86 = arith.constant 5 : index
    %c0_87 = arith.constant 0 : index
    %c0_88 = arith.constant 0 : index
    %122 = vector.load %arg2[%c1_85, %c5_86, %c0_87, %c0_88] : memref<2x8x16x128xf32, #tpu.memory_space<vmem>>, vector<1x1x16x128xf32>
    %123 = vector.shape_cast %122 : vector<1x1x16x128xf32> to vector<16x128xf32>
    %124 = vector.broadcast %121 : f32 to vector<16x128xf32>
    %125 = arith.mulf %124, %123 : vector<16x128xf32>
    %126 = arith.addf %117, %125 : vector<16x128xf32>
    %c2_i32_89 = arith.constant 2 : i32
    %127 = arith.muli %arg0, %c2_i32_89 : i32
    %c1_i32_90 = arith.constant 1 : i32
    %128 = arith.addi %127, %c1_i32_90 : i32
    %129 = arith.index_cast %128 : i32 to index
    %c6_91 = arith.constant 6 : index
    %130 = memref.load %arg1[%129, %c6_91] : memref<4x8xf32, #tpu.memory_space<smem>>
    %c1_92 = arith.constant 1 : index
    %c6_93 = arith.constant 6 : index
    %c0_94 = arith.constant 0 : index
    %c0_95 = arith.constant 0 : index
    %131 = vector.load %arg2[%c1_92, %c6_93, %c0_94, %c0_95] : memref<2x8x16x128xf32, #tpu.memory_space<vmem>>, vector<1x1x16x128xf32>
    %132 = vector.shape_cast %131 : vector<1x1x16x128xf32> to vector<16x128xf32>
    %133 = vector.broadcast %130 : f32 to vector<16x128xf32>
    %134 = arith.mulf %133, %132 : vector<16x128xf32>
    %135 = arith.addf %126, %134 : vector<16x128xf32>
    %c2_i32_96 = arith.constant 2 : i32
    %136 = arith.muli %arg0, %c2_i32_96 : i32
    %c1_i32_97 = arith.constant 1 : i32
    %137 = arith.addi %136, %c1_i32_97 : i32
    %138 = arith.index_cast %137 : i32 to index
    %c7_98 = arith.constant 7 : index
    %139 = memref.load %arg1[%138, %c7_98] : memref<4x8xf32, #tpu.memory_space<smem>>
    %c1_99 = arith.constant 1 : index
    %c7_100 = arith.constant 7 : index
    %c0_101 = arith.constant 0 : index
    %c0_102 = arith.constant 0 : index
    %140 = vector.load %arg2[%c1_99, %c7_100, %c0_101, %c0_102] : memref<2x8x16x128xf32, #tpu.memory_space<vmem>>, vector<1x1x16x128xf32>
    %141 = vector.shape_cast %140 : vector<1x1x16x128xf32> to vector<16x128xf32>
    %142 = vector.broadcast %139 : f32 to vector<16x128xf32>
    %143 = arith.mulf %142, %141 : vector<16x128xf32>
    %144 = arith.addf %135, %143 : vector<16x128xf32>
    %c0_103 = arith.constant 0 : index
    %c0_104 = arith.constant 0 : index
    %145 = vector.load %arg5[%c0_103, %c0_104] : memref<9x128xf32, #tpu.memory_space<vmem>>, vector<9x128xf32>
    %c9_i32 = arith.constant 9 : i32
    %146 = tpu.dynamic_rotate %144 by %c9_i32 dim 1 : vector<16x128xf32>, i32 -> vector<16x128xf32>
    %147 = vector.extract_strided_slice %145 {offsets = [0, 0], sizes = [1, 128], strides = [1, 1]} : vector<9x128xf32> to vector<1x128xf32>
    %148 = vector.broadcast %147 : vector<1x128xf32> to vector<16x128xf32>
    %149 = arith.mulf %146, %148 : vector<16x128xf32>
    %c8_i32 = arith.constant 8 : i32
    %150 = tpu.dynamic_rotate %144 by %c8_i32 dim 1 : vector<16x128xf32>, i32 -> vector<16x128xf32>
    %151 = vector.extract_strided_slice %145 {offsets = [1, 0], sizes = [1, 128], strides = [1, 1]} : vector<9x128xf32> to vector<1x128xf32>
    %152 = vector.broadcast %151 : vector<1x128xf32> to vector<16x128xf32>
    %153 = arith.mulf %150, %152 : vector<16x128xf32>
    %c7_i32 = arith.constant 7 : i32
    %154 = tpu.dynamic_rotate %144 by %c7_i32 dim 1 : vector<16x128xf32>, i32 -> vector<16x128xf32>
    %155 = vector.extract_strided_slice %145 {offsets = [2, 0], sizes = [1, 128], strides = [1, 1]} : vector<9x128xf32> to vector<1x128xf32>
    %156 = vector.broadcast %155 : vector<1x128xf32> to vector<16x128xf32>
    %157 = arith.mulf %154, %156 : vector<16x128xf32>
    %c1_i32_105 = arith.constant 1 : i32
    %158 = tpu.dynamic_rotate %144 by %c1_i32_105 dim 1 : vector<16x128xf32>, i32 -> vector<16x128xf32>
    %159 = vector.extract_strided_slice %145 {offsets = [3, 0], sizes = [1, 128], strides = [1, 1]} : vector<9x128xf32> to vector<1x128xf32>
    %160 = vector.broadcast %159 : vector<1x128xf32> to vector<16x128xf32>
    %161 = arith.mulf %158, %160 : vector<16x128xf32>
    %c127_i32 = arith.constant 127 : i32
    %162 = tpu.dynamic_rotate %144 by %c127_i32 dim 1 : vector<16x128xf32>, i32 -> vector<16x128xf32>
    %163 = vector.extract_strided_slice %145 {offsets = [5, 0], sizes = [1, 128], strides = [1, 1]} : vector<9x128xf32> to vector<1x128xf32>
    %164 = vector.broadcast %163 : vector<1x128xf32> to vector<16x128xf32>
    %165 = arith.mulf %162, %164 : vector<16x128xf32>
    %c121_i32 = arith.constant 121 : i32
    %166 = tpu.dynamic_rotate %144 by %c121_i32 dim 1 : vector<16x128xf32>, i32 -> vector<16x128xf32>
    %167 = vector.extract_strided_slice %145 {offsets = [6, 0], sizes = [1, 128], strides = [1, 1]} : vector<9x128xf32> to vector<1x128xf32>
    %168 = vector.broadcast %167 : vector<1x128xf32> to vector<16x128xf32>
    %169 = arith.mulf %166, %168 : vector<16x128xf32>
    %c120_i32 = arith.constant 120 : i32
    %170 = tpu.dynamic_rotate %144 by %c120_i32 dim 1 : vector<16x128xf32>, i32 -> vector<16x128xf32>
    %171 = vector.extract_strided_slice %145 {offsets = [7, 0], sizes = [1, 128], strides = [1, 1]} : vector<9x128xf32> to vector<1x128xf32>
    %172 = vector.broadcast %171 : vector<1x128xf32> to vector<16x128xf32>
    %173 = arith.mulf %170, %172 : vector<16x128xf32>
    %c119_i32 = arith.constant 119 : i32
    %174 = tpu.dynamic_rotate %144 by %c119_i32 dim 1 : vector<16x128xf32>, i32 -> vector<16x128xf32>
    %175 = vector.extract_strided_slice %145 {offsets = [8, 0], sizes = [1, 128], strides = [1, 1]} : vector<9x128xf32> to vector<1x128xf32>
    %176 = vector.broadcast %175 : vector<1x128xf32> to vector<16x128xf32>
    %177 = arith.mulf %174, %176 : vector<16x128xf32>
    %178 = tpu.concatenate %149, %153, %157, %161, %144, %165, %169, %173, %177 in 0 : vector<16x128xf32>, vector<16x128xf32>, vector<16x128xf32>, vector<16x128xf32>, vector<16x128xf32>, vector<16x128xf32>, vector<16x128xf32>, vector<16x128xf32>, vector<16x128xf32> -> vector<144x128xf32>
    %c0_106 = arith.constant 0 : index
    %c0_107 = arith.constant 0 : index
    %179 = vector.load %arg7[%c0_106, %c0_107] : memref<8x144xf32, #tpu.memory_space<vmem>>, vector<8x144xf32>
    %cst = arith.constant dense<0.000000e+00> : vector<8x128xf32>
    %180 = tpu.matmul %179, %178, %cst {dimension_numbers = #tpu.dot_dimension_numbers<[1], [0], [0], [1], [0, 0, 1, 1], [], []>} : vector<8x144xf32>, vector<144x128xf32>, vector<8x128xf32> -> vector<8x128xf32>
    %c0_108 = arith.constant 0 : index
    %c0_109 = arith.constant 0 : index
    %181 = vector.load %arg8[%c0_108, %c0_109] : memref<8x1xf32, #tpu.memory_space<vmem>>, vector<8x1xf32>
    %182 = vector.broadcast %181 : vector<8x1xf32> to vector<8x128xf32>
    %183 = arith.addf %180, %182 : vector<8x128xf32>
    %cst_110 = arith.constant 0.000000e+00 : f32
    %184 = vector.broadcast %cst_110 : f32 to vector<8x128xf32>
    %185 = arith.maximumf %183, %184 : vector<8x128xf32>
    %c9_i32_111 = arith.constant 9 : i32
    %186 = tpu.dynamic_rotate %185 by %c9_i32_111 dim 1 : vector<8x128xf32>, i32 -> vector<8x128xf32>
    %187 = vector.extract_strided_slice %145 {offsets = [0, 0], sizes = [1, 128], strides = [1, 1]} : vector<9x128xf32> to vector<1x128xf32>
    %188 = vector.broadcast %187 : vector<1x128xf32> to vector<8x128xf32>
    %189 = arith.mulf %186, %188 : vector<8x128xf32>
    %c8_i32_112 = arith.constant 8 : i32
    %190 = tpu.dynamic_rotate %185 by %c8_i32_112 dim 1 : vector<8x128xf32>, i32 -> vector<8x128xf32>
    %191 = vector.extract_strided_slice %145 {offsets = [1, 0], sizes = [1, 128], strides = [1, 1]} : vector<9x128xf32> to vector<1x128xf32>
    %192 = vector.broadcast %191 : vector<1x128xf32> to vector<8x128xf32>
    %193 = arith.mulf %190, %192 : vector<8x128xf32>
    %c7_i32_113 = arith.constant 7 : i32
    %194 = tpu.dynamic_rotate %185 by %c7_i32_113 dim 1 : vector<8x128xf32>, i32 -> vector<8x128xf32>
    %195 = vector.extract_strided_slice %145 {offsets = [2, 0], sizes = [1, 128], strides = [1, 1]} : vector<9x128xf32> to vector<1x128xf32>
    %196 = vector.broadcast %195 : vector<1x128xf32> to vector<8x128xf32>
    %197 = arith.mulf %194, %196 : vector<8x128xf32>
    %c1_i32_114 = arith.constant 1 : i32
    %198 = tpu.dynamic_rotate %185 by %c1_i32_114 dim 1 : vector<8x128xf32>, i32 -> vector<8x128xf32>
    %199 = vector.extract_strided_slice %145 {offsets = [3, 0], sizes = [1, 128], strides = [1, 1]} : vector<9x128xf32> to vector<1x128xf32>
    %200 = vector.broadcast %199 : vector<1x128xf32> to vector<8x128xf32>
    %201 = arith.mulf %198, %200 : vector<8x128xf32>
    %c127_i32_115 = arith.constant 127 : i32
    %202 = tpu.dynamic_rotate %185 by %c127_i32_115 dim 1 : vector<8x128xf32>, i32 -> vector<8x128xf32>
    %203 = vector.extract_strided_slice %145 {offsets = [5, 0], sizes = [1, 128], strides = [1, 1]} : vector<9x128xf32> to vector<1x128xf32>
    %204 = vector.broadcast %203 : vector<1x128xf32> to vector<8x128xf32>
    %205 = arith.mulf %202, %204 : vector<8x128xf32>
    %c121_i32_116 = arith.constant 121 : i32
    %206 = tpu.dynamic_rotate %185 by %c121_i32_116 dim 1 : vector<8x128xf32>, i32 -> vector<8x128xf32>
    %207 = vector.extract_strided_slice %145 {offsets = [6, 0], sizes = [1, 128], strides = [1, 1]} : vector<9x128xf32> to vector<1x128xf32>
    %208 = vector.broadcast %207 : vector<1x128xf32> to vector<8x128xf32>
    %209 = arith.mulf %206, %208 : vector<8x128xf32>
    %c120_i32_117 = arith.constant 120 : i32
    %210 = tpu.dynamic_rotate %185 by %c120_i32_117 dim 1 : vector<8x128xf32>, i32 -> vector<8x128xf32>
    %211 = vector.extract_strided_slice %145 {offsets = [7, 0], sizes = [1, 128], strides = [1, 1]} : vector<9x128xf32> to vector<1x128xf32>
    %212 = vector.broadcast %211 : vector<1x128xf32> to vector<8x128xf32>
    %213 = arith.mulf %210, %212 : vector<8x128xf32>
    %c119_i32_118 = arith.constant 119 : i32
    %214 = tpu.dynamic_rotate %185 by %c119_i32_118 dim 1 : vector<8x128xf32>, i32 -> vector<8x128xf32>
    %215 = vector.extract_strided_slice %145 {offsets = [8, 0], sizes = [1, 128], strides = [1, 1]} : vector<9x128xf32> to vector<1x128xf32>
    %216 = vector.broadcast %215 : vector<1x128xf32> to vector<8x128xf32>
    %217 = arith.mulf %214, %216 : vector<8x128xf32>
    %218 = tpu.concatenate %189, %193, %197, %201, %185, %205, %209, %213, %217 in 0 : vector<8x128xf32>, vector<8x128xf32>, vector<8x128xf32>, vector<8x128xf32>, vector<8x128xf32>, vector<8x128xf32>, vector<8x128xf32>, vector<8x128xf32>, vector<8x128xf32> -> vector<72x128xf32>
    %c0_119 = arith.constant 0 : index
    %c0_120 = arith.constant 0 : index
    %219 = vector.load %arg9[%c0_119, %c0_120] : memref<8x72xf32, #tpu.memory_space<vmem>>, vector<8x72xf32>
    %cst_121 = arith.constant dense<0.000000e+00> : vector<8x128xf32>
    %220 = tpu.matmul %219, %218, %cst_121 {dimension_numbers = #tpu.dot_dimension_numbers<[1], [0], [0], [1], [0, 0, 1, 1], [], []>} : vector<8x72xf32>, vector<72x128xf32>, vector<8x128xf32> -> vector<8x128xf32>
    %c0_122 = arith.constant 0 : index
    %c0_123 = arith.constant 0 : index
    %221 = vector.load %arg10[%c0_122, %c0_123] : memref<8x1xf32, #tpu.memory_space<vmem>>, vector<8x1xf32>
    %222 = vector.broadcast %221 : vector<8x1xf32> to vector<8x128xf32>
    %223 = arith.addf %220, %222 : vector<8x128xf32>
    %cst_124 = arith.constant 0.000000e+00 : f32
    %224 = vector.broadcast %cst_124 : f32 to vector<8x128xf32>
    %225 = arith.maximumf %223, %224 : vector<8x128xf32>
    %c0_125 = arith.constant 0 : index
    %c0_126 = arith.constant 0 : index
    %226 = vector.load %arg4[%c0_125, %c0_126] : memref<128x512xf32, #tpu.memory_space<vmem>>, vector<128x512xf32>
    %cst_127 = arith.constant dense<0.000000e+00> : vector<8x512xf32>
    %227 = tpu.matmul %225, %226, %cst_127 {dimension_numbers = #tpu.dot_dimension_numbers<[1], [0], [0], [1], [0, 0, 1, 1], [], []>} : vector<8x128xf32>, vector<128x512xf32>, vector<8x512xf32> -> vector<8x512xf32>
    %c0_128 = arith.constant 0 : index
    %c0_129 = arith.constant 0 : index
    %228 = vector.load %arg6[%c0_128, %c0_129] : memref<9x512xf32, #tpu.memory_space<vmem>>, vector<9x512xf32>
    %c17_i32 = arith.constant 17 : i32
    %229 = tpu.dynamic_rotate %227 by %c17_i32 dim 1 : vector<8x512xf32>, i32 -> vector<8x512xf32>
    %230 = vector.extract_strided_slice %228 {offsets = [0, 0], sizes = [1, 512], strides = [1, 1]} : vector<9x512xf32> to vector<1x512xf32>
    %231 = vector.broadcast %230 : vector<1x512xf32> to vector<8x512xf32>
    %232 = arith.mulf %229, %231 : vector<8x512xf32>
    %c16_i32 = arith.constant 16 : i32
    %233 = tpu.dynamic_rotate %227 by %c16_i32 dim 1 : vector<8x512xf32>, i32 -> vector<8x512xf32>
    %234 = vector.extract_strided_slice %228 {offsets = [1, 0], sizes = [1, 512], strides = [1, 1]} : vector<9x512xf32> to vector<1x512xf32>
    %235 = vector.broadcast %234 : vector<1x512xf32> to vector<8x512xf32>
    %236 = arith.mulf %233, %235 : vector<8x512xf32>
    %c15_i32 = arith.constant 15 : i32
    %237 = tpu.dynamic_rotate %227 by %c15_i32 dim 1 : vector<8x512xf32>, i32 -> vector<8x512xf32>
    %238 = vector.extract_strided_slice %228 {offsets = [2, 0], sizes = [1, 512], strides = [1, 1]} : vector<9x512xf32> to vector<1x512xf32>
    %239 = vector.broadcast %238 : vector<1x512xf32> to vector<8x512xf32>
    %240 = arith.mulf %237, %239 : vector<8x512xf32>
    %c1_i32_130 = arith.constant 1 : i32
    %241 = tpu.dynamic_rotate %227 by %c1_i32_130 dim 1 : vector<8x512xf32>, i32 -> vector<8x512xf32>
    %242 = vector.extract_strided_slice %228 {offsets = [3, 0], sizes = [1, 512], strides = [1, 1]} : vector<9x512xf32> to vector<1x512xf32>
    %243 = vector.broadcast %242 : vector<1x512xf32> to vector<8x512xf32>
    %244 = arith.mulf %241, %243 : vector<8x512xf32>
    %c511_i32 = arith.constant 511 : i32
    %245 = tpu.dynamic_rotate %227 by %c511_i32 dim 1 : vector<8x512xf32>, i32 -> vector<8x512xf32>
    %246 = vector.extract_strided_slice %228 {offsets = [5, 0], sizes = [1, 512], strides = [1, 1]} : vector<9x512xf32> to vector<1x512xf32>
    %247 = vector.broadcast %246 : vector<1x512xf32> to vector<8x512xf32>
    %248 = arith.mulf %245, %247 : vector<8x512xf32>
    %c497_i32 = arith.constant 497 : i32
    %249 = tpu.dynamic_rotate %227 by %c497_i32 dim 1 : vector<8x512xf32>, i32 -> vector<8x512xf32>
    %250 = vector.extract_strided_slice %228 {offsets = [6, 0], sizes = [1, 512], strides = [1, 1]} : vector<9x512xf32> to vector<1x512xf32>
    %251 = vector.broadcast %250 : vector<1x512xf32> to vector<8x512xf32>
    %252 = arith.mulf %249, %251 : vector<8x512xf32>
    %c496_i32 = arith.constant 496 : i32
    %253 = tpu.dynamic_rotate %227 by %c496_i32 dim 1 : vector<8x512xf32>, i32 -> vector<8x512xf32>
    %254 = vector.extract_strided_slice %228 {offsets = [7, 0], sizes = [1, 512], strides = [1, 1]} : vector<9x512xf32> to vector<1x512xf32>
    %255 = vector.broadcast %254 : vector<1x512xf32> to vector<8x512xf32>
    %256 = arith.mulf %253, %255 : vector<8x512xf32>
    %c495_i32 = arith.constant 495 : i32
    %257 = tpu.dynamic_rotate %227 by %c495_i32 dim 1 : vector<8x512xf32>, i32 -> vector<8x512xf32>
    %258 = vector.extract_strided_slice %228 {offsets = [8, 0], sizes = [1, 512], strides = [1, 1]} : vector<9x512xf32> to vector<1x512xf32>
    %259 = vector.broadcast %258 : vector<1x512xf32> to vector<8x512xf32>
    %260 = arith.mulf %257, %259 : vector<8x512xf32>
    %261 = tpu.concatenate %232, %236, %240, %244, %227, %248, %252, %256, %260 in 0 : vector<8x512xf32>, vector<8x512xf32>, vector<8x512xf32>, vector<8x512xf32>, vector<8x512xf32>, vector<8x512xf32>, vector<8x512xf32>, vector<8x512xf32>, vector<8x512xf32> -> vector<72x512xf32>
    %c0_131 = arith.constant 0 : index
    %c0_132 = arith.constant 0 : index
    %262 = vector.load %arg11[%c0_131, %c0_132] : memref<8x72xf32, #tpu.memory_space<vmem>>, vector<8x72xf32>
    %cst_133 = arith.constant dense<0.000000e+00> : vector<8x512xf32>
    %263 = tpu.matmul %262, %261, %cst_133 {dimension_numbers = #tpu.dot_dimension_numbers<[1], [0], [0], [1], [0, 0, 1, 1], [], []>} : vector<8x72xf32>, vector<72x512xf32>, vector<8x512xf32> -> vector<8x512xf32>
    %c0_134 = arith.constant 0 : index
    %c0_135 = arith.constant 0 : index
    %264 = vector.load %arg12[%c0_134, %c0_135] : memref<8x1xf32, #tpu.memory_space<vmem>>, vector<8x1xf32>
    %265 = vector.broadcast %264 : vector<8x1xf32> to vector<8x512xf32>
    %266 = arith.addf %263, %265 : vector<8x512xf32>
    %cst_136 = arith.constant 0.000000e+00 : f32
    %267 = vector.broadcast %cst_136 : f32 to vector<8x512xf32>
    %268 = arith.maximumf %266, %267 : vector<8x512xf32>
    %c17_i32_137 = arith.constant 17 : i32
    %269 = tpu.dynamic_rotate %268 by %c17_i32_137 dim 1 : vector<8x512xf32>, i32 -> vector<8x512xf32>
    %270 = vector.extract_strided_slice %228 {offsets = [0, 0], sizes = [1, 512], strides = [1, 1]} : vector<9x512xf32> to vector<1x512xf32>
    %271 = vector.broadcast %270 : vector<1x512xf32> to vector<8x512xf32>
    %272 = arith.mulf %269, %271 : vector<8x512xf32>
    %c16_i32_138 = arith.constant 16 : i32
    %273 = tpu.dynamic_rotate %268 by %c16_i32_138 dim 1 : vector<8x512xf32>, i32 -> vector<8x512xf32>
    %274 = vector.extract_strided_slice %228 {offsets = [1, 0], sizes = [1, 512], strides = [1, 1]} : vector<9x512xf32> to vector<1x512xf32>
    %275 = vector.broadcast %274 : vector<1x512xf32> to vector<8x512xf32>
    %276 = arith.mulf %273, %275 : vector<8x512xf32>
    %c15_i32_139 = arith.constant 15 : i32
    %277 = tpu.dynamic_rotate %268 by %c15_i32_139 dim 1 : vector<8x512xf32>, i32 -> vector<8x512xf32>
    %278 = vector.extract_strided_slice %228 {offsets = [2, 0], sizes = [1, 512], strides = [1, 1]} : vector<9x512xf32> to vector<1x512xf32>
    %279 = vector.broadcast %278 : vector<1x512xf32> to vector<8x512xf32>
    %280 = arith.mulf %277, %279 : vector<8x512xf32>
    %c1_i32_140 = arith.constant 1 : i32
    %281 = tpu.dynamic_rotate %268 by %c1_i32_140 dim 1 : vector<8x512xf32>, i32 -> vector<8x512xf32>
    %282 = vector.extract_strided_slice %228 {offsets = [3, 0], sizes = [1, 512], strides = [1, 1]} : vector<9x512xf32> to vector<1x512xf32>
    %283 = vector.broadcast %282 : vector<1x512xf32> to vector<8x512xf32>
    %284 = arith.mulf %281, %283 : vector<8x512xf32>
    %c511_i32_141 = arith.constant 511 : i32
    %285 = tpu.dynamic_rotate %268 by %c511_i32_141 dim 1 : vector<8x512xf32>, i32 -> vector<8x512xf32>
    %286 = vector.extract_strided_slice %228 {offsets = [5, 0], sizes = [1, 512], strides = [1, 1]} : vector<9x512xf32> to vector<1x512xf32>
    %287 = vector.broadcast %286 : vector<1x512xf32> to vector<8x512xf32>
    %288 = arith.mulf %285, %287 : vector<8x512xf32>
    %c497_i32_142 = arith.constant 497 : i32
    %289 = tpu.dynamic_rotate %268 by %c497_i32_142 dim 1 : vector<8x512xf32>, i32 -> vector<8x512xf32>
    %290 = vector.extract_strided_slice %228 {offsets = [6, 0], sizes = [1, 512], strides = [1, 1]} : vector<9x512xf32> to vector<1x512xf32>
    %291 = vector.broadcast %290 : vector<1x512xf32> to vector<8x512xf32>
    %292 = arith.mulf %289, %291 : vector<8x512xf32>
    %c496_i32_143 = arith.constant 496 : i32
    %293 = tpu.dynamic_rotate %268 by %c496_i32_143 dim 1 : vector<8x512xf32>, i32 -> vector<8x512xf32>
    %294 = vector.extract_strided_slice %228 {offsets = [7, 0], sizes = [1, 512], strides = [1, 1]} : vector<9x512xf32> to vector<1x512xf32>
    %295 = vector.broadcast %294 : vector<1x512xf32> to vector<8x512xf32>
    %296 = arith.mulf %293, %295 : vector<8x512xf32>
    %c495_i32_144 = arith.constant 495 : i32
    %297 = tpu.dynamic_rotate %268 by %c495_i32_144 dim 1 : vector<8x512xf32>, i32 -> vector<8x512xf32>
    %298 = vector.extract_strided_slice %228 {offsets = [8, 0], sizes = [1, 512], strides = [1, 1]} : vector<9x512xf32> to vector<1x512xf32>
    %299 = vector.broadcast %298 : vector<1x512xf32> to vector<8x512xf32>
    %300 = arith.mulf %297, %299 : vector<8x512xf32>
    %301 = tpu.concatenate %272, %276, %280, %284, %268, %288, %292, %296, %300 in 0 : vector<8x512xf32>, vector<8x512xf32>, vector<8x512xf32>, vector<8x512xf32>, vector<8x512xf32>, vector<8x512xf32>, vector<8x512xf32>, vector<8x512xf32>, vector<8x512xf32> -> vector<72x512xf32>
    %c0_145 = arith.constant 0 : index
    %c0_146 = arith.constant 0 : index
    %302 = vector.load %arg13[%c0_145, %c0_146] : memref<8x72xf32, #tpu.memory_space<vmem>>, vector<8x72xf32>
    %cst_147 = arith.constant dense<0.000000e+00> : vector<8x512xf32>
    %303 = tpu.matmul %302, %301, %cst_147 {dimension_numbers = #tpu.dot_dimension_numbers<[1], [0], [0], [1], [0, 0, 1, 1], [], []>} : vector<8x72xf32>, vector<72x512xf32>, vector<8x512xf32> -> vector<8x512xf32>
    %c0_148 = arith.constant 0 : index
    %c0_149 = arith.constant 0 : index
    %304 = vector.load %arg14[%c0_148, %c0_149] : memref<8x1xf32, #tpu.memory_space<vmem>>, vector<8x1xf32>
    %305 = vector.broadcast %304 : vector<8x1xf32> to vector<8x512xf32>
    %306 = arith.addf %303, %305 : vector<8x512xf32>
    %cst_150 = arith.constant 0.000000e+00 : f32
    %307 = vector.broadcast %cst_150 : f32 to vector<8x512xf32>
    %308 = arith.maximumf %306, %307 : vector<8x512xf32>
    %c0_151 = arith.constant 0 : index
    %c0_152 = arith.constant 0 : index
    %309 = vector.load %arg6[%c0_151, %c0_152] : memref<9x512xf32, #tpu.memory_space<vmem>>, vector<9x512xf32>
    %c17_i32_153 = arith.constant 17 : i32
    %310 = tpu.dynamic_rotate %308 by %c17_i32_153 dim 1 : vector<8x512xf32>, i32 -> vector<8x512xf32>
    %311 = vector.extract_strided_slice %309 {offsets = [0, 0], sizes = [1, 512], strides = [1, 1]} : vector<9x512xf32> to vector<1x512xf32>
    %312 = vector.broadcast %311 : vector<1x512xf32> to vector<8x512xf32>
    %313 = arith.mulf %310, %312 : vector<8x512xf32>
    %c16_i32_154 = arith.constant 16 : i32
    %314 = tpu.dynamic_rotate %308 by %c16_i32_154 dim 1 : vector<8x512xf32>, i32 -> vector<8x512xf32>
    %315 = vector.extract_strided_slice %309 {offsets = [1, 0], sizes = [1, 512], strides = [1, 1]} : vector<9x512xf32> to vector<1x512xf32>
    %316 = vector.broadcast %315 : vector<1x512xf32> to vector<8x512xf32>
    %317 = arith.mulf %314, %316 : vector<8x512xf32>
    %c15_i32_155 = arith.constant 15 : i32
    %318 = tpu.dynamic_rotate %308 by %c15_i32_155 dim 1 : vector<8x512xf32>, i32 -> vector<8x512xf32>
    %319 = vector.extract_strided_slice %309 {offsets = [2, 0], sizes = [1, 512], strides = [1, 1]} : vector<9x512xf32> to vector<1x512xf32>
    %320 = vector.broadcast %319 : vector<1x512xf32> to vector<8x512xf32>
    %321 = arith.mulf %318, %320 : vector<8x512xf32>
    %c1_i32_156 = arith.constant 1 : i32
    %322 = tpu.dynamic_rotate %308 by %c1_i32_156 dim 1 : vector<8x512xf32>, i32 -> vector<8x512xf32>
    %323 = vector.extract_strided_slice %309 {offsets = [3, 0], sizes = [1, 512], strides = [1, 1]} : vector<9x512xf32> to vector<1x512xf32>
    %324 = vector.broadcast %323 : vector<1x512xf32> to vector<8x512xf32>
    %325 = arith.mulf %322, %324 : vector<8x512xf32>
    %c511_i32_157 = arith.constant 511 : i32
    %326 = tpu.dynamic_rotate %308 by %c511_i32_157 dim 1 : vector<8x512xf32>, i32 -> vector<8x512xf32>
    %327 = vector.extract_strided_slice %309 {offsets = [5, 0], sizes = [1, 512], strides = [1, 1]} : vector<9x512xf32> to vector<1x512xf32>
    %328 = vector.broadcast %327 : vector<1x512xf32> to vector<8x512xf32>
    %329 = arith.mulf %326, %328 : vector<8x512xf32>
    %c497_i32_158 = arith.constant 497 : i32
    %330 = tpu.dynamic_rotate %308 by %c497_i32_158 dim 1 : vector<8x512xf32>, i32 -> vector<8x512xf32>
    %331 = vector.extract_strided_slice %309 {offsets = [6, 0], sizes = [1, 512], strides = [1, 1]} : vector<9x512xf32> to vector<1x512xf32>
    %332 = vector.broadcast %331 : vector<1x512xf32> to vector<8x512xf32>
    %333 = arith.mulf %330, %332 : vector<8x512xf32>
    %c496_i32_159 = arith.constant 496 : i32
    %334 = tpu.dynamic_rotate %308 by %c496_i32_159 dim 1 : vector<8x512xf32>, i32 -> vector<8x512xf32>
    %335 = vector.extract_strided_slice %309 {offsets = [7, 0], sizes = [1, 512], strides = [1, 1]} : vector<9x512xf32> to vector<1x512xf32>
    %336 = vector.broadcast %335 : vector<1x512xf32> to vector<8x512xf32>
    %337 = arith.mulf %334, %336 : vector<8x512xf32>
    %c495_i32_160 = arith.constant 495 : i32
    %338 = tpu.dynamic_rotate %308 by %c495_i32_160 dim 1 : vector<8x512xf32>, i32 -> vector<8x512xf32>
    %339 = vector.extract_strided_slice %309 {offsets = [8, 0], sizes = [1, 512], strides = [1, 1]} : vector<9x512xf32> to vector<1x512xf32>
    %340 = vector.broadcast %339 : vector<1x512xf32> to vector<8x512xf32>
    %341 = arith.mulf %338, %340 : vector<8x512xf32>
    %342 = tpu.concatenate %313, %317, %321, %325, %308, %329, %333, %337, %341 in 0 : vector<8x512xf32>, vector<8x512xf32>, vector<8x512xf32>, vector<8x512xf32>, vector<8x512xf32>, vector<8x512xf32>, vector<8x512xf32>, vector<8x512xf32>, vector<8x512xf32> -> vector<72x512xf32>
    %c0_161 = arith.constant 0 : index
    %c0_162 = arith.constant 0 : index
    %343 = vector.load %arg15[%c0_161, %c0_162] : memref<8x72xf32, #tpu.memory_space<vmem>>, vector<8x72xf32>
    %cst_163 = arith.constant dense<0.000000e+00> : vector<8x512xf32>
    %344 = tpu.matmul %343, %342, %cst_163 {dimension_numbers = #tpu.dot_dimension_numbers<[1], [0], [0], [1], [0, 0, 1, 1], [], []>} : vector<8x72xf32>, vector<72x512xf32>, vector<8x512xf32> -> vector<8x512xf32>
    %c0_164 = arith.constant 0 : index
    %c0_165 = arith.constant 0 : index
    %345 = vector.load %arg16[%c0_164, %c0_165] : memref<8x1xf32, #tpu.memory_space<vmem>>, vector<8x1xf32>
    %346 = vector.broadcast %345 : vector<8x1xf32> to vector<8x512xf32>
    %347 = arith.addf %344, %346 : vector<8x512xf32>
    %cst_166 = arith.constant 0.000000e+00 : f32
    %348 = vector.broadcast %cst_166 : f32 to vector<8x512xf32>
    %349 = arith.maximumf %347, %348 : vector<8x512xf32>
    %c17_i32_167 = arith.constant 17 : i32
    %350 = tpu.dynamic_rotate %349 by %c17_i32_167 dim 1 : vector<8x512xf32>, i32 -> vector<8x512xf32>
    %351 = vector.extract_strided_slice %309 {offsets = [0, 0], sizes = [1, 512], strides = [1, 1]} : vector<9x512xf32> to vector<1x512xf32>
    %352 = vector.broadcast %351 : vector<1x512xf32> to vector<8x512xf32>
    %353 = arith.mulf %350, %352 : vector<8x512xf32>
    %c16_i32_168 = arith.constant 16 : i32
    %354 = tpu.dynamic_rotate %349 by %c16_i32_168 dim 1 : vector<8x512xf32>, i32 -> vector<8x512xf32>
    %355 = vector.extract_strided_slice %309 {offsets = [1, 0], sizes = [1, 512], strides = [1, 1]} : vector<9x512xf32> to vector<1x512xf32>
    %356 = vector.broadcast %355 : vector<1x512xf32> to vector<8x512xf32>
    %357 = arith.mulf %354, %356 : vector<8x512xf32>
    %c15_i32_169 = arith.constant 15 : i32
    %358 = tpu.dynamic_rotate %349 by %c15_i32_169 dim 1 : vector<8x512xf32>, i32 -> vector<8x512xf32>
    %359 = vector.extract_strided_slice %309 {offsets = [2, 0], sizes = [1, 512], strides = [1, 1]} : vector<9x512xf32> to vector<1x512xf32>
    %360 = vector.broadcast %359 : vector<1x512xf32> to vector<8x512xf32>
    %361 = arith.mulf %358, %360 : vector<8x512xf32>
    %c1_i32_170 = arith.constant 1 : i32
    %362 = tpu.dynamic_rotate %349 by %c1_i32_170 dim 1 : vector<8x512xf32>, i32 -> vector<8x512xf32>
    %363 = vector.extract_strided_slice %309 {offsets = [3, 0], sizes = [1, 512], strides = [1, 1]} : vector<9x512xf32> to vector<1x512xf32>
    %364 = vector.broadcast %363 : vector<1x512xf32> to vector<8x512xf32>
    %365 = arith.mulf %362, %364 : vector<8x512xf32>
    %c511_i32_171 = arith.constant 511 : i32
    %366 = tpu.dynamic_rotate %349 by %c511_i32_171 dim 1 : vector<8x512xf32>, i32 -> vector<8x512xf32>
    %367 = vector.extract_strided_slice %309 {offsets = [5, 0], sizes = [1, 512], strides = [1, 1]} : vector<9x512xf32> to vector<1x512xf32>
    %368 = vector.broadcast %367 : vector<1x512xf32> to vector<8x512xf32>
    %369 = arith.mulf %366, %368 : vector<8x512xf32>
    %c497_i32_172 = arith.constant 497 : i32
    %370 = tpu.dynamic_rotate %349 by %c497_i32_172 dim 1 : vector<8x512xf32>, i32 -> vector<8x512xf32>
    %371 = vector.extract_strided_slice %309 {offsets = [6, 0], sizes = [1, 512], strides = [1, 1]} : vector<9x512xf32> to vector<1x512xf32>
    %372 = vector.broadcast %371 : vector<1x512xf32> to vector<8x512xf32>
    %373 = arith.mulf %370, %372 : vector<8x512xf32>
    %c496_i32_173 = arith.constant 496 : i32
    %374 = tpu.dynamic_rotate %349 by %c496_i32_173 dim 1 : vector<8x512xf32>, i32 -> vector<8x512xf32>
    %375 = vector.extract_strided_slice %309 {offsets = [7, 0], sizes = [1, 512], strides = [1, 1]} : vector<9x512xf32> to vector<1x512xf32>
    %376 = vector.broadcast %375 : vector<1x512xf32> to vector<8x512xf32>
    %377 = arith.mulf %374, %376 : vector<8x512xf32>
    %c495_i32_174 = arith.constant 495 : i32
    %378 = tpu.dynamic_rotate %349 by %c495_i32_174 dim 1 : vector<8x512xf32>, i32 -> vector<8x512xf32>
    %379 = vector.extract_strided_slice %309 {offsets = [8, 0], sizes = [1, 512], strides = [1, 1]} : vector<9x512xf32> to vector<1x512xf32>
    %380 = vector.broadcast %379 : vector<1x512xf32> to vector<8x512xf32>
    %381 = arith.mulf %378, %380 : vector<8x512xf32>
    %382 = tpu.concatenate %353, %357, %361, %365, %349, %369, %373, %377, %381 in 0 : vector<8x512xf32>, vector<8x512xf32>, vector<8x512xf32>, vector<8x512xf32>, vector<8x512xf32>, vector<8x512xf32>, vector<8x512xf32>, vector<8x512xf32>, vector<8x512xf32> -> vector<72x512xf32>
    %c0_175 = arith.constant 0 : index
    %c0_176 = arith.constant 0 : index
    %383 = vector.load %arg17[%c0_175, %c0_176] : memref<8x72xf32, #tpu.memory_space<vmem>>, vector<8x72xf32>
    %cst_177 = arith.constant dense<0.000000e+00> : vector<8x512xf32>
    %384 = tpu.matmul %383, %382, %cst_177 {dimension_numbers = #tpu.dot_dimension_numbers<[1], [0], [0], [1], [0, 0, 1, 1], [], []>} : vector<8x72xf32>, vector<72x512xf32>, vector<8x512xf32> -> vector<8x512xf32>
    %c0_178 = arith.constant 0 : index
    %c0_179 = arith.constant 0 : index
    %385 = vector.load %arg18[%c0_178, %c0_179] : memref<8x1xf32, #tpu.memory_space<vmem>>, vector<8x1xf32>
    %386 = vector.broadcast %385 : vector<8x1xf32> to vector<8x512xf32>
    %387 = arith.addf %384, %386 : vector<8x512xf32>
    %388 = arith.negf %387 : vector<8x512xf32>
    %389 = math.exp %388 : vector<8x512xf32>
    %cst_180 = arith.constant 1.000000e+00 : f32
    %390 = vector.broadcast %cst_180 : f32 to vector<8x512xf32>
    %391 = arith.addf %390, %389 : vector<8x512xf32>
    %392 = arith.divf %390, %391 : vector<8x512xf32>
    %393 = vector.extract_strided_slice %392 {offsets = [0, 0], sizes = [3, 256], strides = [1, 1]} : vector<8x512xf32> to vector<3x256xf32>
    %c0_181 = arith.constant 0 : index
    %c0_182 = arith.constant 0 : index
    %c0_183 = arith.constant 0 : index
    %394 = vector.load %arg19[%c0_181, %c0_182, %c0_183] : memref<2x3x256xf32, #tpu.memory_space<vmem>>, vector<1x3x256xf32>
    %395 = vector.shape_cast %394 : vector<1x3x256xf32> to vector<3x256xf32>
    %396 = vector.shape_cast %393 : vector<3x256xf32> to vector<1x3x256xf32>
    tpu.vector_store %arg19[%c0_181, %c0_182, %c0_183], %396 {strides = array<i32>} : memref<2x3x256xf32, #tpu.memory_space<vmem>>, vector<1x3x256xf32>,
    %397 = vector.extract_strided_slice %392 {offsets = [0, 256], sizes = [3, 256], strides = [1, 1]} : vector<8x512xf32> to vector<3x256xf32>
    %c1_184 = arith.constant 1 : index
    %c0_185 = arith.constant 0 : index
    %c0_186 = arith.constant 0 : index
    %398 = vector.load %arg19[%c1_184, %c0_185, %c0_186] : memref<2x3x256xf32, #tpu.memory_space<vmem>>, vector<1x3x256xf32>
    %399 = vector.shape_cast %398 : vector<1x3x256xf32> to vector<3x256xf32>
    %400 = vector.shape_cast %397 : vector<3x256xf32> to vector<1x3x256xf32>
    tpu.vector_store %arg19[%c1_184, %c0_185, %c0_186], %400 {strides = array<i32>} : memref<2x3x256xf32, #tpu.memory_space<vmem>>, vector<1x3x256xf32>,
    return
  }
  func.func @transform_0(%arg0: i32) -> (i32, i32) {
    %c0_i32 = arith.constant 0 : i32
    %c0_i32_0 = arith.constant 0 : i32
    %c0_i32_1 = arith.constant 0 : i32
    return %c0_i32, %c0_i32_0 : i32, i32
  }
  func.func @transform_1(%arg0: i32) -> (i32, i32, i32, i32) {
    %c0_i32 = arith.constant 0 : i32
    %c0_i32_0 = arith.constant 0 : i32
    %c0_i32_1 = arith.constant 0 : i32
    %c0_i32_2 = arith.constant 0 : i32
    %c0_i32_3 = arith.constant 0 : i32
    return %c0_i32, %c0_i32_0, %c0_i32_1, %c0_i32_2 : i32, i32, i32, i32
  }
  func.func @transform_2(%arg0: i32) -> (i32, i32) {
    %c0_i32 = arith.constant 0 : i32
    %c0_i32_0 = arith.constant 0 : i32
    %c0_i32_1 = arith.constant 0 : i32
    return %c0_i32, %c0_i32_0 : i32, i32
  }
  func.func @transform_3(%arg0: i32) -> (i32, i32) {
    %c0_i32 = arith.constant 0 : i32
    %c0_i32_0 = arith.constant 0 : i32
    %c0_i32_1 = arith.constant 0 : i32
    return %c0_i32, %c0_i32_0 : i32, i32
  }
  func.func @transform_4(%arg0: i32) -> (i32, i32) {
    %c0_i32 = arith.constant 0 : i32
    %c0_i32_0 = arith.constant 0 : i32
    %c0_i32_1 = arith.constant 0 : i32
    return %c0_i32, %c0_i32_0 : i32, i32
  }
  func.func @transform_5(%arg0: i32) -> (i32, i32) {
    %c0_i32 = arith.constant 0 : i32
    %c0_i32_0 = arith.constant 0 : i32
    %c0_i32_1 = arith.constant 0 : i32
    return %c0_i32, %c0_i32_0 : i32, i32
  }
  func.func @transform_6(%arg0: i32) -> (i32, i32) {
    %c0_i32 = arith.constant 0 : i32
    %c0_i32_0 = arith.constant 0 : i32
    %c0_i32_1 = arith.constant 0 : i32
    return %c0_i32, %c0_i32_0 : i32, i32
  }
  func.func @transform_7(%arg0: i32) -> (i32, i32) {
    %c0_i32 = arith.constant 0 : i32
    %c0_i32_0 = arith.constant 0 : i32
    %c0_i32_1 = arith.constant 0 : i32
    return %c0_i32, %c0_i32_0 : i32, i32
  }
  func.func @transform_8(%arg0: i32) -> (i32, i32) {
    %c0_i32 = arith.constant 0 : i32
    %c0_i32_0 = arith.constant 0 : i32
    %c0_i32_1 = arith.constant 0 : i32
    return %c0_i32, %c0_i32_0 : i32, i32
  }
  func.func @transform_9(%arg0: i32) -> (i32, i32) {
    %c0_i32 = arith.constant 0 : i32
    %c0_i32_0 = arith.constant 0 : i32
    %c0_i32_1 = arith.constant 0 : i32
    return %c0_i32, %c0_i32_0 : i32, i32
  }
  func.func @transform_10(%arg0: i32) -> (i32, i32) {
    %c0_i32 = arith.constant 0 : i32
    %c0_i32_0 = arith.constant 0 : i32
    %c0_i32_1 = arith.constant 0 : i32
    return %c0_i32, %c0_i32_0 : i32, i32
  }
  func.func @transform_11(%arg0: i32) -> (i32, i32) {
    %c0_i32 = arith.constant 0 : i32
    %c0_i32_0 = arith.constant 0 : i32
    %c0_i32_1 = arith.constant 0 : i32
    return %c0_i32, %c0_i32_0 : i32, i32
  }
  func.func @transform_12(%arg0: i32) -> (i32, i32) {
    %c0_i32 = arith.constant 0 : i32
    %c0_i32_0 = arith.constant 0 : i32
    %c0_i32_1 = arith.constant 0 : i32
    return %c0_i32, %c0_i32_0 : i32, i32
  }
  func.func @transform_13(%arg0: i32) -> (i32, i32) {
    %c0_i32 = arith.constant 0 : i32
    %c0_i32_0 = arith.constant 0 : i32
    %c0_i32_1 = arith.constant 0 : i32
    return %c0_i32, %c0_i32_0 : i32, i32
  }
  func.func @transform_14(%arg0: i32) -> (i32, i32) {
    %c0_i32 = arith.constant 0 : i32
    %c0_i32_0 = arith.constant 0 : i32
    %c0_i32_1 = arith.constant 0 : i32
    return %c0_i32, %c0_i32_0 : i32, i32
  }
  func.func @transform_15(%arg0: i32) -> (i32, i32) {
    %c0_i32 = arith.constant 0 : i32
    %c0_i32_0 = arith.constant 0 : i32
    %c0_i32_1 = arith.constant 0 : i32
    return %c0_i32, %c0_i32_0 : i32, i32
  }
  func.func @transform_16(%arg0: i32) -> (i32, i32) {
    %c0_i32 = arith.constant 0 : i32
    %c0_i32_0 = arith.constant 0 : i32
    %c0_i32_1 = arith.constant 0 : i32
    return %c0_i32, %c0_i32_0 : i32, i32
  }
  func.func @transform_17(%arg0: i32) -> (i32, i32) {
    %c0_i32 = arith.constant 0 : i32
    %c0_i32_0 = arith.constant 0 : i32
    %c0_i32_1 = arith.constant 0 : i32
    return %c0_i32, %c0_i32_0 : i32, i32
  }
  func.func @transform_18(%arg0: i32) -> (i32, i32, i32) {
    %c0_i32 = arith.constant 0 : i32
    %c0_i32_0 = arith.constant 0 : i32
    %c0_i32_1 = arith.constant 0 : i32
    return %arg0, %c0_i32, %c0_i32_0 : i32, i32, i32
  }
}

</mosaic_0001>

<llo_original>
// kernel: tpu_custom_call.1
$region0: #{tpu_custom_call.1}
  #allocation0 [shape = 'u32[]', space=smem, size = 0x4, offset = 0x4, fixed_abs, tag = 'smem constant byte address 0x4 - core index']
  #allocation1 [shape = 'u32[144,128]{1,0:T(1,128)}', space=vmem, size = 0x12000, scoped, tag = 'internal scratch']
  %s0 = inlined_call_operand.hbm [shape: f32[4,8], index: 0, kind: input, shape index: {}]
  %s1 = inlined_call_operand.hbm [shape: f32[2,8,16,128], index: 1, kind: input, shape index: {}]
  %s2 = inlined_call_operand.hbm [shape: f32[16,128], index: 2, kind: input, shape index: {}]
  %s3 = inlined_call_operand.hbm [shape: f32[128,512], index: 3, kind: input, shape index: {}]
  %s4 = inlined_call_operand.hbm [shape: f32[9,128], index: 4, kind: input, shape index: {}]
  %s5 = inlined_call_operand.vmem [shape: f32[9,512], index: 5, kind: input, shape index: {}]
  %s6 = inlined_call_operand.hbm [shape: f32[8,144], index: 6, kind: input, shape index: {}]
  %s7 = inlined_call_operand.vmem [shape: f32[8,1], index: 7, kind: input, shape index: {}]
  %s8 = inlined_call_operand.vmem [shape: f32[8,72], index: 8, kind: input, shape index: {}]
  %s9 = inlined_call_operand.vmem [shape: f32[8,1], index: 9, kind: input, shape index: {}]
  %s10 = inlined_call_operand.vmem [shape: f32[8,72], index: 10, kind: input, shape index: {}]
  %s11 = inlined_call_operand.vmem [shape: f32[8,1], index: 11, kind: input, shape index: {}]
  %s12 = inlined_call_operand.vmem [shape: f32[8,72], index: 12, kind: input, shape index: {}]
  %s13 = inlined_call_operand.vmem [shape: f32[8,1], index: 13, kind: input, shape index: {}]
  %s14 = inlined_call_operand.vmem [shape: f32[8,72], index: 14, kind: input, shape index: {}]
  %s15 = inlined_call_operand.vmem [shape: f32[8,1], index: 15, kind: input, shape index: {}]
  %s16 = inlined_call_operand.vmem [shape: f32[8,72], index: 16, kind: input, shape index: {}]
  %s17 = inlined_call_operand.vmem [shape: f32[8,1], index: 17, kind: input, shape index: {}]
  %s18 = inlined_call_operand.vmem [shape: f32[4,3,256], index: 18, kind: output, shape index: {}]
  %s19 = sld [smem:[#allocation0]]
  $region129: #{tpu_custom_call.1} parent=0
    _
  %s21 = ssub.s32 1, %s19
  %s22 = scalar_select 0, %s21, %s19
  $region1: #{tpu_custom_call.1} parent=0
    #allocation2 [shape = 'u8[2048]{0}', space=smem, size = 0x800, scoped, tag = 'input window, operand 0, single buffered']
    #allocation3 [shape = 's32[2]{0}', space=sflag, size = 0x8, scoped, tag = 'scoped memory for tpu_custom_call.1']
    #allocation4 [shape = 's32[2]{0}', space=sflag, size = 0x8, scoped, tag = 'scoped memory for tpu_custom_call.1']
    #allocation5 [shape = 'u8[131072]{0}', space=vmem, size = 0x20000, scoped, tag = 'input window, operand 1, single buffered']
    #allocation6 [shape = 'u8[8192]{0}', space=vmem, size = 0x2000, scoped, tag = 'input window, operand 2, single buffered']
    #allocation7 [shape = 's32[1]{0}', space=sflag, size = 0x4, scoped, tag = 'scoped memory for tpu_custom_call.1']
    #allocation8 [shape = 'u8[262144]{0}', space=vmem, size = 0x40000, scoped, tag = 'input window, operand 3, single buffered']
    #allocation9 [shape = 'u8[8192]{0}', space=vmem, size = 0x2000, scoped, tag = 'input window, operand 4, single buffered']
    #allocation10 [shape = 's32[1]{0}', space=sflag, size = 0x4, scoped, tag = 'scoped memory for tpu_custom_call.1']
    #allocation11 [shape = 'u8[8192]{0}', space=vmem, size = 0x2000, scoped, tag = 'input window, operand 6, single buffered']
    %23 = vsyncpa [#allocation4], 0
    %24 = vsyncpa [#allocation3], 0
    %25 = vsyncpa [#allocation7], 0
    %26 = vsyncpa [#allocation10], 0
    loop: start=0, step=1, limit=4
    $region2: #{tpu_custom_call.1} parent=1 // loop_pre_header
      _
    $region3: #{tpu_custom_call.1} parent=1 // loop_header
      %s28 = sphi 0, %s32
      %p29 = scmp.ge.s32.totalorder %s28, 4
      %s36 = sphi 0, %s36
      %s38 = sphi 0, %s36
      %s39 = sphi 0, %s38
      %s53 = sphi 0, %s39
      %s57 = sphi 0, %s57
      %s59 = sphi 0, %s57
      %s60 = sphi 0, %s59
      %s74 = sphi 0, %s60
      %s78 = sphi 0, %s78
      %s80 = sphi 0, %s78
      %s81 = sphi 0, %s80
      %s95 = sphi 0, %s81
      %s99 = sphi 0, %s99
      %s101 = sphi 0, %s99
      %s102 = sphi 0, %s101
      %s116 = sphi 0, %s102
      %s120 = sphi 0, %s120
      %s122 = sphi 0, %s120
      %s123 = sphi 0, %s122
      %s137 = sphi 0, %s123
      %s141 = sphi 0, %s141
      %s143 = sphi 0, %s141
      %s144 = sphi 0, %s143
      %s158 = sphi 0, %s144
      %s162 = sphi 0, %s162
      %s164 = sphi 0, %s162
      %s165 = sphi 0, %s164
      %s179 = sphi 0, %s165
      %s183 = sphi 0, %s183
      %s185 = sphi 0, %s183
      %s186 = sphi 0, %s185
      %s200 = sphi 0, %s186
      %s204 = sphi 0, %s204
      %s206 = sphi 0, %s204
      %s207 = sphi 0, %s206
      %s221 = sphi 0, %s207
      %s225 = sphi 0, %s225
      %s227 = sphi 0, %s225
      %s228 = sphi 0, %s227
      %s242 = sphi 0, %s228
      %s246 = sphi 0, %s246
      %s248 = sphi 0, %s246
      %s249 = sphi 0, %s248
      %s263 = sphi 0, %s249
      %s267 = sphi 0, %s267
      %s269 = sphi 0, %s267
      %s270 = sphi 0, %s269
      %s284 = sphi 0, %s270
      %s288 = sphi 0, %s288
      %s290 = sphi 0, %s288
      %s291 = sphi 0, %s290
      %s305 = sphi 0, %s291
      %s309 = sphi 0, %s309
      %s311 = sphi 0, %s309
      %s312 = sphi 0, %s311
      %s326 = sphi 0, %s312
      %s330 = sphi 0, %s330
      %s332 = sphi 0, %s330
      %s333 = sphi 0, %s332
      %s347 = sphi 0, %s333
      %s351 = sphi 0, %s351
      %s353 = sphi 0, %s351
      %s354 = sphi 0, %s353
      %s368 = sphi 0, %s354
      %s372 = sphi 0, %s372
      %s374 = sphi 0, %s372
      %s375 = sphi 0, %s374
      %s389 = sphi 0, %s375
      %s393 = sphi 0, %s393
      %s395 = sphi 0, %s393
      %s396 = sphi 0, %s395
      %s410 = sphi 0, %s396
      %s416 = sphi 0, %s418
      %s419 = sphi 0, %s416
      %s420 = sphi 0, %s419
      %s436 = sphi 0, %s420
    $region4: #{tpu_custom_call.1} parent=1 // loop_header_branch
      %31 = sbr.rel (%p29) target = $region8
    $region5: #{tpu_custom_call.1} parent=1 // loop_body
      %s33 = ssub.s32 %s28, 1
      %s34 = ssub.s32 %s28, 2
      %s35 = sadd.s32 %s28, 1
      %s37 = sadd.s32 %s36, 1
      %p40 = scmp.eq.s32.totalorder %s28, 1
      %p41 = scmp.ne.s32.totalorder %s36, %s38
      %p42 = scmp.eq.s32.totalorder %s28, 0
      %p43 = por %p41, %p42
      %p44 = scmp.ne.s32.totalorder %s36, %s38
      %p45 = scmp.eq.s32.totalorder %s33, 1
      %p46 = por %p44, %p45
      %p47 = scmp.ne.s32.totalorder %s38, %s39
      %p48 = scmp.eq.s32.totalorder %s33, 0
      %p49 = por %p47, %p48
      %p50 = scmp.ne.s32.totalorder %s38, %s39
      %p51 = scmp.eq.s32.totalorder %s34, 1
      %p52 = por %p50, %p51
      %p54 = scmp.ne.s32.totalorder %s39, %s53
      %p55 = scmp.eq.s32.totalorder %s34, 0
      %p56 = por %p54, %p55
      %s58 = sadd.s32 %s57, 1
      %p61 = scmp.eq.s32.totalorder %s28, 1
      %p62 = scmp.ne.s32.totalorder %s57, %s59
      %p63 = scmp.eq.s32.totalorder %s28, 0
      %p64 = por %p62, %p63
      %p65 = scmp.ne.s32.totalorder %s57, %s59
      %p66 = scmp.eq.s32.totalorder %s33, 1
      %p67 = por %p65, %p66
      %p68 = scmp.ne.s32.totalorder %s59, %s60
      %p69 = scmp.eq.s32.totalorder %s33, 0
      %p70 = por %p68, %p69
      %p71 = scmp.ne.s32.totalorder %s59, %s60
      %p72 = scmp.eq.s32.totalorder %s34, 1
      %p73 = por %p71, %p72
      %p75 = scmp.ne.s32.totalorder %s60, %s74
      %p76 = scmp.eq.s32.totalorder %s34, 0
      %p77 = por %p75, %p76
      %s79 = sadd.s32 %s78, 1
      %p82 = scmp.eq.s32.totalorder %s28, 1
      %p83 = scmp.ne.s32.totalorder %s78, %s80
      %p84 = scmp.eq.s32.totalorder %s28, 0
      %p85 = por %p83, %p84
      %p86 = scmp.ne.s32.totalorder %s78, %s80
      %p87 = scmp.eq.s32.totalorder %s33, 1
      %p88 = por %p86, %p87
      %p89 = scmp.ne.s32.totalorder %s80, %s81
      %p90 = scmp.eq.s32.totalorder %s33, 0
      %p91 = por %p89, %p90
      %p92 = scmp.ne.s32.totalorder %s80, %s81
      %p93 = scmp.eq.s32.totalorder %s34, 1
      %p94 = por %p92, %p93
      %p96 = scmp.ne.s32.totalorder %s81, %s95
      %p97 = scmp.eq.s32.totalorder %s34, 0
      %p98 = por %p96, %p97
      %s100 = sadd.s32 %s99, 1
      %p103 = scmp.eq.s32.totalorder %s28, 1
      %p104 = scmp.ne.s32.totalorder %s99, %s101
      %p105 = scmp.eq.s32.totalorder %s28, 0
      %p106 = por %p104, %p105
      %p107 = scmp.ne.s32.totalorder %s99, %s101
      %p108 = scmp.eq.s32.totalorder %s33, 1
      %p109 = por %p107, %p108
      %p110 = scmp.ne.s32.totalorder %s101, %s102
      %p111 = scmp.eq.s32.totalorder %s33, 0
      %p112 = por %p110, %p111
      %p113 = scmp.ne.s32.totalorder %s101, %s102
      %p114 = scmp.eq.s32.totalorder %s34, 1
      %p115 = por %p113, %p114
      %p117 = scmp.ne.s32.totalorder %s102, %s116
      %p118 = scmp.eq.s32.totalorder %s34, 0
      %p119 = por %p117, %p118
      %s121 = sadd.s32 %s120, 1
      %p124 = scmp.eq.s32.totalorder %s28, 1
      %p125 = scmp.ne.s32.totalorder %s120, %s122
      %p126 = scmp.eq.s32.totalorder %s28, 0
      %p127 = por %p125, %p126
      %p128 = scmp.ne.s32.totalorder %s120, %s122
      %p129 = scmp.eq.s32.totalorder %s33, 1
      %p130 = por %p128, %p129
      %p131 = scmp.ne.s32.totalorder %s122, %s123
      %p132 = scmp.eq.s32.totalorder %s33, 0
      %p133 = por %p131, %p132
      %p134 = scmp.ne.s32.totalorder %s122, %s123
      %p135 = scmp.eq.s32.totalorder %s34, 1
      %p136 = por %p134, %p135
      %p138 = scmp.ne.s32.totalorder %s123, %s137
      %p139 = scmp.eq.s32.totalorder %s34, 0
      %p140 = por %p138, %p139
      %s142 = sadd.s32 %s141, 1
      %p145 = scmp.eq.s32.totalorder %s28, 1
      %p146 = scmp.ne.s32.totalorder %s141, %s143
      %p147 = scmp.eq.s32.totalorder %s28, 0
      %p148 = por %p146, %p147
      %p149 = scmp.ne.s32.totalorder %s141, %s143
      %p150 = scmp.eq.s32.totalorder %s33, 1
      %p151 = por %p149, %p150
      %p152 = scmp.ne.s32.totalorder %s143, %s144
      %p153 = scmp.eq.s32.totalorder %s33, 0
      %p154 = por %p152, %p153
      %p155 = scmp.ne.s32.totalorder %s143, %s144
      %p156 = scmp.eq.s32.totalorder %s34, 1
      %p157 = por %p155, %p156
      %p159 = scmp.ne.s32.totalorder %s144, %s158
      %p160 = scmp.eq.s32.totalorder %s34, 0
      %p161 = por %p159, %p160
      %s163 = sadd.s32 %s162, 1
      %p166 = scmp.eq.s32.totalorder %s28, 1
      %p167 = scmp.ne.s32.totalorder %s162, %s164
      %p168 = scmp.eq.s32.totalorder %s28, 0
      %p169 = por %p167, %p168
      %p170 = scmp.ne.s32.totalorder %s162, %s164
      %p171 = scmp.eq.s32.totalorder %s33, 1
      %p172 = por %p170, %p171
      %p173 = scmp.ne.s32.totalorder %s164, %s165
      %p174 = scmp.eq.s32.totalorder %s33, 0
      %p175 = por %p173, %p174
      %p176 = scmp.ne.s32.totalorder %s164, %s165
      %p177 = scmp.eq.s32.totalorder %s34, 1
      %p178 = por %p176, %p177
      %p180 = scmp.ne.s32.totalorder %s165, %s179
      %p181 = scmp.eq.s32.totalorder %s34, 0
      %p182 = por %p180, %p181
      %s184 = sadd.s32 %s183, 1
      %p187 = scmp.eq.s32.totalorder %s28, 1
      %p188 = scmp.ne.s32.totalorder %s183, %s185
      %p189 = scmp.eq.s32.totalorder %s28, 0
      %p190 = por %p188, %p189
      %p191 = scmp.ne.s32.totalorder %s183, %s185
      %p192 = scmp.eq.s32.totalorder %s33, 1
      %p193 = por %p191, %p192
      %p194 = scmp.ne.s32.totalorder %s185, %s186
      %p195 = scmp.eq.s32.totalorder %s33, 0
      %p196 = por %p194, %p195
      %p197 = scmp.ne.s32.totalorder %s185, %s186
      %p198 = scmp.eq.s32.totalorder %s34, 1
      %p199 = por %p197, %p198
      %p201 = scmp.ne.s32.totalorder %s186, %s200
      %p202 = scmp.eq.s32.totalorder %s34, 0
      %p203 = por %p201, %p202
      %s205 = sadd.s32 %s204, 1
      %p208 = scmp.eq.s32.totalorder %s28, 1
      %p209 = scmp.ne.s32.totalorder %s204, %s206
      %p210 = scmp.eq.s32.totalorder %s28, 0
      %p211 = por %p209, %p210
      %p212 = scmp.ne.s32.totalorder %s204, %s206
      %p213 = scmp.eq.s32.totalorder %s33, 1
      %p214 = por %p212, %p213
      %p215 = scmp.ne.s32.totalorder %s206, %s207
      %p216 = scmp.eq.s32.totalorder %s33, 0
      %p217 = por %p215, %p216
      %p218 = scmp.ne.s32.totalorder %s206, %s207
      %p219 = scmp.eq.s32.totalorder %s34, 1
      %p220 = por %p218, %p219
      %p222 = scmp.ne.s32.totalorder %s207, %s221
      %p223 = scmp.eq.s32.totalorder %s34, 0
      %p224 = por %p222, %p223
      %s226 = sadd.s32 %s225, 1
      %p229 = scmp.eq.s32.totalorder %s28, 1
      %p230 = scmp.ne.s32.totalorder %s225, %s227
      %p231 = scmp.eq.s32.totalorder %s28, 0
      %p232 = por %p230, %p231
      %p233 = scmp.ne.s32.totalorder %s225, %s227
      %p234 = scmp.eq.s32.totalorder %s33, 1
      %p235 = por %p233, %p234
      %p236 = scmp.ne.s32.totalorder %s227, %s228
      %p237 = scmp.eq.s32.totalorder %s33, 0
      %p238 = por %p236, %p237
      %p239 = scmp.ne.s32.totalorder %s227, %s228
      %p240 = scmp.eq.s32.totalorder %s34, 1
      %p241 = por %p239, %p240
      %p243 = scmp.ne.s32.totalorder %s228, %s242
      %p244 = scmp.eq.s32.totalorder %s34, 0
      %p245 = por %p243, %p244
      %s247 = sadd.s32 %s246, 1
      %p250 = scmp.eq.s32.totalorder %s28, 1
      %p251 = scmp.ne.s32.totalorder %s246, %s248
      %p252 = scmp.eq.s32.totalorder %s28, 0
      %p253 = por %p251, %p252
      %p254 = scmp.ne.s32.totalorder %s246, %s248
      %p255 = scmp.eq.s32.totalorder %s33, 1
      %p256 = por %p254, %p255
      %p257 = scmp.ne.s32.totalorder %s248, %s249
      %p258 = scmp.eq.s32.totalorder %s33, 0
      %p259 = por %p257, %p258
      %p260 = scmp.ne.s32.totalorder %s248, %s249
      %p261 = scmp.eq.s32.totalorder %s34, 1
      %p262 = por %p260, %p261
      %p264 = scmp.ne.s32.totalorder %s249, %s263
      %p265 = scmp.eq.s32.totalorder %s34, 0
      %p266 = por %p264, %p265
      %s268 = sadd.s32 %s267, 1
      %p271 = scmp.eq.s32.totalorder %s28, 1
      %p272 = scmp.ne.s32.totalorder %s267, %s269
      %p273 = scmp.eq.s32.totalorder %s28, 0
      %p274 = por %p272, %p273
      %p275 = scmp.ne.s32.totalorder %s267, %s269
      %p276 = scmp.eq.s32.totalorder %s33, 1
      %p277 = por %p275, %p276
      %p278 = scmp.ne.s32.totalorder %s269, %s270
      %p279 = scmp.eq.s32.totalorder %s33, 0
      %p280 = por %p278, %p279
      %p281 = scmp.ne.s32.totalorder %s269, %s270
      %p282 = scmp.eq.s32.totalorder %s34, 1
      %p283 = por %p281, %p282
      %p285 = scmp.ne.s32.totalorder %s270, %s284
      %p286 = scmp.eq.s32.totalorder %s34, 0
      %p287 = por %p285, %p286
      %s289 = sadd.s32 %s288, 1
      %p292 = scmp.eq.s32.totalorder %s28, 1
      %p293 = scmp.ne.s32.totalorder %s288, %s290
      %p294 = scmp.eq.s32.totalorder %s28, 0
      %p295 = por %p293, %p294
      %p296 = scmp.ne.s32.totalorder %s288, %s290
      %p297 = scmp.eq.s32.totalorder %s33, 1
      %p298 = por %p296, %p297
      %p299 = scmp.ne.s32.totalorder %s290, %s291
      %p300 = scmp.eq.s32.totalorder %s33, 0
      %p301 = por %p299, %p300
      %p302 = scmp.ne.s32.totalorder %s290, %s291
      %p303 = scmp.eq.s32.totalorder %s34, 1
      %p304 = por %p302, %p303
      %p306 = scmp.ne.s32.totalorder %s291, %s305
      %p307 = scmp.eq.s32.totalorder %s34, 0
      %p308 = por %p306, %p307
      %s310 = sadd.s32 %s309, 1
      %p313 = scmp.eq.s32.totalorder %s28, 1
      %p314 = scmp.ne.s32.totalorder %s309, %s311
      %p315 = scmp.eq.s32.totalorder %s28, 0
      %p316 = por %p314, %p315
      %p317 = scmp.ne.s32.totalorder %s309, %s311
      %p318 = scmp.eq.s32.totalorder %s33, 1
      %p319 = por %p317, %p318
      %p320 = scmp.ne.s32.totalorder %s311, %s312
      %p321 = scmp.eq.s32.totalorder %s33, 0
      %p322 = por %p320, %p321
      %p323 = scmp.ne.s32.totalorder %s311, %s312
      %p324 = scmp.eq.s32.totalorder %s34, 1
      %p325 = por %p323, %p324
      %p327 = scmp.ne.s32.totalorder %s312, %s326
      %p328 = scmp.eq.s32.totalorder %s34, 0
      %p329 = por %p327, %p328
      %s331 = sadd.s32 %s330, 1
      %p334 = scmp.eq.s32.totalorder %s28, 1
      %p335 = scmp.ne.s32.totalorder %s330, %s332
      %p336 = scmp.eq.s32.totalorder %s28, 0
      %p337 = por %p335, %p336
      %p338 = scmp.ne.s32.totalorder %s330, %s332
      %p339 = scmp.eq.s32.totalorder %s33, 1
      %p340 = por %p338, %p339
      %p341 = scmp.ne.s32.totalorder %s332, %s333
      %p342 = scmp.eq.s32.totalorder %s33, 0
      %p343 = por %p341, %p342
      %p344 = scmp.ne.s32.totalorder %s332, %s333
      %p345 = scmp.eq.s32.totalorder %s34, 1
      %p346 = por %p344, %p345
      %p348 = scmp.ne.s32.totalorder %s333, %s347
      %p349 = scmp.eq.s32.totalorder %s34, 0
      %p350 = por %p348, %p349
      %s352 = sadd.s32 %s351, 1
      %p355 = scmp.eq.s32.totalorder %s28, 1
      %p356 = scmp.ne.s32.totalorder %s351, %s353
      %p357 = scmp.eq.s32.totalorder %s28, 0
      %p358 = por %p356, %p357
      %p359 = scmp.ne.s32.totalorder %s351, %s353
      %p360 = scmp.eq.s32.totalorder %s33, 1
      %p361 = por %p359, %p360
      %p362 = scmp.ne.s32.totalorder %s353, %s354
      %p363 = scmp.eq.s32.totalorder %s33, 0
      %p364 = por %p362, %p363
      %p365 = scmp.ne.s32.totalorder %s353, %s354
      %p366 = scmp.eq.s32.totalorder %s34, 1
      %p367 = por %p365, %p366
      %p369 = scmp.ne.s32.totalorder %s354, %s368
      %p370 = scmp.eq.s32.totalorder %s34, 0
      %p371 = por %p369, %p370
      %s373 = sadd.s32 %s372, 1
      %p376 = scmp.eq.s32.totalorder %s28, 1
      %p377 = scmp.ne.s32.totalorder %s372, %s374
      %p378 = scmp.eq.s32.totalorder %s28, 0
      %p379 = por %p377, %p378
      %p380 = scmp.ne.s32.totalorder %s372, %s374
      %p381 = scmp.eq.s32.totalorder %s33, 1
      %p382 = por %p380, %p381
      %p383 = scmp.ne.s32.totalorder %s374, %s375
      %p384 = scmp.eq.s32.totalorder %s33, 0
      %p385 = por %p383, %p384
      %p386 = scmp.ne.s32.totalorder %s374, %s375
      %p387 = scmp.eq.s32.totalorder %s34, 1
      %p388 = por %p386, %p387
      %p390 = scmp.ne.s32.totalorder %s375, %s389
      %p391 = scmp.eq.s32.totalorder %s34, 0
      %p392 = por %p390, %p391
      %s394 = sadd.s32 %s393, 1
      %p397 = scmp.eq.s32.totalorder %s28, 1
      %p398 = scmp.ne.s32.totalorder %s393, %s395
      %p399 = scmp.eq.s32.totalorder %s28, 0
      %p400 = por %p398, %p399
      %p401 = scmp.ne.s32.totalorder %s393, %s395
      %p402 = scmp.eq.s32.totalorder %s33, 1
      %p403 = por %p401, %p402
      %p404 = scmp.ne.s32.totalorder %s395, %s396
      %p405 = scmp.eq.s32.totalorder %s33, 0
      %p406 = por %p404, %p405
      %p407 = scmp.ne.s32.totalorder %s395, %s396
      %p408 = scmp.eq.s32.totalorder %s34, 1
      %p409 = por %p407, %p408
      %p411 = scmp.ne.s32.totalorder %s396, %s410
      %p412 = scmp.eq.s32.totalorder %s34, 0
      %p413 = por %p411, %p412
      %s414 = ssub.s32 %s28, %s35
      %p415 = scmp.eq.s32.totalorder %s414, 0
      %s417 = sadd.s32 %s416, 1
      %s418 = scalar_select %p415, %s416, %s417
      %p421 = pneg %p415
      %p422 = scmp.eq.s32.totalorder %s28, 1
      %p423 = por %p421, %p422
      %p424 = scmp.ne.s32.totalorder %s416, %s419
      %p425 = scmp.eq.s32.totalorder %s28, 0
      %p426 = por %p424, %p425
      %p427 = scmp.ne.s32.totalorder %s416, %s419
      %p428 = scmp.eq.s32.totalorder %s33, 1
      %p429 = por %p427, %p428
      %p430 = scmp.ne.s32.totalorder %s419, %s420
      %p431 = scmp.eq.s32.totalorder %s33, 0
      %p432 = por %p430, %p431
      %p433 = scmp.ne.s32.totalorder %s419, %s420
      %p434 = scmp.eq.s32.totalorder %s34, 1
      %p435 = por %p433, %p434
      %p437 = scmp.ne.s32.totalorder %s420, %s436
      %p438 = scmp.eq.s32.totalorder %s34, 0
      %p439 = por %p437, %p438
      %p440 = scmp.le.s32.totalorder 1, %s28
      %p441 = scmp.lt.s32.totalorder %s28, 3
      %p442 = pnand %p440, %p441
      %p443 = pneg %p442
      // Predicated region
      $region9: #{tpu_custom_call.1} parent=5 // pred_check
        _
      $region10: #{tpu_custom_call.1} parent=5 // pred_check_branch
        %445 = sbr.rel (%p442) target = $region12
      $region11: #{tpu_custom_call.1} parent=5 // pred_region
        %s446 = ssub.s32 %s28, 1
        // Predicated region
        $region13: #{tpu_custom_call.1} parent=11 // pred_check
          %p447 = pneg %p49
        $region14: #{tpu_custom_call.1} parent=11 // pred_check_branch
          %449 = sbr.rel (%p447) target = $region16
        $region15: #{tpu_custom_call.1} parent=11 // pred_region
          %s451 = ssub.s32 64, 64
          %452 = vsyncadd [#allocation4], %s451
          %455 = dma.hbm_to_smem %s0, 64, [#allocation2], [#allocation4]
        $region16: #{tpu_custom_call.1} parent=11 // pred_fallthru
          _
        // Predicated region
        $region17: #{tpu_custom_call.1} parent=11 // pred_check
          %p456 = pneg %p70
        $region18: #{tpu_custom_call.1} parent=11 // pred_check_branch
          %458 = sbr.rel (%p456) target = $region20
        $region19: #{tpu_custom_call.1} parent=11 // pred_region
          %s460 = ssub.s32 4096, 4096
          %461 = vsyncadd [#allocation3], %s460
          %s462 = sshll.u32 [#allocation5], 4
          %s463 = int_to_ptr.vmem [resolvable:$true] %s462
          %468 = dma.hbm_to_vmem [thread:$0]  %s1, 4096, %s463, [#allocation3], 128, 128, 8
        $region20: #{tpu_custom_call.1} parent=11 // pred_fallthru
          _
        // Predicated region
        $region21: #{tpu_custom_call.1} parent=11 // pred_check
          %p469 = pneg %p91
        $region22: #{tpu_custom_call.1} parent=11 // pred_check_branch
          %471 = sbr.rel (%p469) target = $region24
        $region23: #{tpu_custom_call.1} parent=11 // pred_region
          %s473 = ssub.s32 256, 256
          %474 = vsyncadd [#allocation7], %s473
          %s475 = sshll.u32 [#allocation6], 4
          %s476 = int_to_ptr.vmem [resolvable:$true] %s475
          %481 = dma.hbm_to_vmem [thread:$0]  %s2, 256, %s476, [#allocation7], 128, 128, 8
        $region24: #{tpu_custom_call.1} parent=11 // pred_fallthru
          _
        // Predicated region
        $region25: #{tpu_custom_call.1} parent=11 // pred_check
          %p482 = pneg %p112
        $region26: #{tpu_custom_call.1} parent=11 // pred_check_branch
          %484 = sbr.rel (%p482) target = $region28
        $region27: #{tpu_custom_call.1} parent=11 // pred_region
          %s486 = ssub.s32 8192, 8192
          %487 = vsyncadd [#allocation7], %s486
          %s488 = sshll.u32 [#allocation8], 4
          %s489 = int_to_ptr.vmem [resolvable:$true] %s488
          %494 = dma.hbm_to_vmem [thread:$0]  %s3, 8192, %s489, [#allocation7], 512, 512, 32
        $region28: #{tpu_custom_call.1} parent=11 // pred_fallthru
          _
        // Predicated region
        $region29: #{tpu_custom_call.1} parent=11 // pred_check
          %p495 = pneg %p133
        $region30: #{tpu_custom_call.1} parent=11 // pred_check_branch
          %497 = sbr.rel (%p495) target = $region32
        $region31: #{tpu_custom_call.1} parent=11 // pred_region
          %s499 = ssub.s32 256, 256
          %500 = vsyncadd [#allocation10], %s499
          %s501 = sshll.u32 [#allocation9], 4
          %s502 = int_to_ptr.vmem [resolvable:$true] %s501
          %507 = dma.hbm_to_vmem [thread:$0]  %s4, 256, %s502, [#allocation10], 128, 128, 8
        $region32: #{tpu_custom_call.1} parent=11 // pred_fallthru
          _
        // Predicated region
        $region33: #{tpu_custom_call.1} parent=11 // pred_check
          %p508 = pneg %p154
        $region34: #{tpu_custom_call.1} parent=11 // pred_check_branch
          %510 = sbr.rel (%p508) target = $region36
        $region35: #{tpu_custom_call.1} parent=11 // pred_region
          _
        $region36: #{tpu_custom_call.1} parent=11 // pred_fallthru
          _
        // Predicated region
        $region37: #{tpu_custom_call.1} parent=11 // pred_check
          %p511 = pneg %p175
        $region38: #{tpu_custom_call.1} parent=11 // pred_check_branch
          %513 = sbr.rel (%p511) target = $region40
        $region39: #{tpu_custom_call.1} parent=11 // pred_region
          %s515 = ssub.s32 256, 256
          %516 = vsyncadd [#allocation10], %s515
          %s518 = sshll.u32 [#allocation11], 4
          %s519 = int_to_ptr.vmem [resolvable:$true] %s518
          %521 = dma.hbm_to_vmem [thread:$0]  %s6, 256, %s519, [#allocation10]
        $region40: #{tpu_custom_call.1} parent=11 // pred_fallthru
          _
        // Predicated region
        $region41: #{tpu_custom_call.1} parent=11 // pred_check
          %p522 = pneg %p196
        $region42: #{tpu_custom_call.1} parent=11 // pred_check_branch
          %524 = sbr.rel (%p522) target = $region44
        $region43: #{tpu_custom_call.1} parent=11 // pred_region
          _
        $region44: #{tpu_custom_call.1} parent=11 // pred_fallthru
          _
        // Predicated region
        $region45: #{tpu_custom_call.1} parent=11 // pred_check
          %p525 = pneg %p217
        $region46: #{tpu_custom_call.1} parent=11 // pred_check_branch
          %527 = sbr.rel (%p525) target = $region48
        $region47: #{tpu_custom_call.1} parent=11 // pred_region
          _
        $region48: #{tpu_custom_call.1} parent=11 // pred_fallthru
          _
        // Predicated region
        $region49: #{tpu_custom_call.1} parent=11 // pred_check
          %p528 = pneg %p238
        $region50: #{tpu_custom_call.1} parent=11 // pred_check_branch
          %530 = sbr.rel (%p528) target = $region52
        $region51: #{tpu_custom_call.1} parent=11 // pred_region
          _
        $region52: #{tpu_custom_call.1} parent=11 // pred_fallthru
          _
        // Predicated region
        $region53: #{tpu_custom_call.1} parent=11 // pred_check
          %p531 = pneg %p259
        $region54: #{tpu_custom_call.1} parent=11 // pred_check_branch
          %533 = sbr.rel (%p531) target = $region56
        $region55: #{tpu_custom_call.1} parent=11 // pred_region
          _
        $region56: #{tpu_custom_call.1} parent=11 // pred_fallthru
          _
        // Predicated region
        $region57: #{tpu_custom_call.1} parent=11 // pred_check
          %p534 = pneg %p280
        $region58: #{tpu_custom_call.1} parent=11 // pred_check_branch
          %536 = sbr.rel (%p534) target = $region60
        $region59: #{tpu_custom_call.1} parent=11 // pred_region
          _
        $region60: #{tpu_custom_call.1} parent=11 // pred_fallthru
          _
        // Predicated region
        $region61: #{tpu_custom_call.1} parent=11 // pred_check
          %p537 = pneg %p301
        $region62: #{tpu_custom_call.1} parent=11 // pred_check_branch
          %539 = sbr.rel (%p537) target = $region64
        $region63: #{tpu_custom_call.1} parent=11 // pred_region
          _
        $region64: #{tpu_custom_call.1} parent=11 // pred_fallthru
          _
        // Predicated region
        $region65: #{tpu_custom_call.1} parent=11 // pred_check
          %p540 = pneg %p322
        $region66: #{tpu_custom_call.1} parent=11 // pred_check_branch
          %542 = sbr.rel (%p540) target = $region68
        $region67: #{tpu_custom_call.1} parent=11 // pred_region
          _
        $region68: #{tpu_custom_call.1} parent=11 // pred_fallthru
          _
        // Predicated region
        $region69: #{tpu_custom_call.1} parent=11 // pred_check
          %p543 = pneg %p343
        $region70: #{tpu_custom_call.1} parent=11 // pred_check_branch
          %545 = sbr.rel (%p543) target = $region72
        $region71: #{tpu_custom_call.1} parent=11 // pred_region
          _
        $region72: #{tpu_custom_call.1} parent=11 // pred_fallthru
          _
        // Predicated region
        $region73: #{tpu_custom_call.1} parent=11 // pred_check
          %p546 = pneg %p364
        $region74: #{tpu_custom_call.1} parent=11 // pred_check_branch
          %548 = sbr.rel (%p546) target = $region76
        $region75: #{tpu_custom_call.1} parent=11 // pred_region
          _
        $region76: #{tpu_custom_call.1} parent=11 // pred_fallthru
          _
        // Predicated region
        $region77: #{tpu_custom_call.1} parent=11 // pred_check
          %p549 = pneg %p385
        $region78: #{tpu_custom_call.1} parent=11 // pred_check_branch
          %551 = sbr.rel (%p549) target = $region80
        $region79: #{tpu_custom_call.1} parent=11 // pred_region
          _
        $region80: #{tpu_custom_call.1} parent=11 // pred_fallthru
          _
        // Predicated region
        $region81: #{tpu_custom_call.1} parent=11 // pred_check
          %p552 = pneg %p406
        $region82: #{tpu_custom_call.1} parent=11 // pred_check_branch
          %554 = sbr.rel (%p552) target = $region84
        $region83: #{tpu_custom_call.1} parent=11 // pred_region
          _
        $region84: #{tpu_custom_call.1} parent=11 // pred_fallthru
          _
      $region12: #{tpu_custom_call.1} parent=5 // pred_fallthru
        _
      %p555 = scmp.lt.s32.totalorder %s28, 2
      // Predicated region
      $region85: #{tpu_custom_call.1} parent=5 // pred_check
        %p556 = pneg %p555
      $region86: #{tpu_custom_call.1} parent=5 // pred_check_branch
        %558 = sbr.rel (%p556) target = $region88
      $region87: #{tpu_custom_call.1} parent=5 // pred_region
        _
      $region88: #{tpu_custom_call.1} parent=5 // pred_fallthru
        _
      %p559 = scmp.le.s32.totalorder 1, %s28
      %p560 = scmp.lt.s32.totalorder %s28, 3
      %p561 = pnand %p559, %p560
      %p562 = pneg %p561
      // Predicated region
      $region89: #{tpu_custom_call.1} parent=5 // pred_check
        _
      $region90: #{tpu_custom_call.1} parent=5 // pred_check_branch
        %564 = sbr.rel (%p561) target = $region92
      $region91: #{tpu_custom_call.1} parent=5 // pred_region
        %s565 = ssub.s32 %s28, 1
        // Predicated region
        $region93: #{tpu_custom_call.1} parent=91 // pred_check
          %p566 = pneg %p49
        $region94: #{tpu_custom_call.1} parent=91 // pred_check_branch
          %568 = sbr.rel (%p566) target = $region96
        $region95: #{tpu_custom_call.1} parent=91 // pred_region
          %569 = dma.done [#allocation4], 64
        $region96: #{tpu_custom_call.1} parent=91 // pred_fallthru
          _
        // Predicated region
        $region97: #{tpu_custom_call.1} parent=91 // pred_check
          %p570 = pneg %p70
        $region98: #{tpu_custom_call.1} parent=91 // pred_check_branch
          %572 = sbr.rel (%p570) target = $region100
        $region99: #{tpu_custom_call.1} parent=91 // pred_region
          %573 = dma.done [#allocation3], 4096
        $region100: #{tpu_custom_call.1} parent=91 // pred_fallthru
          _
        // Predicated region
        $region101: #{tpu_custom_call.1} parent=91 // pred_check
          %p574 = pneg %p91
        $region102: #{tpu_custom_call.1} parent=91 // pred_check_branch
          %576 = sbr.rel (%p574) target = $region104
        $region103: #{tpu_custom_call.1} parent=91 // pred_region
          %577 = dma.done [#allocation7], 256
        $region104: #{tpu_custom_call.1} parent=91 // pred_fallthru
          _
        // Predicated region
        $region105: #{tpu_custom_call.1} parent=91 // pred_check
          %p578 = pneg %p112
        $region106: #{tpu_custom_call.1} parent=91 // pred_check_branch
          %580 = sbr.rel (%p578) target = $region108
        $region107: #{tpu_custom_call.1} parent=91 // pred_region
          %581 = dma.done [#allocation7], 8192
        $region108: #{tpu_custom_call.1} parent=91 // pred_fallthru
          _
        // Predicated region
        $region109: #{tpu_custom_call.1} parent=91 // pred_check
          %p582 = pneg %p133
        $region110: #{tpu_custom_call.1} parent=91 // pred_check_branch
          %584 = sbr.rel (%p582) target = $region112
        $region111: #{tpu_custom_call.1} parent=91 // pred_region
          %585 = dma.done [#allocation10], 256
        $region112: #{tpu_custom_call.1} parent=91 // pred_fallthru
          _
        // Predicated region
        $region113: #{tpu_custom_call.1} parent=91 // pred_check
          %p586 = pneg %p175
        $region114: #{tpu_custom_call.1} parent=91 // pred_check_branch
          %588 = sbr.rel (%p586) target = $region116
        $region115: #{tpu_custom_call.1} parent=91 // pred_region
          %589 = dma.done [#allocation10], 256
        $region116: #{tpu_custom_call.1} parent=91 // pred_fallthru
          _
        %590 = sfence
        %p591 = pneg %p49
        %p592 = pneg %p46
        %p593 = pneg %p70
        %p594 = pneg %p67
        %p595 = pneg %p91
        %p596 = pneg %p88
        %p597 = pneg %p112
        %p598 = pneg %p109
        %p599 = pneg %p133
        %p600 = pneg %p130
        %p601 = pneg %p154
        %p602 = pneg %p151
        %p603 = pneg %p175
        %p604 = pneg %p172
        %p605 = pneg %p196
        %p606 = pneg %p193
        %p607 = pneg %p217
        %p608 = pneg %p214
        %p609 = pneg %p238
        %p610 = pneg %p235
        %p611 = pneg %p259
        %p612 = pneg %p256
        %p613 = pneg %p280
        %p614 = pneg %p277
        %p615 = pneg %p301
        %p616 = pneg %p298
        %p617 = pneg %p322
        %p618 = pneg %p319
        %p619 = pneg %p343
        %p620 = pneg %p340
        %p621 = pneg %p364
        %p622 = pneg %p361
        %p623 = pneg %p385
        %p624 = pneg %p382
        %p625 = pneg %p406
        %p626 = pneg %p403
        %p627 = pneg %p432
        %p628 = pneg %p429
        %s629 = smul.u32 2, %s33
        %p630 = scmp.lt.s32.totalorder %s629, 3
        %s631 = scalar_select %p630, %s629, 3
        %s632 = smul.addr %s631, 2
        %s633 = smul.addr %s632, 4
        %s634 = scalar_lea.vmem %s18, %s633
        %s635 = smul.u32 2, %s33
        %p636 = scmp.lt.s32.totalorder %s635, 3
        %s637 = scalar_select %p636, %s635, 3
        %s638 = smul.addr %s637, 2
        %s639 = smul.addr %s638, 4
        %s640 = scalar_lea.vmem %s18, %s639
        %s641 = smul.u32 2, %s33
        %v642 = vld [vmem:[#allocation6] sm:$0xff]
        %v643 = vld [vmem:[#allocation6 + $0x8] sm:$0xff]
        %s644 = smul.u32 %s33, 2
        %s645 = smul.u32 %s644, 128
        %s646 = sld [smem:[#allocation2 + %s645]]
        %v647 = vld [vmem:[#allocation5] sm:$0xff]
        %v648 = vld [vmem:[#allocation5 + $0x8] sm:$0xff]
        %v649 = vstv %s646
        %v650 = vmul.f32 %v649, %v647
        %v651 = vmul.f32 %v649, %v648
        %v652 = vadd.f32 %v642, %v650
        %v653 = vadd.f32 %v643, %v651
        %s654 = sadd.s32 %s645, 1
        %s655 = sld [smem:[#allocation2 + %s654]]
        %s656 = scalar_lea.vmem [#allocation5], 16
        %v657 = vld [vmem:[%s656] sm:$0xff]
        %v658 = vld [vmem:[%s656 + $0x8] sm:$0xff]
        %v659 = vstv %s655
        %v660 = vmul.f32 %v659, %v657
        %v661 = vmul.f32 %v659, %v658
        %v662 = vadd.f32 %v652, %v660
        %v663 = vadd.f32 %v653, %v661
        %s664 = sadd.s32 %s645, 2
        %s665 = sld [smem:[#allocation2 + %s664]]
        %s666 = scalar_lea.vmem [#allocation5], 32
        %v667 = vld [vmem:[%s666] sm:$0xff]
        %v668 = vld [vmem:[%s666 + $0x8] sm:$0xff]
        %v669 = vstv %s665
        %v670 = vmul.f32 %v669, %v667
        %v671 = vmul.f32 %v669, %v668
        %v672 = vadd.f32 %v662, %v670
        %v673 = vadd.f32 %v663, %v671
        %s674 = sadd.s32 %s645, 3
        %s675 = sld [smem:[#allocation2 + %s674]]
        %s676 = scalar_lea.vmem [#allocation5], 48
        %v677 = vld [vmem:[%s676] sm:$0xff]
        %v678 = vld [vmem:[%s676 + $0x8] sm:$0xff]
        %v679 = vstv %s675
        %v680 = vmul.f32 %v679, %v677
        %v681 = vmul.f32 %v679, %v678
        %v682 = vadd.f32 %v672, %v680
        %v683 = vadd.f32 %v673, %v681
        %s684 = sadd.s32 %s645, 4
        %s685 = sld [smem:[#allocation2 + %s684]]
        %s686 = scalar_lea.vmem [#allocation5], 64
        %v687 = vld [vmem:[%s686] sm:$0xff]
        %v688 = vld [vmem:[%s686 + $0x8] sm:$0xff]
        %v689 = vstv %s685
        %v690 = vmul.f32 %v689, %v687
        %v691 = vmul.f32 %v689, %v688
        %v692 = vadd.f32 %v682, %v690
        %v693 = vadd.f32 %v683, %v691
        %s694 = sadd.s32 %s645, 5
        %s695 = sld [smem:[#allocation2 + %s694]]
        %s696 = scalar_lea.vmem [#allocation5], 80
        %v697 = vld [vmem:[%s696] sm:$0xff]
        %v698 = vld [vmem:[%s696 + $0x8] sm:$0xff]
        %v699 = vstv %s695
        %v700 = vmul.f32 %v699, %v697
        %v701 = vmul.f32 %v699, %v698
        %v702 = vadd.f32 %v692, %v700
        %v703 = vadd.f32 %v693, %v701
        %s704 = sadd.s32 %s645, 6
        %s705 = sld [smem:[#allocation2 + %s704]]
        %s706 = scalar_lea.vmem [#allocation5], 96
        %v707 = vld [vmem:[%s706] sm:$0xff]
        %v708 = vld [vmem:[%s706 + $0x8] sm:$0xff]
        %v709 = vstv %s705
        %v710 = vmul.f32 %v709, %v707
        %v711 = vmul.f32 %v709, %v708
        %v712 = vadd.f32 %v702, %v710
        %v713 = vadd.f32 %v703, %v711
        %s714 = sadd.s32 %s645, 7
        %s715 = sld [smem:[#allocation2 + %s714]]
        %s716 = scalar_lea.vmem [#allocation5], 112
        %v717 = vld [vmem:[%s716] sm:$0xff]
        %v718 = vld [vmem:[%s716 + $0x8] sm:$0xff]
        %v719 = vstv %s715
        %v720 = vmul.f32 %v719, %v717
        %v721 = vmul.f32 %v719, %v718
        %v722 = vadd.f32 %v712, %v720
        %v723 = vadd.f32 %v713, %v721
        %s724 = sadd.s32 %s644, 1
        %s725 = smul.u32 %s724, 128
        %s726 = sld [smem:[#allocation2 + %s725]]
        %s727 = scalar_lea.vmem [#allocation5], 128
        %v728 = vld [vmem:[%s727] sm:$0xff]
        %v729 = vld [vmem:[%s727 + $0x8] sm:$0xff]
        %v730 = vstv %s726
        %v731 = vmul.f32 %v730, %v728
        %v732 = vmul.f32 %v730, %v729
        %v733 = vadd.f32 %v722, %v731
        %v734 = vadd.f32 %v723, %v732
        %s735 = sadd.s32 %s725, 1
        %s736 = sld [smem:[#allocation2 + %s735]]
        %s737 = scalar_lea.vmem [#allocation5], 144
        %v738 = vld [vmem:[%s737] sm:$0xff]
        %v739 = vld [vmem:[%s737 + $0x8] sm:$0xff]
        %v740 = vstv %s736
        %v741 = vmul.f32 %v740, %v738
        %v742 = vmul.f32 %v740, %v739
        %v743 = vadd.f32 %v733, %v741
        %v744 = vadd.f32 %v734, %v742
        %s745 = sadd.s32 %s725, 2
        %s746 = sld [smem:[#allocation2 + %s745]]
        %s747 = scalar_lea.vmem [#allocation5], 160
        %v748 = vld [vmem:[%s747] sm:$0xff]
        %v749 = vld [vmem:[%s747 + $0x8] sm:$0xff]
        %v750 = vstv %s746
        %v751 = vmul.f32 %v750, %v748
        %v752 = vmul.f32 %v750, %v749
        %v753 = vadd.f32 %v743, %v751
        %v754 = vadd.f32 %v744, %v752
        %s755 = sadd.s32 %s725, 3
        %s756 = sld [smem:[#allocation2 + %s755]]
        %s757 = scalar_lea.vmem [#allocation5], 176
        %v758 = vld [vmem:[%s757] sm:$0xff]
        %v759 = vld [vmem:[%s757 + $0x8] sm:$0xff]
        %v760 = vstv %s756
        %v761 = vmul.f32 %v760, %v758
        %v762 = vmul.f32 %v760, %v759
        %v763 = vadd.f32 %v753, %v761
        %v764 = vadd.f32 %v754, %v762
        %s765 = sadd.s32 %s725, 4
        %s766 = sld [smem:[#allocation2 + %s765]]
        %s767 = scalar_lea.vmem [#allocation5], 192
        %v768 = vld [vmem:[%s767] sm:$0xff]
        %v769 = vld [vmem:[%s767 + $0x8] sm:$0xff]
        %v770 = vstv %s766
        %v771 = vmul.f32 %v770, %v768
        %v772 = vmul.f32 %v770, %v769
        %v773 = vadd.f32 %v763, %v771
        %v774 = vadd.f32 %v764, %v772
        %s775 = sadd.s32 %s725, 5
        %s776 = sld [smem:[#allocation2 + %s775]]
        %s777 = scalar_lea.vmem [#allocation5], 208
        %v778 = vld [vmem:[%s777] sm:$0xff]
        %v779 = vld [vmem:[%s777 + $0x8] sm:$0xff]
        %v780 = vstv %s776
        %v781 = vmul.f32 %v780, %v778
        %v782 = vmul.f32 %v780, %v779
        %v783 = vadd.f32 %v773, %v781
        %v784 = vadd.f32 %v774, %v782
        %s785 = sadd.s32 %s725, 6
        %s786 = sld [smem:[#allocation2 + %s785]]
        %s787 = scalar_lea.vmem [#allocation5], 224
        %v788 = vld [vmem:[%s787] sm:$0xff]
        %v789 = vld [vmem:[%s787 + $0x8] sm:$0xff]
        %v790 = vstv %s786
        %v791 = vmul.f32 %v790, %v788
        %v792 = vmul.f32 %v790, %v789
        %v793 = vadd.f32 %v783, %v791
        %v794 = vadd.f32 %v784, %v792
        %s795 = sadd.s32 %s725, 7
        %s796 = sld [smem:[#allocation2 + %s795]]
        %s797 = scalar_lea.vmem [#allocation5], 240
        %v798 = vld [vmem:[%s797] sm:$0xff]
        %v799 = vld [vmem:[%s797 + $0x8] sm:$0xff]
        %v800 = vstv %s796
        %v801 = vmul.f32 %v800, %v798
        %v802 = vmul.f32 %v800, %v799
        %v803 = vadd.f32 %v793, %v801
        %v804 = vadd.f32 %v794, %v802
        %v805 = vld [vmem:[#allocation9] sm:$0xff]
        %v806 = vld [vmem:[#allocation9 + $0x8] sm:$0x1]
        %807 = vrot.lane.b32.xlu0 %v803, 9
        %v808 = vpop.permute.xlu0 %807
        %809 = vrot.lane.b32.xlu0 %v804, 9
        %v810 = vpop.permute.xlu0 %809
        %v811 = vlaneseq
        %v812 = vshrl.u32 %v811, 7
        %v813 = vsub.s32 0, %v812
        %v814 = vrot.slane %v805, %v813
        %v815 = vmul.f32 %v808, %v814
        %v816 = vmul.f32 %v810, %v814
        %817 = vrot.lane.b32.xlu0 %v803, 8
        %v818 = vpop.permute.xlu0 %817
        %819 = vrot.lane.b32.xlu0 %v804, 8
        %v820 = vpop.permute.xlu0 %819
        %v821 = vlaneseq
        %v822 = vshrl.u32 %v821, 7
        %v823 = vsub.s32 1, %v822
        %v824 = vrot.slane %v805, %v823
        %v825 = vmul.f32 %v818, %v824
        %v826 = vmul.f32 %v820, %v824
        %827 = vrot.lane.b32.xlu0 %v803, 7
        %v828 = vpop.permute.xlu0 %827
        %829 = vrot.lane.b32.xlu0 %v804, 7
        %v830 = vpop.permute.xlu0 %829
        %v831 = vlaneseq
        %v832 = vshrl.u32 %v831, 7
        %v833 = vsub.s32 2, %v832
        %v834 = vrot.slane %v805, %v833
        %v835 = vmul.f32 %v828, %v834
        %v836 = vmul.f32 %v830, %v834
        %837 = vrot.lane.b32.xlu0 %v803, 1
        %v838 = vpop.permute.xlu0 %837
        %839 = vrot.lane.b32.xlu0 %v804, 1
        %v840 = vpop.permute.xlu0 %839
        %v841 = vlaneseq
        %v842 = vshrl.u32 %v841, 7
        %v843 = vsub.s32 3, %v842
        %v844 = vrot.slane %v805, %v843
        %v845 = vmul.f32 %v838, %v844
        %v846 = vmul.f32 %v840, %v844
        %847 = vrot.lane.b32.xlu0 %v803, 127
        %v848 = vpop.permute.xlu0 %847
        %849 = vrot.lane.b32.xlu0 %v804, 127
        %v850 = vpop.permute.xlu0 %849
        %v851 = vlaneseq
        %v852 = vshrl.u32 %v851, 7
        %v853 = vsub.s32 5, %v852
        %v854 = vrot.slane %v805, %v853
        %v855 = vmul.f32 %v848, %v854
        %v856 = vmul.f32 %v850, %v854
        %857 = vrot.lane.b32.xlu0 %v803, 121
        %v858 = vpop.permute.xlu0 %857
        %859 = vrot.lane.b32.xlu0 %v804, 121
        %v860 = vpop.permute.xlu0 %859
        %v861 = vlaneseq
        %v862 = vshrl.u32 %v861, 7
        %v863 = vsub.s32 6, %v862
        %v864 = vrot.slane %v805, %v863
        %v865 = vmul.f32 %v858, %v864
        %v866 = vmul.f32 %v860, %v864
        %867 = vrot.lane.b32.xlu0 %v803, 120
        %v868 = vpop.permute.xlu0 %867
        %869 = vrot.lane.b32.xlu0 %v804, 120
        %v870 = vpop.permute.xlu0 %869
        %v871 = vlaneseq
        %v872 = vshrl.u32 %v871, 7
        %v873 = vsub.s32 7, %v872
        %v874 = vrot.slane %v805, %v873
        %v875 = vmul.f32 %v868, %v874
        %v876 = vmul.f32 %v870, %v874
        %877 = vrot.lane.b32.xlu0 %v803, 119
        %v878 = vpop.permute.xlu0 %877
        %879 = vrot.lane.b32.xlu0 %v804, 119
        %v880 = vpop.permute.xlu0 %879
        %v881 = vlaneseq
        %v882 = vshrl.u32 %v881, 7
        %v883 = vsub.s32 0, %v882
        %v884 = vrot.slane %v806, %v883
        %v885 = vmul.f32 %v878, %v884
        %v886 = vmul.f32 %v880, %v884
        %v887 = vld [vmem:[#allocation11] sm:$0xff]
        %v888 = vld [vmem:[#allocation11 + $0x8] sm:$0xff]
        %v889 = vld [vmem:[%s7] sm:$0xff]
        %891 = vset.pattern.permute.xlu0 0
        %892 = vperm.xlu0 %891, %v889
        %v893 = vpop.permute.xlu0 %892
        %vm895 = vcmask 130048
        %v897 = vsel %vm895, %v888, 0
        %899 = vmatprep.subr.mxu0 0.0
        %900 = vmatpush1.msra.mxu0 %v815
        %901 = vmatprep.subr.mxu0 0.0
        %902 = vmatpush1.msra.mxu0 %v816
        %903 = vmatprep.subr.mxu0 0.0
        %904 = vmatpush1.msra.mxu0 %v825
        %905 = vmatprep.subr.mxu0 0.0
        %906 = vmatpush1.msra.mxu0 %v826
        %907 = vmatprep.subr.mxu0 0.0
        %908 = vmatpush1.msra.mxu0 %v835
        %909 = vmatprep.subr.mxu0 0.0
        %910 = vmatpush1.msra.mxu0 %v836
        %911 = vmatprep.subr.mxu0 0.0
        %912 = vmatpush1.msra.mxu0 %v845
        %913 = vmatprep.subr.mxu0 0.0
        %914 = vmatpush1.msra.mxu0 %v846
        %915 = vmatprep.subr.mxu0 0.0
        %916 = vmatpush1.msra.mxu0 %v803
        %917 = vmatprep.subr.mxu0 0.0
        %918 = vmatpush1.msra.mxu0 %v804
        %919 = vmatprep.subr.mxu0 0.0
        %920 = vmatpush1.msra.mxu0 %v855
        %921 = vmatprep.subr.mxu0 0.0
        %922 = vmatpush1.msra.mxu0 %v856
        %923 = vmatprep.subr.mxu0 0.0
        %924 = vmatpush1.msra.mxu0 %v865
        %925 = vmatprep.subr.mxu0 0.0
        %926 = vmatpush1.msra.mxu0 %v866
        %927 = vmatprep.subr.mxu0 0.0
        %928 = vmatpush1.msra.mxu0 %v875
        %929 = vmatprep.subr.mxu0 0.0
        %930 = vmatpush1.msra.mxu0 %v876
        %931 = vmatprep.subr.mxu0 0.0
        %932 = vmatpush1.msra.mxu0 %v885
        %933 = vmatprep.subr.mxu0 0.0
        %934 = vmatpush1.msra.mxu0 %v886
        %935 = vmatprep.subr.mxu0 0.0
        %936 = vmatpush1.msra.mxu0 0.0
        %937 = vmatprep.subr.mxu0 0.0
        %938 = vmatpush1.msra.mxu0 0.0
        %939 = vmatprep.subr.mxu0 0.0
        %940 = vmatpush1.msra.mxu0 0.0
        %941 = vmatprep.subr.mxu0 0.0
        %942 = vmatpush1.msra.mxu0 0.0
        %943 = vmatprep.subr.mxu0 0.0
        %944 = vmatpush1.msra.mxu0 0.0
        %945 = vmatprep.subr.mxu0 0.0
        %946 = vmatpush1.msra.mxu0 0.0
        %947 = vmatprep.subr.mxu0 0.0
        %948 = vmatpush1.msra.mxu0 0.0
        %949 = vmatprep.subr.mxu0 0.0
        %950 = vmatpush1.msra.mxu0 0.0
        %951 = vmatprep.subr.mxu0 0.0
        %952 = vmatpush1.msra.mxu0 0.0
        %953 = vmatprep.subr.mxu0 0.0
        %954 = vmatpush1.msra.mxu0 0.0
        %955 = vmatprep.subr.mxu0 0.0
        %956 = vmatpush1.msra.mxu0 0.0
        %957 = vmatprep.subr.mxu0 0.0
        %958 = vmatpush1.msra.mxu0 0.0
        %959 = vmatprep.subr.mxu0 0.0
        %960 = vmatpush1.msra.mxu0 0.0
        %961 = vmatprep.subr.mxu0 0.0
        %962 = vmatpush1.msra.mxu0 0.0
        %963 = vmatprep.mubr.f32.mxu0 %v897
        %964 = vmatmul.mubr.f32.gmra.mrb[0].mxu0 %v887
        %v965 = vpop.f32.mrb[0].mxu0
        %v966 = vadd.f32 %v893, %v965
        %v967 = vpop.f32.mrb[0].mxu0
        %968 = vdwg.mxu0
        %v969 = vmax.f32 %v966, 0.0
        %970 = vrot.lane.b32.xlu0 %v969, 9
        %v971 = vpop.permute.xlu0 %970
        %v972 = vmul.f32 %v971, %v814
        %973 = vrot.lane.b32.xlu0 %v969, 8
        %v974 = vpop.permute.xlu0 %973
        %v975 = vmul.f32 %v974, %v824
        %976 = vrot.lane.b32.xlu0 %v969, 7
        %v977 = vpop.permute.xlu0 %976
        %v978 = vmul.f32 %v977, %v834
        %979 = vrot.lane.b32.xlu0 %v969, 1
        %v980 = vpop.permute.xlu0 %979
        %v981 = vmul.f32 %v980, %v844
        %982 = vrot.lane.b32.xlu0 %v969, 127
        %v983 = vpop.permute.xlu0 %982
        %v984 = vmul.f32 %v983, %v854
        %985 = vrot.lane.b32.xlu0 %v969, 121
        %v986 = vpop.permute.xlu0 %985
        %v987 = vmul.f32 %v986, %v864
        %988 = vrot.lane.b32.xlu0 %v969, 120
        %v989 = vpop.permute.xlu0 %988
        %v990 = vmul.f32 %v989, %v874
        %991 = vrot.lane.b32.xlu0 %v969, 119
        %v992 = vpop.permute.xlu0 %991
        %v993 = vmul.f32 %v992, %v884
        %v994 = vld [vmem:[%s8] sm:$0xff]
        %v995 = vld [vmem:[%s9] sm:$0xff]
        %997 = vset.pattern.permute.xlu0 0
        %998 = vperm.xlu0 %997, %v995
        %v999 = vpop.permute.xlu0 %998
        %vm1001 = vcmask 588800
        %v1003 = vsel %vm1001, %v994, 0
        %1005 = vmatprep.subr.mxu0 0.0
        %1006 = vmatpush1.msra.mxu0 %v972
        %1007 = vmatprep.subr.mxu0 0.0
        %1008 = vmatpush1.msra.mxu0 %v975
        %1009 = vmatprep.subr.mxu0 0.0
        %1010 = vmatpush1.msra.mxu0 %v978
        %1011 = vmatprep.subr.mxu0 0.0
        %1012 = vmatpush1.msra.mxu0 %v981
        %1013 = vmatprep.subr.mxu0 0.0
        %1014 = vmatpush1.msra.mxu0 %v969
        %1015 = vmatprep.subr.mxu0 0.0
        %1016 = vmatpush1.msra.mxu0 %v984
        %1017 = vmatprep.subr.mxu0 0.0
        %1018 = vmatpush1.msra.mxu0 %v987
        %1019 = vmatprep.subr.mxu0 0.0
        %1020 = vmatpush1.msra.mxu0 %v990
        %1021 = vmatprep.subr.mxu0 0.0
        %1022 = vmatpush1.msra.mxu0 %v993
        %1023 = vmatprep.subr.mxu0 0.0
        %1024 = vmatpush1.msra.mxu0 0.0
        %1025 = vmatprep.subr.mxu0 0.0
        %1026 = vmatpush1.msra.mxu0 0.0
        %1027 = vmatprep.subr.mxu0 0.0
        %1028 = vmatpush1.msra.mxu0 0.0
        %1029 = vmatprep.subr.mxu0 0.0
        %1030 = vmatpush1.msra.mxu0 0.0
        %1031 = vmatprep.subr.mxu0 0.0
        %1032 = vmatpush1.msra.mxu0 0.0
        %1033 = vmatprep.subr.mxu0 0.0
        %1034 = vmatpush1.msra.mxu0 0.0
        %1035 = vmatprep.subr.mxu0 0.0
        %1036 = vmatpush1.msra.mxu0 0.0
        %1037 = vmatprep.subr.mxu0 0.0
        %1038 = vmatpush1.msra.mxu0 0.0
        %1039 = vmatprep.subr.mxu0 0.0
        %1040 = vmatpush1.msra.mxu0 0.0
        %1041 = vmatprep.subr.mxu0 0.0
        %1042 = vmatpush1.msra.mxu0 0.0
        %1043 = vmatprep.subr.mxu0 0.0
        %1044 = vmatpush1.msra.mxu0 0.0
        %1045 = vmatprep.subr.mxu0 0.0
        %1046 = vmatpush1.msra.mxu0 0.0
        %1047 = vmatprep.subr.mxu0 0.0
        %1048 = vmatpush1.msra.mxu0 0.0
        %1049 = vmatprep.subr.mxu0 0.0
        %1050 = vmatpush1.msra.mxu0 0.0
        %1051 = vmatprep.subr.mxu0 0.0
        %1052 = vmatpush1.msra.mxu0 0.0
        %1053 = vmatprep.subr.mxu0 0.0
        %1054 = vmatpush1.msra.mxu0 0.0
        %1055 = vmatprep.subr.mxu0 0.0
        %1056 = vmatpush1.msra.mxu0 0.0
        %1057 = vmatprep.subr.mxu0 0.0
        %1058 = vmatpush1.msra.mxu0 0.0
        %1059 = vmatprep.subr.mxu0 0.0
        %1060 = vmatpush1.msra.mxu0 0.0
        %1061 = vmatprep.subr.mxu0 0.0
        %1062 = vmatpush1.msra.mxu0 0.0
        %1063 = vmatprep.subr.mxu0 0.0
        %1064 = vmatpush1.msra.mxu0 0.0
        %1065 = vmatprep.subr.mxu0 0.0
        %1066 = vmatpush1.msra.mxu0 0.0
        %1067 = vmatprep.subr.mxu0 0.0
        %1068 = vmatpush1.msra.mxu0 0.0
        %1069 = vmatprep.mubr.f32.mxu0 0.0
        %1070 = vmatmul.mubr.f32.gmra.mrb[0].mxu0 %v1003
        %v1071 = vpop.f32.mrb[0].mxu0
        %v1072 = vadd.f32 %v999, %v1071
        %v1073 = vpop.f32.mrb[0].mxu0
        %1074 = vdwg.mxu0
        %v1075 = vmax.f32 %v1072, 0.0
        %v1076 = vld [vmem:[#allocation8] sm:$0xff]
        %v1077 = vld [vmem:[#allocation8 + $0x8] sm:$0xff]
        %v1078 = vld [vmem:[#allocation8 + $0x10] sm:$0xff]
        %v1079 = vld [vmem:[#allocation8 + $0x18] sm:$0xff]
        %v1080 = vld [vmem:[#allocation8 + $0x20] sm:$0xff]
        %v1081 = vld [vmem:[#allocation8 + $0x28] sm:$0xff]
        %v1082 = vld [vmem:[#allocation8 + $0x30] sm:$0xff]
        %v1083 = vld [vmem:[#allocation8 + $0x38] sm:$0xff]
        %v1084 = vld [vmem:[#allocation8 + $0x40] sm:$0xff]
        %v1085 = vld [vmem:[#allocation8 + $0x48] sm:$0xff]
        %v1086 = vld [vmem:[#allocation8 + $0x50] sm:$0xff]
        %v1087 = vld [vmem:[#allocation8 + $0x58] sm:$0xff]
        %v1088 = vld [vmem:[#allocation8 + $0x60] sm:$0xff]
        %v1089 = vld [vmem:[#allocation8 + $0x68] sm:$0xff]
        %v1090 = vld [vmem:[#allocation8 + $0x70] sm:$0xff]
        %v1091 = vld [vmem:[#allocation8 + $0x78] sm:$0xff]
        %v1092 = vld [vmem:[#allocation8 + $0x80] sm:$0xff]
        %v1093 = vld [vmem:[#allocation8 + $0x88] sm:$0xff]
        %v1094 = vld [vmem:[#allocation8 + $0x90] sm:$0xff]
        %v1095 = vld [vmem:[#allocation8 + $0x98] sm:$0xff]
        %v1096 = vld [vmem:[#allocation8 + $0xa0] sm:$0xff]
        %v1097 = vld [vmem:[#allocation8 + $0xa8] sm:$0xff]
        %v1098 = vld [vmem:[#allocation8 + $0xb0] sm:$0xff]
        %v1099 = vld [vmem:[#allocation8 + $0xb8] sm:$0xff]
        %v1100 = vld [vmem:[#allocation8 + $0xc0] sm:$0xff]
        %v1101 = vld [vmem:[#allocation8 + $0xc8] sm:$0xff]
        %v1102 = vld [vmem:[#allocation8 + $0xd0] sm:$0xff]
        %v1103 = vld [vmem:[#allocation8 + $0xd8] sm:$0xff]
        %v1104 = vld [vmem:[#allocation8 + $0xe0] sm:$0xff]
        %v1105 = vld [vmem:[#allocation8 + $0xe8] sm:$0xff]
        %v1106 = vld [vmem:[#allocation8 + $0xf0] sm:$0xff]
        %v1107 = vld [vmem:[#allocation8 + $0xf8] sm:$0xff]
        %v1108 = vld [vmem:[#allocation8 + $0x100] sm:$0xff]
        %v1109 = vld [vmem:[#allocation8 + $0x108] sm:$0xff]
        %v1110 = vld [vmem:[#allocation8 + $0x110] sm:$0xff]
        %v1111 = vld [vmem:[#allocation8 + $0x118] sm:$0xff]
        %v1112 = vld [vmem:[#allocation8 + $0x120] sm:$0xff]
        %v1113 = vld [vmem:[#allocation8 + $0x128] sm:$0xff]
        %v1114 = vld [vmem:[#allocation8 + $0x130] sm:$0xff]
        %v1115 = vld [vmem:[#allocation8 + $0x138] sm:$0xff]
        %v1116 = vld [vmem:[#allocation8 + $0x140] sm:$0xff]
        %v1117 = vld [vmem:[#allocation8 + $0x148] sm:$0xff]
        %v1118 = vld [vmem:[#allocation8 + $0x150] sm:$0xff]
        %v1119 = vld [vmem:[#allocation8 + $0x158] sm:$0xff]
        %v1120 = vld [vmem:[#allocation8 + $0x160] sm:$0xff]
        %v1121 = vld [vmem:[#allocation8 + $0x168] sm:$0xff]
        %v1122 = vld [vmem:[#allocation8 + $0x170] sm:$0xff]
        %v1123 = vld [vmem:[#allocation8 + $0x178] sm:$0xff]
        %v1124 = vld [vmem:[#allocation8 + $0x180] sm:$0xff]
        %v1125 = vld [vmem:[#allocation8 + $0x188] sm:$0xff]
        %v1126 = vld [vmem:[#allocation8 + $0x190] sm:$0xff]
        %v1127 = vld [vmem:[#allocation8 + $0x198] sm:$0xff]
        %v1128 = vld [vmem:[#allocation8 + $0x1a0] sm:$0xff]
        %v1129 = vld [vmem:[#allocation8 + $0x1a8] sm:$0xff]
        %v1130 = vld [vmem:[#allocation8 + $0x1b0] sm:$0xff]
        %v1131 = vld [vmem:[#allocation8 + $0x1b8] sm:$0xff]
        %v1132 = vld [vmem:[#allocation8 + $0x1c0] sm:$0xff]
        %v1133 = vld [vmem:[#allocation8 + $0x1c8] sm:$0xff]
        %v1134 = vld [vmem:[#allocation8 + $0x1d0] sm:$0xff]
        %v1135 = vld [vmem:[#allocation8 + $0x1d8] sm:$0xff]
        %v1136 = vld [vmem:[#allocation8 + $0x1e0] sm:$0xff]
        %v1137 = vld [vmem:[#allocation8 + $0x1e8] sm:$0xff]
        %v1138 = vld [vmem:[#allocation8 + $0x1f0] sm:$0xff]
        %v1139 = vld [vmem:[#allocation8 + $0x1f8] sm:$0xff]
        %1140 = vmatprep.subr.mxu0 %v1077
        %1141 = vmatpush1.msra.mxu0 %v1076
        %1142 = vmatprep.subr.mxu0 %v1081
        %1143 = vmatpush1.msra.mxu0 %v1080
        %1144 = vmatprep.subr.mxu0 %v1085
        %1145 = vmatpush1.msra.mxu0 %v1084
        %1146 = vmatprep.subr.mxu0 %v1089
        %1147 = vmatpush1.msra.mxu0 %v1088
        %1148 = vmatprep.subr.mxu0 %v1093
        %1149 = vmatpush1.msra.mxu0 %v1092
        %1150 = vmatprep.subr.mxu0 %v1097
        %1151 = vmatpush1.msra.mxu0 %v1096
        %1152 = vmatprep.subr.mxu0 %v1101
        %1153 = vmatpush1.msra.mxu0 %v1100
        %1154 = vmatprep.subr.mxu0 %v1105
        %1155 = vmatpush1.msra.mxu0 %v1104
        %1156 = vmatprep.subr.mxu0 %v1109
        %1157 = vmatpush1.msra.mxu0 %v1108
        %1158 = vmatprep.subr.mxu0 %v1113
        %1159 = vmatpush1.msra.mxu0 %v1112
        %1160 = vmatprep.subr.mxu0 %v1117
        %1161 = vmatpush1.msra.mxu0 %v1116
        %1162 = vmatprep.subr.mxu0 %v1121
        %1163 = vmatpush1.msra.mxu0 %v1120
        %1164 = vmatprep.subr.mxu0 %v1125
        %1165 = vmatpush1.msra.mxu0 %v1124
        %1166 = vmatprep.subr.mxu0 %v1129
        %1167 = vmatpush1.msra.mxu0 %v1128
        %1168 = vmatprep.subr.mxu0 %v1133
        %1169 = vmatpush1.msra.mxu0 %v1132
        %1170 = vmatprep.subr.mxu0 %v1137
        %1171 = vmatpush1.msra.mxu0 %v1136
        %1172 = vmatprep.subr.mxu0 0.0
        %1173 = vmatpush1.msra.mxu0 0.0
        %1174 = vmatprep.subr.mxu0 0.0
        %1175 = vmatpush1.msra.mxu0 0.0
        %1176 = vmatprep.subr.mxu0 0.0
        %1177 = vmatpush1.msra.mxu0 0.0
        %1178 = vmatprep.subr.mxu0 0.0
        %1179 = vmatpush1.msra.mxu0 0.0
        %1180 = vmatprep.subr.mxu0 0.0
        %1181 = vmatpush1.msra.mxu0 0.0
        %1182 = vmatprep.subr.mxu0 0.0
        %1183 = vmatpush1.msra.mxu0 0.0
        %1184 = vmatprep.subr.mxu0 0.0
        %1185 = vmatpush1.msra.mxu0 0.0
        %1186 = vmatprep.subr.mxu0 0.0
        %1187 = vmatpush1.msra.mxu0 0.0
        %1188 = vmatprep.subr.mxu0 0.0
        %1189 = vmatpush1.msra.mxu0 0.0
        %1190 = vmatprep.subr.mxu0 0.0
        %1191 = vmatpush1.msra.mxu0 0.0
        %1192 = vmatprep.subr.mxu0 0.0
        %1193 = vmatpush1.msra.mxu0 0.0
        %1194 = vmatprep.subr.mxu0 0.0
        %1195 = vmatpush1.msra.mxu0 0.0
        %1196 = vmatprep.subr.mxu0 0.0
        %1197 = vmatpush1.msra.mxu0 0.0
        %1198 = vmatprep.subr.mxu0 0.0
        %1199 = vmatpush1.msra.mxu0 0.0
        %1200 = vmatprep.subr.mxu0 0.0
        %1201 = vmatpush1.msra.mxu0 0.0
        %1202 = vmatprep.subr.mxu0 0.0
        %1203 = vmatpush1.msra.mxu0 0.0
        %1204 = vmatprep.mubr.f32.mxu0 0.0
        %1205 = vmatmul.mubr.f32.gmra.mrb[0].mxu0 %v1075
        %v1206 = vpop.f32.mrb[0].mxu0
        %v1207 = vadd.f32 0.0, %v1206
        %v1208 = vpop.f32.mrb[0].mxu0
        %v1209 = vadd.f32 0.0, %v1208
        %1210 = vdwg.mxu0
        %1211 = vmatprep.subr.mxu0 %v1079
        %1212 = vmatpush1.msra.mxu0 %v1078
        %1213 = vmatprep.subr.mxu0 %v1083
        %1214 = vmatpush1.msra.mxu0 %v1082
        %1215 = vmatprep.subr.mxu0 %v1087
        %1216 = vmatpush1.msra.mxu0 %v1086
        %1217 = vmatprep.subr.mxu0 %v1091
        %1218 = vmatpush1.msra.mxu0 %v1090
        %1219 = vmatprep.subr.mxu0 %v1095
        %1220 = vmatpush1.msra.mxu0 %v1094
        %1221 = vmatprep.subr.mxu0 %v1099
        %1222 = vmatpush1.msra.mxu0 %v1098
        %1223 = vmatprep.subr.mxu0 %v1103
        %1224 = vmatpush1.msra.mxu0 %v1102
        %1225 = vmatprep.subr.mxu0 %v1107
        %1226 = vmatpush1.msra.mxu0 %v1106
        %1227 = vmatprep.subr.mxu0 %v1111
        %1228 = vmatpush1.msra.mxu0 %v1110
        %1229 = vmatprep.subr.mxu0 %v1115
        %1230 = vmatpush1.msra.mxu0 %v1114
        %1231 = vmatprep.subr.mxu0 %v1119
        %1232 = vmatpush1.msra.mxu0 %v1118
        %1233 = vmatprep.subr.mxu0 %v1123
        %1234 = vmatpush1.msra.mxu0 %v1122
        %1235 = vmatprep.subr.mxu0 %v1127
        %1236 = vmatpush1.msra.mxu0 %v1126
        %1237 = vmatprep.subr.mxu0 %v1131
        %1238 = vmatpush1.msra.mxu0 %v1130
        %1239 = vmatprep.subr.mxu0 %v1135
        %1240 = vmatpush1.msra.mxu0 %v1134
        %1241 = vmatprep.subr.mxu0 %v1139
        %1242 = vmatpush1.msra.mxu0 %v1138
        %1243 = vmatprep.subr.mxu0 0.0
        %1244 = vmatpush1.msra.mxu0 0.0
        %1245 = vmatprep.subr.mxu0 0.0
        %1246 = vmatpush1.msra.mxu0 0.0
        %1247 = vmatprep.subr.mxu0 0.0
        %1248 = vmatpush1.msra.mxu0 0.0
        %1249 = vmatprep.subr.mxu0 0.0
        %1250 = vmatpush1.msra.mxu0 0.0
        %1251 = vmatprep.subr.mxu0 0.0
        %1252 = vmatpush1.msra.mxu0 0.0
        %1253 = vmatprep.subr.mxu0 0.0
        %1254 = vmatpush1.msra.mxu0 0.0
        %1255 = vmatprep.subr.mxu0 0.0
        %1256 = vmatpush1.msra.mxu0 0.0
        %1257 = vmatprep.subr.mxu0 0.0
        %1258 = vmatpush1.msra.mxu0 0.0
        %1259 = vmatprep.subr.mxu0 0.0
        %1260 = vmatpush1.msra.mxu0 0.0
        %1261 = vmatprep.subr.mxu0 0.0
        %1262 = vmatpush1.msra.mxu0 0.0
        %1263 = vmatprep.subr.mxu0 0.0
        %1264 = vmatpush1.msra.mxu0 0.0
        %1265 = vmatprep.subr.mxu0 0.0
        %1266 = vmatpush1.msra.mxu0 0.0
        %1267 = vmatprep.subr.mxu0 0.0
        %1268 = vmatpush1.msra.mxu0 0.0
        %1269 = vmatprep.subr.mxu0 0.0
        %1270 = vmatpush1.msra.mxu0 0.0
        %1271 = vmatprep.subr.mxu0 0.0
        %1272 = vmatpush1.msra.mxu0 0.0
        %1273 = vmatprep.subr.mxu0 0.0
        %1274 = vmatpush1.msra.mxu0 0.0
        %1275 = vmatprep.mubr.f32.mxu0 0.0
        %1276 = vmatmul.mubr.f32.gmra.mrb[0].mxu0 %v1075
        %v1277 = vpop.f32.mrb[0].mxu0
        %v1278 = vadd.f32 0.0, %v1277
        %v1279 = vpop.f32.mrb[0].mxu0
        %v1280 = vadd.f32 0.0, %v1279
        %1281 = vdwg.mxu0
        %v1282 = vld [vmem:[%s5] sm:$0xff]
        %v1283 = vld [vmem:[%s5 + $0x8] sm:$0xff]
        %v1284 = vld [vmem:[%s5 + $0x10] sm:$0xff]
        %v1285 = vld [vmem:[%s5 + $0x18] sm:$0xff]
        %v1286 = vld [vmem:[%s5 + $0x20] sm:$0x1]
        %v1287 = vld [vmem:[%s5 + $0x28] sm:$0x1]
        %v1288 = vld [vmem:[%s5 + $0x30] sm:$0x1]
        %v1289 = vld [vmem:[%s5 + $0x38] sm:$0x1]
        %1290 = vrot.lane.b32.xlu0 %v1207, 17
        %v1291 = vpop.permute.xlu0 %1290
        %1292 = vrot.lane.b32.xlu0 %v1209, 17
        %v1293 = vpop.permute.xlu0 %1292
        %1294 = vrot.lane.b32.xlu0 %v1278, 17
        %v1295 = vpop.permute.xlu0 %1294
        %1296 = vrot.lane.b32.xlu0 %v1280, 17
        %v1297 = vpop.permute.xlu0 %1296
        %v1298 = vlaneseq
        %v1299 = vand.u32 %v1298, 127
        %vm1300 = vcmp.lt.s32.totalorder %v1299, 17
        %v1301 = vsel %vm1300, %v1295, %v1297
        %v1302 = vsel %vm1300, %v1293, %v1295
        %v1303 = vsel %vm1300, %v1291, %v1293
        %v1304 = vsel %vm1300, %v1297, %v1291
        %v1305 = vlaneseq
        %v1306 = vshrl.u32 %v1305, 7
        %v1307 = vsub.s32 0, %v1306
        %v1308 = vrot.slane %v1282, %v1307
        %v1309 = vlaneseq
        %v1310 = vshrl.u32 %v1309, 7
        %v1311 = vsub.s32 0, %v1310
        %v1312 = vrot.slane %v1283, %v1311
        %v1313 = vlaneseq
        %v1314 = vshrl.u32 %v1313, 7
        %v1315 = vsub.s32 0, %v1314
        %v1316 = vrot.slane %v1284, %v1315
        %v1317 = vlaneseq
        %v1318 = vshrl.u32 %v1317, 7
        %v1319 = vsub.s32 0, %v1318
        %v1320 = vrot.slane %v1285, %v1319
        %v1321 = vmul.f32 %v1304, %v1308
        %v1322 = vmul.f32 %v1303, %v1312
        %v1323 = vmul.f32 %v1302, %v1316
        %v1324 = vmul.f32 %v1301, %v1320
        %1325 = vrot.lane.b32.xlu0 %v1207, 16
        %v1326 = vpop.permute.xlu0 %1325
        %1327 = vrot.lane.b32.xlu0 %v1209, 16
        %v1328 = vpop.permute.xlu0 %1327
        %1329 = vrot.lane.b32.xlu0 %v1278, 16
        %v1330 = vpop.permute.xlu0 %1329
        %1331 = vrot.lane.b32.xlu0 %v1280, 16
        %v1332 = vpop.permute.xlu0 %1331
        %vm1333 = vcmp.lt.s32.totalorder %v1299, 16
        %v1334 = vsel %vm1333, %v1330, %v1332
        %v1335 = vsel %vm1333, %v1328, %v1330
        %v1336 = vsel %vm1333, %v1326, %v1328
        %v1337 = vsel %vm1333, %v1332, %v1326
        %v1338 = vlaneseq
        %v1339 = vshrl.u32 %v1338, 7
        %v1340 = vsub.s32 1, %v1339
        %v1341 = vrot.slane %v1282, %v1340
        %v1342 = vlaneseq
        %v1343 = vshrl.u32 %v1342, 7
        %v1344 = vsub.s32 1, %v1343
        %v1345 = vrot.slane %v1283, %v1344
        %v1346 = vlaneseq
        %v1347 = vshrl.u32 %v1346, 7
        %v1348 = vsub.s32 1, %v1347
        %v1349 = vrot.slane %v1284, %v1348
        %v1350 = vlaneseq
        %v1351 = vshrl.u32 %v1350, 7
        %v1352 = vsub.s32 1, %v1351
        %v1353 = vrot.slane %v1285, %v1352
        %v1354 = vmul.f32 %v1337, %v1341
        %v1355 = vmul.f32 %v1336, %v1345
        %v1356 = vmul.f32 %v1335, %v1349
        %v1357 = vmul.f32 %v1334, %v1353
        %1358 = vrot.lane.b32.xlu0 %v1207, 15
        %v1359 = vpop.permute.xlu0 %1358
        %1360 = vrot.lane.b32.xlu0 %v1209, 15
        %v1361 = vpop.permute.xlu0 %1360
        %1362 = vrot.lane.b32.xlu0 %v1278, 15
        %v1363 = vpop.permute.xlu0 %1362
        %1364 = vrot.lane.b32.xlu0 %v1280, 15
        %v1365 = vpop.permute.xlu0 %1364
        %vm1366 = vcmp.lt.s32.totalorder %v1299, 15
        %v1367 = vsel %vm1366, %v1363, %v1365
        %v1368 = vsel %vm1366, %v1361, %v1363
        %v1369 = vsel %vm1366, %v1359, %v1361
        %v1370 = vsel %vm1366, %v1365, %v1359
        %v1371 = vlaneseq
        %v1372 = vshrl.u32 %v1371, 7
        %v1373 = vsub.s32 2, %v1372
        %v1374 = vrot.slane %v1282, %v1373
        %v1375 = vlaneseq
        %v1376 = vshrl.u32 %v1375, 7
        %v1377 = vsub.s32 2, %v1376
        %v1378 = vrot.slane %v1283, %v1377
        %v1379 = vlaneseq
        %v1380 = vshrl.u32 %v1379, 7
        %v1381 = vsub.s32 2, %v1380
        %v1382 = vrot.slane %v1284, %v1381
        %v1383 = vlaneseq
        %v1384 = vshrl.u32 %v1383, 7
        %v1385 = vsub.s32 2, %v1384
        %v1386 = vrot.slane %v1285, %v1385
        %v1387 = vmul.f32 %v1370, %v1374
        %v1388 = vmul.f32 %v1369, %v1378
        %v1389 = vmul.f32 %v1368, %v1382
        %v1390 = vmul.f32 %v1367, %v1386
        %1391 = vrot.lane.b32.xlu0 %v1207, 1
        %v1392 = vpop.permute.xlu0 %1391
        %1393 = vrot.lane.b32.xlu0 %v1209, 1
        %v1394 = vpop.permute.xlu0 %1393
        %1395 = vrot.lane.b32.xlu0 %v1278, 1
        %v1396 = vpop.permute.xlu0 %1395
        %1397 = vrot.lane.b32.xlu0 %v1280, 1
        %v1398 = vpop.permute.xlu0 %1397
        %vm1399 = vcmp.lt.s32.totalorder %v1299, 1
        %v1400 = vsel %vm1399, %v1396, %v1398
        %v1401 = vsel %vm1399, %v1394, %v1396
        %v1402 = vsel %vm1399, %v1392, %v1394
        %v1403 = vsel %vm1399, %v1398, %v1392
        %v1404 = vlaneseq
        %v1405 = vshrl.u32 %v1404, 7
        %v1406 = vsub.s32 3, %v1405
        %v1407 = vrot.slane %v1282, %v1406
        %v1408 = vlaneseq
        %v1409 = vshrl.u32 %v1408, 7
        %v1410 = vsub.s32 3, %v1409
        %v1411 = vrot.slane %v1283, %v1410
        %v1412 = vlaneseq
        %v1413 = vshrl.u32 %v1412, 7
        %v1414 = vsub.s32 3, %v1413
        %v1415 = vrot.slane %v1284, %v1414
        %v1416 = vlaneseq
        %v1417 = vshrl.u32 %v1416, 7
        %v1418 = vsub.s32 3, %v1417
        %v1419 = vrot.slane %v1285, %v1418
        %v1420 = vmul.f32 %v1403, %v1407
        %v1421 = vmul.f32 %v1402, %v1411
        %v1422 = vmul.f32 %v1401, %v1415
        %v1423 = vmul.f32 %v1400, %v1419
        %1424 = vrot.lane.b32.xlu0 %v1207, 127
        %v1425 = vpop.permute.xlu0 %1424
        %1426 = vrot.lane.b32.xlu0 %v1209, 127
        %v1427 = vpop.permute.xlu0 %1426
        %1428 = vrot.lane.b32.xlu0 %v1278, 127
        %v1429 = vpop.permute.xlu0 %1428
        %1430 = vrot.lane.b32.xlu0 %v1280, 127
        %v1431 = vpop.permute.xlu0 %1430
        %vm1432 = vcmp.lt.s32.totalorder %v1299, 127
        %v1433 = vsel %vm1432, %v1429, %v1431
        %v1434 = vsel %vm1432, %v1427, %v1429
        %v1435 = vsel %vm1432, %v1425, %v1427
        %v1436 = vsel %vm1432, %v1431, %v1425
        %v1437 = vlaneseq
        %v1438 = vshrl.u32 %v1437, 7
        %v1439 = vsub.s32 5, %v1438
        %v1440 = vrot.slane %v1282, %v1439
        %v1441 = vlaneseq
        %v1442 = vshrl.u32 %v1441, 7
        %v1443 = vsub.s32 5, %v1442
        %v1444 = vrot.slane %v1283, %v1443
        %v1445 = vlaneseq
        %v1446 = vshrl.u32 %v1445, 7
        %v1447 = vsub.s32 5, %v1446
        %v1448 = vrot.slane %v1284, %v1447
        %v1449 = vlaneseq
        %v1450 = vshrl.u32 %v1449, 7
        %v1451 = vsub.s32 5, %v1450
        %v1452 = vrot.slane %v1285, %v1451
        %v1453 = vmul.f32 %v1435, %v1440
        %v1454 = vmul.f32 %v1434, %v1444
        %v1455 = vmul.f32 %v1433, %v1448
        %v1456 = vmul.f32 %v1436, %v1452
        %1457 = vrot.lane.b32.xlu0 %v1207, 113
        %v1458 = vpop.permute.xlu0 %1457
        %1459 = vrot.lane.b32.xlu0 %v1209, 113
        %v1460 = vpop.permute.xlu0 %1459
        %1461 = vrot.lane.b32.xlu0 %v1278, 113
        %v1462 = vpop.permute.xlu0 %1461
        %1463 = vrot.lane.b32.xlu0 %v1280, 113
        %v1464 = vpop.permute.xlu0 %1463
        %vm1465 = vcmp.lt.s32.totalorder %v1299, 113
        %v1466 = vsel %vm1465, %v1462, %v1464
        %v1467 = vsel %vm1465, %v1460, %v1462
        %v1468 = vsel %vm1465, %v1458, %v1460
        %v1469 = vsel %vm1465, %v1464, %v1458
        %v1470 = vlaneseq
        %v1471 = vshrl.u32 %v1470, 7
        %v1472 = vsub.s32 6, %v1471
        %v1473 = vrot.slane %v1282, %v1472
        %v1474 = vlaneseq
        %v1475 = vshrl.u32 %v1474, 7
        %v1476 = vsub.s32 6, %v1475
        %v1477 = vrot.slane %v1283, %v1476
        %v1478 = vlaneseq
        %v1479 = vshrl.u32 %v1478, 7
        %v1480 = vsub.s32 6, %v1479
        %v1481 = vrot.slane %v1284, %v1480
        %v1482 = vlaneseq
        %v1483 = vshrl.u32 %v1482, 7
        %v1484 = vsub.s32 6, %v1483
        %v1485 = vrot.slane %v1285, %v1484
        %v1486 = vmul.f32 %v1468, %v1473
        %v1487 = vmul.f32 %v1467, %v1477
        %v1488 = vmul.f32 %v1466, %v1481
        %v1489 = vmul.f32 %v1469, %v1485
        %1490 = vrot.lane.b32.xlu0 %v1207, 112
        %v1491 = vpop.permute.xlu0 %1490
        %1492 = vrot.lane.b32.xlu0 %v1209, 112
        %v1493 = vpop.permute.xlu0 %1492
        %1494 = vrot.lane.b32.xlu0 %v1278, 112
        %v1495 = vpop.permute.xlu0 %1494
        %1496 = vrot.lane.b32.xlu0 %v1280, 112
        %v1497 = vpop.permute.xlu0 %1496
        %vm1498 = vcmp.lt.s32.totalorder %v1299, 112
        %v1499 = vsel %vm1498, %v1495, %v1497
        %v1500 = vsel %vm1498, %v1493, %v1495
        %v1501 = vsel %vm1498, %v1491, %v1493
        %v1502 = vsel %vm1498, %v1497, %v1491
        %v1503 = vlaneseq
        %v1504 = vshrl.u32 %v1503, 7
        %v1505 = vsub.s32 7, %v1504
        %v1506 = vrot.slane %v1282, %v1505
        %v1507 = vlaneseq
        %v1508 = vshrl.u32 %v1507, 7
        %v1509 = vsub.s32 7, %v1508
        %v1510 = vrot.slane %v1283, %v1509
        %v1511 = vlaneseq
        %v1512 = vshrl.u32 %v1511, 7
        %v1513 = vsub.s32 7, %v1512
        %v1514 = vrot.slane %v1284, %v1513
        %v1515 = vlaneseq
        %v1516 = vshrl.u32 %v1515, 7
        %v1517 = vsub.s32 7, %v1516
        %v1518 = vrot.slane %v1285, %v1517
        %v1519 = vmul.f32 %v1501, %v1506
        %v1520 = vmul.f32 %v1500, %v1510
        %v1521 = vmul.f32 %v1499, %v1514
        %v1522 = vmul.f32 %v1502, %v1518
        %1523 = vrot.lane.b32.xlu0 %v1207, 111
        %v1524 = vpop.permute.xlu0 %1523
        %1525 = vrot.lane.b32.xlu0 %v1209, 111
        %v1526 = vpop.permute.xlu0 %1525
        %1527 = vrot.lane.b32.xlu0 %v1278, 111
        %v1528 = vpop.permute.xlu0 %1527
        %1529 = vrot.lane.b32.xlu0 %v1280, 111
        %v1530 = vpop.permute.xlu0 %1529
        %vm1531 = vcmp.lt.s32.totalorder %v1299, 111
        %v1532 = vsel %vm1531, %v1528, %v1530
        %v1533 = vsel %vm1531, %v1526, %v1528
        %v1534 = vsel %vm1531, %v1524, %v1526
        %v1535 = vsel %vm1531, %v1530, %v1524
        %v1536 = vlaneseq
        %v1537 = vshrl.u32 %v1536, 7
        %v1538 = vsub.s32 0, %v1537
        %v1539 = vrot.slane %v1286, %v1538
        %v1540 = vlaneseq
        %v1541 = vshrl.u32 %v1540, 7
        %v1542 = vsub.s32 0, %v1541
        %v1543 = vrot.slane %v1287, %v1542
        %v1544 = vlaneseq
        %v1545 = vshrl.u32 %v1544, 7
        %v1546 = vsub.s32 0, %v1545
        %v1547 = vrot.slane %v1288, %v1546
        %v1548 = vlaneseq
        %v1549 = vshrl.u32 %v1548, 7
        %v1550 = vsub.s32 0, %v1549
        %v1551 = vrot.slane %v1289, %v1550
        %v1552 = vmul.f32 %v1534, %v1539
        %v1553 = vmul.f32 %v1533, %v1543
        %v1554 = vmul.f32 %v1532, %v1547
        %v1555 = vmul.f32 %v1535, %v1551
        %v1556 = vld [vmem:[%s10] sm:$0xff]
        %v1557 = vld [vmem:[%s11] sm:$0xff]
        %1559 = vset.pattern.permute.xlu0 0
        %1560 = vperm.xlu0 %1559, %v1557
        %v1561 = vpop.permute.xlu0 %1560
        %v1564 = vsel %vm1001, %v1556, 0
        %1566 = vmatprep.subr.mxu0 %v1322
        %1567 = vmatpush1.msra.mxu0 %v1321
        %1568 = vmatprep.subr.mxu0 %v1355
        %1569 = vmatpush1.msra.mxu0 %v1354
        %1570 = vmatprep.subr.mxu0 %v1388
        %1571 = vmatpush1.msra.mxu0 %v1387
        %1572 = vmatprep.subr.mxu0 %v1421
        %1573 = vmatpush1.msra.mxu0 %v1420
        %1574 = vmatprep.subr.mxu0 %v1209
        %1575 = vmatpush1.msra.mxu0 %v1207
        %1576 = vmatprep.subr.mxu0 %v1454
        %1577 = vmatpush1.msra.mxu0 %v1453
        %1578 = vmatprep.subr.mxu0 %v1487
        %1579 = vmatpush1.msra.mxu0 %v1486
        %1580 = vmatprep.subr.mxu0 %v1520
        %1581 = vmatpush1.msra.mxu0 %v1519
        %1582 = vmatprep.subr.mxu0 %v1553
        %1583 = vmatpush1.msra.mxu0 %v1552
        %1584 = vmatprep.subr.mxu0 0.0
        %1585 = vmatpush1.msra.mxu0 0.0
        %1586 = vmatprep.subr.mxu0 0.0
        %1587 = vmatpush1.msra.mxu0 0.0
        %1588 = vmatprep.subr.mxu0 0.0
        %1589 = vmatpush1.msra.mxu0 0.0
        %1590 = vmatprep.subr.mxu0 0.0
        %1591 = vmatpush1.msra.mxu0 0.0
        %1592 = vmatprep.subr.mxu0 0.0
        %1593 = vmatpush1.msra.mxu0 0.0
        %1594 = vmatprep.subr.mxu0 0.0
        %1595 = vmatpush1.msra.mxu0 0.0
        %1596 = vmatprep.subr.mxu0 0.0
        %1597 = vmatpush1.msra.mxu0 0.0
        %1598 = vmatprep.subr.mxu0 0.0
        %1599 = vmatpush1.msra.mxu0 0.0
        %1600 = vmatprep.subr.mxu0 0.0
        %1601 = vmatpush1.msra.mxu0 0.0
        %1602 = vmatprep.subr.mxu0 0.0
        %1603 = vmatpush1.msra.mxu0 0.0
        %1604 = vmatprep.subr.mxu0 0.0
        %1605 = vmatpush1.msra.mxu0 0.0
        %1606 = vmatprep.subr.mxu0 0.0
        %1607 = vmatpush1.msra.mxu0 0.0
        %1608 = vmatprep.subr.mxu0 0.0
        %1609 = vmatpush1.msra.mxu0 0.0
        %1610 = vmatprep.subr.mxu0 0.0
        %1611 = vmatpush1.msra.mxu0 0.0
        %1612 = vmatprep.subr.mxu0 0.0
        %1613 = vmatpush1.msra.mxu0 0.0
        %1614 = vmatprep.subr.mxu0 0.0
        %1615 = vmatpush1.msra.mxu0 0.0
        %1616 = vmatprep.subr.mxu0 0.0
        %1617 = vmatpush1.msra.mxu0 0.0
        %1618 = vmatprep.subr.mxu0 0.0
        %1619 = vmatpush1.msra.mxu0 0.0
        %1620 = vmatprep.subr.mxu0 0.0
        %1621 = vmatpush1.msra.mxu0 0.0
        %1622 = vmatprep.subr.mxu0 0.0
        %1623 = vmatpush1.msra.mxu0 0.0
        %1624 = vmatprep.subr.mxu0 0.0
        %1625 = vmatpush1.msra.mxu0 0.0
        %1626 = vmatprep.subr.mxu0 0.0
        %1627 = vmatpush1.msra.mxu0 0.0
        %1628 = vmatprep.subr.mxu0 0.0
        %1629 = vmatpush1.msra.mxu0 0.0
        %1630 = vmatprep.mubr.f32.mxu0 0.0
        %1631 = vmatmul.mubr.f32.gmra.mrb[0].mxu0 %v1564
        %v1632 = vpop.f32.mrb[0].mxu0
        %v1633 = vadd.f32 %v1561, %v1632
        %v1634 = vpop.f32.mrb[0].mxu0
        %v1635 = vadd.f32 %v1561, %v1634
        %1636 = vdwg.mxu0
        %1637 = vmatprep.subr.mxu0 %v1324
        %1638 = vmatpush1.msra.mxu0 %v1323
        %1639 = vmatprep.subr.mxu0 %v1357
        %1640 = vmatpush1.msra.mxu0 %v1356
        %1641 = vmatprep.subr.mxu0 %v1390
        %1642 = vmatpush1.msra.mxu0 %v1389
        %1643 = vmatprep.subr.mxu0 %v1423
        %1644 = vmatpush1.msra.mxu0 %v1422
        %1645 = vmatprep.subr.mxu0 %v1280
        %1646 = vmatpush1.msra.mxu0 %v1278
        %1647 = vmatprep.subr.mxu0 %v1456
        %1648 = vmatpush1.msra.mxu0 %v1455
        %1649 = vmatprep.subr.mxu0 %v1489
        %1650 = vmatpush1.msra.mxu0 %v1488
        %1651 = vmatprep.subr.mxu0 %v1522
        %1652 = vmatpush1.msra.mxu0 %v1521
        %1653 = vmatprep.subr.mxu0 %v1555
        %1654 = vmatpush1.msra.mxu0 %v1554
        %1655 = vmatprep.subr.mxu0 0.0
        %1656 = vmatpush1.msra.mxu0 0.0
        %1657 = vmatprep.subr.mxu0 0.0
        %1658 = vmatpush1.msra.mxu0 0.0
        %1659 = vmatprep.subr.mxu0 0.0
        %1660 = vmatpush1.msra.mxu0 0.0
        %1661 = vmatprep.subr.mxu0 0.0
        %1662 = vmatpush1.msra.mxu0 0.0
        %1663 = vmatprep.subr.mxu0 0.0
        %1664 = vmatpush1.msra.mxu0 0.0
        %1665 = vmatprep.subr.mxu0 0.0
        %1666 = vmatpush1.msra.mxu0 0.0
        %1667 = vmatprep.subr.mxu0 0.0
        %1668 = vmatpush1.msra.mxu0 0.0
        %1669 = vmatprep.subr.mxu0 0.0
        %1670 = vmatpush1.msra.mxu0 0.0
        %1671 = vmatprep.subr.mxu0 0.0
        %1672 = vmatpush1.msra.mxu0 0.0
        %1673 = vmatprep.subr.mxu0 0.0
        %1674 = vmatpush1.msra.mxu0 0.0
        %1675 = vmatprep.subr.mxu0 0.0
        %1676 = vmatpush1.msra.mxu0 0.0
        %1677 = vmatprep.subr.mxu0 0.0
        %1678 = vmatpush1.msra.mxu0 0.0
        %1679 = vmatprep.subr.mxu0 0.0
        %1680 = vmatpush1.msra.mxu0 0.0
        %1681 = vmatprep.subr.mxu0 0.0
        %1682 = vmatpush1.msra.mxu0 0.0
        %1683 = vmatprep.subr.mxu0 0.0
        %1684 = vmatpush1.msra.mxu0 0.0
        %1685 = vmatprep.subr.mxu0 0.0
        %1686 = vmatpush1.msra.mxu0 0.0
        %1687 = vmatprep.subr.mxu0 0.0
        %1688 = vmatpush1.msra.mxu0 0.0
        %1689 = vmatprep.subr.mxu0 0.0
        %1690 = vmatpush1.msra.mxu0 0.0
        %1691 = vmatprep.subr.mxu0 0.0
        %1692 = vmatpush1.msra.mxu0 0.0
        %1693 = vmatprep.subr.mxu0 0.0
        %1694 = vmatpush1.msra.mxu0 0.0
        %1695 = vmatprep.subr.mxu0 0.0
        %1696 = vmatpush1.msra.mxu0 0.0
        %1697 = vmatprep.subr.mxu0 0.0
        %1698 = vmatpush1.msra.mxu0 0.0
        %1699 = vmatprep.subr.mxu0 0.0
        %1700 = vmatpush1.msra.mxu0 0.0
        %1701 = vmatprep.mubr.f32.mxu0 0.0
        %1702 = vmatmul.mubr.f32.gmra.mrb[0].mxu0 %v1564
        %v1703 = vpop.f32.mrb[0].mxu0
        %v1704 = vadd.f32 %v1561, %v1703
        %v1705 = vpop.f32.mrb[0].mxu0
        %v1706 = vadd.f32 %v1561, %v1705
        %1707 = vdwg.mxu0
        %v1708 = vmax.f32 %v1633, 0.0
        %v1709 = vmax.f32 %v1635, 0.0
        %v1710 = vmax.f32 %v1704, 0.0
        %v1711 = vmax.f32 %v1706, 0.0
        %1712 = vrot.lane.b32.xlu0 %v1708, 17
        %v1713 = vpop.permute.xlu0 %1712
        %1714 = vrot.lane.b32.xlu0 %v1709, 17
        %v1715 = vpop.permute.xlu0 %1714
        %1716 = vrot.lane.b32.xlu0 %v1710, 17
        %v1717 = vpop.permute.xlu0 %1716
        %1718 = vrot.lane.b32.xlu0 %v1711, 17
        %v1719 = vpop.permute.xlu0 %1718
        %v1720 = vsel %vm1300, %v1717, %v1719
        %v1721 = vsel %vm1300, %v1715, %v1717
        %v1722 = vsel %vm1300, %v1713, %v1715
        %v1723 = vsel %vm1300, %v1719, %v1713
        %v1724 = vmul.f32 %v1723, %v1308
        %v1725 = vmul.f32 %v1722, %v1312
        %v1726 = vmul.f32 %v1721, %v1316
        %v1727 = vmul.f32 %v1720, %v1320
        %1728 = vrot.lane.b32.xlu0 %v1708, 16
        %v1729 = vpop.permute.xlu0 %1728
        %1730 = vrot.lane.b32.xlu0 %v1709, 16
        %v1731 = vpop.permute.xlu0 %1730
        %1732 = vrot.lane.b32.xlu0 %v1710, 16
        %v1733 = vpop.permute.xlu0 %1732
        %1734 = vrot.lane.b32.xlu0 %v1711, 16
        %v1735 = vpop.permute.xlu0 %1734
        %v1736 = vsel %vm1333, %v1733, %v1735
        %v1737 = vsel %vm1333, %v1731, %v1733
        %v1738 = vsel %vm1333, %v1729, %v1731
        %v1739 = vsel %vm1333, %v1735, %v1729
        %v1740 = vmul.f32 %v1739, %v1341
        %v1741 = vmul.f32 %v1738, %v1345
        %v1742 = vmul.f32 %v1737, %v1349
        %v1743 = vmul.f32 %v1736, %v1353
        %1744 = vrot.lane.b32.xlu0 %v1708, 15
        %v1745 = vpop.permute.xlu0 %1744
        %1746 = vrot.lane.b32.xlu0 %v1709, 15
        %v1747 = vpop.permute.xlu0 %1746
        %1748 = vrot.lane.b32.xlu0 %v1710, 15
        %v1749 = vpop.permute.xlu0 %1748
        %1750 = vrot.lane.b32.xlu0 %v1711, 15
        %v1751 = vpop.permute.xlu0 %1750
        %v1752 = vsel %vm1366, %v1749, %v1751
        %v1753 = vsel %vm1366, %v1747, %v1749
        %v1754 = vsel %vm1366, %v1745, %v1747
        %v1755 = vsel %vm1366, %v1751, %v1745
        %v1756 = vmul.f32 %v1755, %v1374
        %v1757 = vmul.f32 %v1754, %v1378
        %v1758 = vmul.f32 %v1753, %v1382
        %v1759 = vmul.f32 %v1752, %v1386
        %1760 = vrot.lane.b32.xlu0 %v1708, 1
        %v1761 = vpop.permute.xlu0 %1760
        %1762 = vrot.lane.b32.xlu0 %v1709, 1
        %v1763 = vpop.permute.xlu0 %1762
        %1764 = vrot.lane.b32.xlu0 %v1710, 1
        %v1765 = vpop.permute.xlu0 %1764
        %1766 = vrot.lane.b32.xlu0 %v1711, 1
        %v1767 = vpop.permute.xlu0 %1766
        %v1768 = vsel %vm1399, %v1765, %v1767
        %v1769 = vsel %vm1399, %v1763, %v1765
        %v1770 = vsel %vm1399, %v1761, %v1763
        %v1771 = vsel %vm1399, %v1767, %v1761
        %v1772 = vmul.f32 %v1771, %v1407
        %v1773 = vmul.f32 %v1770, %v1411
        %v1774 = vmul.f32 %v1769, %v1415
        %v1775 = vmul.f32 %v1768, %v1419
        %1776 = vrot.lane.b32.xlu0 %v1708, 127
        %v1777 = vpop.permute.xlu0 %1776
        %1778 = vrot.lane.b32.xlu0 %v1709, 127
        %v1779 = vpop.permute.xlu0 %1778
        %1780 = vrot.lane.b32.xlu0 %v1710, 127
        %v1781 = vpop.permute.xlu0 %1780
        %1782 = vrot.lane.b32.xlu0 %v1711, 127
        %v1783 = vpop.permute.xlu0 %1782
        %v1784 = vsel %vm1432, %v1781, %v1783
        %v1785 = vsel %vm1432, %v1779, %v1781
        %v1786 = vsel %vm1432, %v1777, %v1779
        %v1787 = vsel %vm1432, %v1783, %v1777
        %v1788 = vmul.f32 %v1786, %v1440
        %v1789 = vmul.f32 %v1785, %v1444
        %v1790 = vmul.f32 %v1784, %v1448
        %v1791 = vmul.f32 %v1787, %v1452
        %1792 = vrot.lane.b32.xlu0 %v1708, 113
        %v1793 = vpop.permute.xlu0 %1792
        %1794 = vrot.lane.b32.xlu0 %v1709, 113
        %v1795 = vpop.permute.xlu0 %1794
        %1796 = vrot.lane.b32.xlu0 %v1710, 113
        %v1797 = vpop.permute.xlu0 %1796
        %1798 = vrot.lane.b32.xlu0 %v1711, 113
        %v1799 = vpop.permute.xlu0 %1798
        %v1800 = vsel %vm1465, %v1797, %v1799
        %v1801 = vsel %vm1465, %v1795, %v1797
        %v1802 = vsel %vm1465, %v1793, %v1795
        %v1803 = vsel %vm1465, %v1799, %v1793
        %v1804 = vmul.f32 %v1802, %v1473
        %v1805 = vmul.f32 %v1801, %v1477
        %v1806 = vmul.f32 %v1800, %v1481
        %v1807 = vmul.f32 %v1803, %v1485
        %1808 = vrot.lane.b32.xlu0 %v1708, 112
        %v1809 = vpop.permute.xlu0 %1808
        %1810 = vrot.lane.b32.xlu0 %v1709, 112
        %v1811 = vpop.permute.xlu0 %1810
        %1812 = vrot.lane.b32.xlu0 %v1710, 112
        %v1813 = vpop.permute.xlu0 %1812
        %1814 = vrot.lane.b32.xlu0 %v1711, 112
        %v1815 = vpop.permute.xlu0 %1814
        %v1816 = vsel %vm1498, %v1813, %v1815
        %v1817 = vsel %vm1498, %v1811, %v1813
        %v1818 = vsel %vm1498, %v1809, %v1811
        %v1819 = vsel %vm1498, %v1815, %v1809
        %v1820 = vmul.f32 %v1818, %v1506
        %v1821 = vmul.f32 %v1817, %v1510
        %v1822 = vmul.f32 %v1816, %v1514
        %v1823 = vmul.f32 %v1819, %v1518
        %1824 = vrot.lane.b32.xlu0 %v1708, 111
        %v1825 = vpop.permute.xlu0 %1824
        %1826 = vrot.lane.b32.xlu0 %v1709, 111
        %v1827 = vpop.permute.xlu0 %1826
        %1828 = vrot.lane.b32.xlu0 %v1710, 111
        %v1829 = vpop.permute.xlu0 %1828
        %1830 = vrot.lane.b32.xlu0 %v1711, 111
        %v1831 = vpop.permute.xlu0 %1830
        %v1832 = vsel %vm1531, %v1829, %v1831
        %v1833 = vsel %vm1531, %v1827, %v1829
        %v1834 = vsel %vm1531, %v1825, %v1827
        %v1835 = vsel %vm1531, %v1831, %v1825
        %v1836 = vmul.f32 %v1834, %v1539
        %v1837 = vmul.f32 %v1833, %v1543
        %v1838 = vmul.f32 %v1832, %v1547
        %v1839 = vmul.f32 %v1835, %v1551
        %v1840 = vld [vmem:[%s12] sm:$0xff]
        %v1841 = vld [vmem:[%s13] sm:$0xff]
        %1843 = vset.pattern.permute.xlu0 0
        %1844 = vperm.xlu0 %1843, %v1841
        %v1845 = vpop.permute.xlu0 %1844
        %v1848 = vsel %vm1001, %v1840, 0
        %1850 = vmatprep.subr.mxu0 %v1725
        %1851 = vmatpush1.msra.mxu0 %v1724
        %1852 = vmatprep.subr.mxu0 %v1741
        %1853 = vmatpush1.msra.mxu0 %v1740
        %1854 = vmatprep.subr.mxu0 %v1757
        %1855 = vmatpush1.msra.mxu0 %v1756
        %1856 = vmatprep.subr.mxu0 %v1773
        %1857 = vmatpush1.msra.mxu0 %v1772
        %1858 = vmatprep.subr.mxu0 %v1709
        %1859 = vmatpush1.msra.mxu0 %v1708
        %1860 = vmatprep.subr.mxu0 %v1789
        %1861 = vmatpush1.msra.mxu0 %v1788
        %1862 = vmatprep.subr.mxu0 %v1805
        %1863 = vmatpush1.msra.mxu0 %v1804
        %1864 = vmatprep.subr.mxu0 %v1821
        %1865 = vmatpush1.msra.mxu0 %v1820
        %1866 = vmatprep.subr.mxu0 %v1837
        %1867 = vmatpush1.msra.mxu0 %v1836
        %1868 = vmatprep.subr.mxu0 0.0
        %1869 = vmatpush1.msra.mxu0 0.0
        %1870 = vmatprep.subr.mxu0 0.0
        %1871 = vmatpush1.msra.mxu0 0.0
        %1872 = vmatprep.subr.mxu0 0.0
        %1873 = vmatpush1.msra.mxu0 0.0
        %1874 = vmatprep.subr.mxu0 0.0
        %1875 = vmatpush1.msra.mxu0 0.0
        %1876 = vmatprep.subr.mxu0 0.0
        %1877 = vmatpush1.msra.mxu0 0.0
        %1878 = vmatprep.subr.mxu0 0.0
        %1879 = vmatpush1.msra.mxu0 0.0
        %1880 = vmatprep.subr.mxu0 0.0
        %1881 = vmatpush1.msra.mxu0 0.0
        %1882 = vmatprep.subr.mxu0 0.0
        %1883 = vmatpush1.msra.mxu0 0.0
        %1884 = vmatprep.subr.mxu0 0.0
        %1885 = vmatpush1.msra.mxu0 0.0
        %1886 = vmatprep.subr.mxu0 0.0
        %1887 = vmatpush1.msra.mxu0 0.0
        %1888 = vmatprep.subr.mxu0 0.0
        %1889 = vmatpush1.msra.mxu0 0.0
        %1890 = vmatprep.subr.mxu0 0.0
        %1891 = vmatpush1.msra.mxu0 0.0
        %1892 = vmatprep.subr.mxu0 0.0
        %1893 = vmatpush1.msra.mxu0 0.0
        %1894 = vmatprep.subr.mxu0 0.0
        %1895 = vmatpush1.msra.mxu0 0.0
        %1896 = vmatprep.subr.mxu0 0.0
        %1897 = vmatpush1.msra.mxu0 0.0
        %1898 = vmatprep.subr.mxu0 0.0
        %1899 = vmatpush1.msra.mxu0 0.0
        %1900 = vmatprep.subr.mxu0 0.0
        %1901 = vmatpush1.msra.mxu0 0.0
        %1902 = vmatprep.subr.mxu0 0.0
        %1903 = vmatpush1.msra.mxu0 0.0
        %1904 = vmatprep.subr.mxu0 0.0
        %1905 = vmatpush1.msra.mxu0 0.0
        %1906 = vmatprep.subr.mxu0 0.0
        %1907 = vmatpush1.msra.mxu0 0.0
        %1908 = vmatprep.subr.mxu0 0.0
        %1909 = vmatpush1.msra.mxu0 0.0
        %1910 = vmatprep.subr.mxu0 0.0
        %1911 = vmatpush1.msra.mxu0 0.0
        %1912 = vmatprep.subr.mxu0 0.0
        %1913 = vmatpush1.msra.mxu0 0.0
        %1914 = vmatprep.mubr.f32.mxu0 0.0
        %1915 = vmatmul.mubr.f32.gmra.mrb[0].mxu0 %v1848
        %v1916 = vpop.f32.mrb[0].mxu0
        %v1917 = vadd.f32 %v1845, %v1916
        %v1918 = vpop.f32.mrb[0].mxu0
        %v1919 = vadd.f32 %v1845, %v1918
        %1920 = vdwg.mxu0
        %1921 = vmatprep.subr.mxu0 %v1727
        %1922 = vmatpush1.msra.mxu0 %v1726
        %1923 = vmatprep.subr.mxu0 %v1743
        %1924 = vmatpush1.msra.mxu0 %v1742
        %1925 = vmatprep.subr.mxu0 %v1759
        %1926 = vmatpush1.msra.mxu0 %v1758
        %1927 = vmatprep.subr.mxu0 %v1775
        %1928 = vmatpush1.msra.mxu0 %v1774
        %1929 = vmatprep.subr.mxu0 %v1711
        %1930 = vmatpush1.msra.mxu0 %v1710
        %1931 = vmatprep.subr.mxu0 %v1791
        %1932 = vmatpush1.msra.mxu0 %v1790
        %1933 = vmatprep.subr.mxu0 %v1807
        %1934 = vmatpush1.msra.mxu0 %v1806
        %1935 = vmatprep.subr.mxu0 %v1823
        %1936 = vmatpush1.msra.mxu0 %v1822
        %1937 = vmatprep.subr.mxu0 %v1839
        %1938 = vmatpush1.msra.mxu0 %v1838
        %1939 = vmatprep.subr.mxu0 0.0
        %1940 = vmatpush1.msra.mxu0 0.0
        %1941 = vmatprep.subr.mxu0 0.0
        %1942 = vmatpush1.msra.mxu0 0.0
        %1943 = vmatprep.subr.mxu0 0.0
        %1944 = vmatpush1.msra.mxu0 0.0
        %1945 = vmatprep.subr.mxu0 0.0
        %1946 = vmatpush1.msra.mxu0 0.0
        %1947 = vmatprep.subr.mxu0 0.0
        %1948 = vmatpush1.msra.mxu0 0.0
        %1949 = vmatprep.subr.mxu0 0.0
        %1950 = vmatpush1.msra.mxu0 0.0
        %1951 = vmatprep.subr.mxu0 0.0
        %1952 = vmatpush1.msra.mxu0 0.0
        %1953 = vmatprep.subr.mxu0 0.0
        %1954 = vmatpush1.msra.mxu0 0.0
        %1955 = vmatprep.subr.mxu0 0.0
        %1956 = vmatpush1.msra.mxu0 0.0
        %1957 = vmatprep.subr.mxu0 0.0
        %1958 = vmatpush1.msra.mxu0 0.0
        %1959 = vmatprep.subr.mxu0 0.0
        %1960 = vmatpush1.msra.mxu0 0.0
        %1961 = vmatprep.subr.mxu0 0.0
        %1962 = vmatpush1.msra.mxu0 0.0
        %1963 = vmatprep.subr.mxu0 0.0
        %1964 = vmatpush1.msra.mxu0 0.0
        %1965 = vmatprep.subr.mxu0 0.0
        %1966 = vmatpush1.msra.mxu0 0.0
        %1967 = vmatprep.subr.mxu0 0.0
        %1968 = vmatpush1.msra.mxu0 0.0
        %1969 = vmatprep.subr.mxu0 0.0
        %1970 = vmatpush1.msra.mxu0 0.0
        %1971 = vmatprep.subr.mxu0 0.0
        %1972 = vmatpush1.msra.mxu0 0.0
        %1973 = vmatprep.subr.mxu0 0.0
        %1974 = vmatpush1.msra.mxu0 0.0
        %1975 = vmatprep.subr.mxu0 0.0
        %1976 = vmatpush1.msra.mxu0 0.0
        %1977 = vmatprep.subr.mxu0 0.0
        %1978 = vmatpush1.msra.mxu0 0.0
        %1979 = vmatprep.subr.mxu0 0.0
        %1980 = vmatpush1.msra.mxu0 0.0
        %1981 = vmatprep.subr.mxu0 0.0
        %1982 = vmatpush1.msra.mxu0 0.0
        %1983 = vmatprep.subr.mxu0 0.0
        %1984 = vmatpush1.msra.mxu0 0.0
        %1985 = vmatprep.mubr.f32.mxu0 0.0
        %1986 = vmatmul.mubr.f32.gmra.mrb[0].mxu0 %v1848
        %v1987 = vpop.f32.mrb[0].mxu0
        %v1988 = vadd.f32 %v1845, %v1987
        %v1989 = vpop.f32.mrb[0].mxu0
        %v1990 = vadd.f32 %v1845, %v1989
        %1991 = vdwg.mxu0
        %v1992 = vmax.f32 %v1917, 0.0
        %v1993 = vmax.f32 %v1919, 0.0
        %v1994 = vmax.f32 %v1988, 0.0
        %v1995 = vmax.f32 %v1990, 0.0
        %1996 = vrot.lane.b32.xlu0 %v1992, 17
        %v1997 = vpop.permute.xlu0 %1996
        %1998 = vrot.lane.b32.xlu0 %v1993, 17
        %v1999 = vpop.permute.xlu0 %1998
        %2000 = vrot.lane.b32.xlu0 %v1994, 17
        %v2001 = vpop.permute.xlu0 %2000
        %2002 = vrot.lane.b32.xlu0 %v1995, 17
        %v2003 = vpop.permute.xlu0 %2002
        %v2004 = vsel %vm1300, %v2001, %v2003
        %v2005 = vsel %vm1300, %v1999, %v2001
        %v2006 = vsel %vm1300, %v1997, %v1999
        %v2007 = vsel %vm1300, %v2003, %v1997
        %v2008 = vmul.f32 %v2007, %v1308
        %v2009 = vmul.f32 %v2006, %v1312
        %v2010 = vmul.f32 %v2005, %v1316
        %v2011 = vmul.f32 %v2004, %v1320
        %2012 = vrot.lane.b32.xlu0 %v1992, 16
        %v2013 = vpop.permute.xlu0 %2012
        %2014 = vrot.lane.b32.xlu0 %v1993, 16
        %v2015 = vpop.permute.xlu0 %2014
        %2016 = vrot.lane.b32.xlu0 %v1994, 16
        %v2017 = vpop.permute.xlu0 %2016
        %2018 = vrot.lane.b32.xlu0 %v1995, 16
        %v2019 = vpop.permute.xlu0 %2018
        %v2020 = vsel %vm1333, %v2017, %v2019
        %v2021 = vsel %vm1333, %v2015, %v2017
        %v2022 = vsel %vm1333, %v2013, %v2015
        %v2023 = vsel %vm1333, %v2019, %v2013
        %v2024 = vmul.f32 %v2023, %v1341
        %v2025 = vmul.f32 %v2022, %v1345
        %v2026 = vmul.f32 %v2021, %v1349
        %v2027 = vmul.f32 %v2020, %v1353
        %2028 = vrot.lane.b32.xlu0 %v1992, 15
        %v2029 = vpop.permute.xlu0 %2028
        %2030 = vrot.lane.b32.xlu0 %v1993, 15
        %v2031 = vpop.permute.xlu0 %2030
        %2032 = vrot.lane.b32.xlu0 %v1994, 15
        %v2033 = vpop.permute.xlu0 %2032
        %2034 = vrot.lane.b32.xlu0 %v1995, 15
        %v2035 = vpop.permute.xlu0 %2034
        %v2036 = vsel %vm1366, %v2033, %v2035
        %v2037 = vsel %vm1366, %v2031, %v2033
        %v2038 = vsel %vm1366, %v2029, %v2031
        %v2039 = vsel %vm1366, %v2035, %v2029
        %v2040 = vmul.f32 %v2039, %v1374
        %v2041 = vmul.f32 %v2038, %v1378
        %v2042 = vmul.f32 %v2037, %v1382
        %v2043 = vmul.f32 %v2036, %v1386
        %2044 = vrot.lane.b32.xlu0 %v1992, 1
        %v2045 = vpop.permute.xlu0 %2044
        %2046 = vrot.lane.b32.xlu0 %v1993, 1
        %v2047 = vpop.permute.xlu0 %2046
        %2048 = vrot.lane.b32.xlu0 %v1994, 1
        %v2049 = vpop.permute.xlu0 %2048
        %2050 = vrot.lane.b32.xlu0 %v1995, 1
        %v2051 = vpop.permute.xlu0 %2050
        %v2052 = vsel %vm1399, %v2049, %v2051
        %v2053 = vsel %vm1399, %v2047, %v2049
        %v2054 = vsel %vm1399, %v2045, %v2047
        %v2055 = vsel %vm1399, %v2051, %v2045
        %v2056 = vmul.f32 %v2055, %v1407
        %v2057 = vmul.f32 %v2054, %v1411
        %v2058 = vmul.f32 %v2053, %v1415
        %v2059 = vmul.f32 %v2052, %v1419
        %2060 = vrot.lane.b32.xlu0 %v1992, 127
        %v2061 = vpop.permute.xlu0 %2060
        %2062 = vrot.lane.b32.xlu0 %v1993, 127
        %v2063 = vpop.permute.xlu0 %2062
        %2064 = vrot.lane.b32.xlu0 %v1994, 127
        %v2065 = vpop.permute.xlu0 %2064
        %2066 = vrot.lane.b32.xlu0 %v1995, 127
        %v2067 = vpop.permute.xlu0 %2066
        %v2068 = vsel %vm1432, %v2065, %v2067
        %v2069 = vsel %vm1432, %v2063, %v2065
        %v2070 = vsel %vm1432, %v2061, %v2063
        %v2071 = vsel %vm1432, %v2067, %v2061
        %v2072 = vmul.f32 %v2070, %v1440
        %v2073 = vmul.f32 %v2069, %v1444
        %v2074 = vmul.f32 %v2068, %v1448
        %v2075 = vmul.f32 %v2071, %v1452
        %2076 = vrot.lane.b32.xlu0 %v1992, 113
        %v2077 = vpop.permute.xlu0 %2076
        %2078 = vrot.lane.b32.xlu0 %v1993, 113
        %v2079 = vpop.permute.xlu0 %2078
        %2080 = vrot.lane.b32.xlu0 %v1994, 113
        %v2081 = vpop.permute.xlu0 %2080
        %2082 = vrot.lane.b32.xlu0 %v1995, 113
        %v2083 = vpop.permute.xlu0 %2082
        %v2084 = vsel %vm1465, %v2081, %v2083
        %v2085 = vsel %vm1465, %v2079, %v2081
        %v2086 = vsel %vm1465, %v2077, %v2079
        %v2087 = vsel %vm1465, %v2083, %v2077
        %v2088 = vmul.f32 %v2086, %v1473
        %v2089 = vmul.f32 %v2085, %v1477
        %v2090 = vmul.f32 %v2084, %v1481
        %v2091 = vmul.f32 %v2087, %v1485
        %2092 = vrot.lane.b32.xlu0 %v1992, 112
        %v2093 = vpop.permute.xlu0 %2092
        %2094 = vrot.lane.b32.xlu0 %v1993, 112
        %v2095 = vpop.permute.xlu0 %2094
        %2096 = vrot.lane.b32.xlu0 %v1994, 112
        %v2097 = vpop.permute.xlu0 %2096
        %2098 = vrot.lane.b32.xlu0 %v1995, 112
        %v2099 = vpop.permute.xlu0 %2098
        %v2100 = vsel %vm1498, %v2097, %v2099
        %v2101 = vsel %vm1498, %v2095, %v2097
        %v2102 = vsel %vm1498, %v2093, %v2095
        %v2103 = vsel %vm1498, %v2099, %v2093
        %v2104 = vmul.f32 %v2102, %v1506
        %v2105 = vmul.f32 %v2101, %v1510
        %v2106 = vmul.f32 %v2100, %v1514
        %v2107 = vmul.f32 %v2103, %v1518
        %2108 = vrot.lane.b32.xlu0 %v1992, 111
        %v2109 = vpop.permute.xlu0 %2108
        %2110 = vrot.lane.b32.xlu0 %v1993, 111
        %v2111 = vpop.permute.xlu0 %2110
        %2112 = vrot.lane.b32.xlu0 %v1994, 111
        %v2113 = vpop.permute.xlu0 %2112
        %2114 = vrot.lane.b32.xlu0 %v1995, 111
        %v2115 = vpop.permute.xlu0 %2114
        %v2116 = vsel %vm1531, %v2113, %v2115
        %v2117 = vsel %vm1531, %v2111, %v2113
        %v2118 = vsel %vm1531, %v2109, %v2111
        %v2119 = vsel %vm1531, %v2115, %v2109
        %v2120 = vmul.f32 %v2118, %v1539
        %v2121 = vmul.f32 %v2117, %v1543
        %v2122 = vmul.f32 %v2116, %v1547
        %v2123 = vmul.f32 %v2119, %v1551
        %v2124 = vld [vmem:[%s14] sm:$0xff]
        %v2125 = vld [vmem:[%s15] sm:$0xff]
        %2127 = vset.pattern.permute.xlu0 0
        %2128 = vperm.xlu0 %2127, %v2125
        %v2129 = vpop.permute.xlu0 %2128
        %v2132 = vsel %vm1001, %v2124, 0
        %2134 = vmatprep.subr.mxu0 %v2009
        %2135 = vmatpush1.msra.mxu0 %v2008
        %2136 = vmatprep.subr.mxu0 %v2025
        %2137 = vmatpush1.msra.mxu0 %v2024
        %2138 = vmatprep.subr.mxu0 %v2041
        %2139 = vmatpush1.msra.mxu0 %v2040
        %2140 = vmatprep.subr.mxu0 %v2057
        %2141 = vmatpush1.msra.mxu0 %v2056
        %2142 = vmatprep.subr.mxu0 %v1993
        %2143 = vmatpush1.msra.mxu0 %v1992
        %2144 = vmatprep.subr.mxu0 %v2073
        %2145 = vmatpush1.msra.mxu0 %v2072
        %2146 = vmatprep.subr.mxu0 %v2089
        %2147 = vmatpush1.msra.mxu0 %v2088
        %2148 = vmatprep.subr.mxu0 %v2105
        %2149 = vmatpush1.msra.mxu0 %v2104
        %2150 = vmatprep.subr.mxu0 %v2121
        %2151 = vmatpush1.msra.mxu0 %v2120
        %2152 = vmatprep.subr.mxu0 0.0
        %2153 = vmatpush1.msra.mxu0 0.0
        %2154 = vmatprep.subr.mxu0 0.0
        %2155 = vmatpush1.msra.mxu0 0.0
        %2156 = vmatprep.subr.mxu0 0.0
        %2157 = vmatpush1.msra.mxu0 0.0
        %2158 = vmatprep.subr.mxu0 0.0
        %2159 = vmatpush1.msra.mxu0 0.0
        %2160 = vmatprep.subr.mxu0 0.0
        %2161 = vmatpush1.msra.mxu0 0.0
        %2162 = vmatprep.subr.mxu0 0.0
        %2163 = vmatpush1.msra.mxu0 0.0
        %2164 = vmatprep.subr.mxu0 0.0
        %2165 = vmatpush1.msra.mxu0 0.0
        %2166 = vmatprep.subr.mxu0 0.0
        %2167 = vmatpush1.msra.mxu0 0.0
        %2168 = vmatprep.subr.mxu0 0.0
        %2169 = vmatpush1.msra.mxu0 0.0
        %2170 = vmatprep.subr.mxu0 0.0
        %2171 = vmatpush1.msra.mxu0 0.0
        %2172 = vmatprep.subr.mxu0 0.0
        %2173 = vmatpush1.msra.mxu0 0.0
        %2174 = vmatprep.subr.mxu0 0.0
        %2175 = vmatpush1.msra.mxu0 0.0
        %2176 = vmatprep.subr.mxu0 0.0
        %2177 = vmatpush1.msra.mxu0 0.0
        %2178 = vmatprep.subr.mxu0 0.0
        %2179 = vmatpush1.msra.mxu0 0.0
        %2180 = vmatprep.subr.mxu0 0.0
        %2181 = vmatpush1.msra.mxu0 0.0
        %2182 = vmatprep.subr.mxu0 0.0
        %2183 = vmatpush1.msra.mxu0 0.0
        %2184 = vmatprep.subr.mxu0 0.0
        %2185 = vmatpush1.msra.mxu0 0.0
        %2186 = vmatprep.subr.mxu0 0.0
        %2187 = vmatpush1.msra.mxu0 0.0
        %2188 = vmatprep.subr.mxu0 0.0
        %2189 = vmatpush1.msra.mxu0 0.0
        %2190 = vmatprep.subr.mxu0 0.0
        %2191 = vmatpush1.msra.mxu0 0.0
        %2192 = vmatprep.subr.mxu0 0.0
        %2193 = vmatpush1.msra.mxu0 0.0
        %2194 = vmatprep.subr.mxu0 0.0
        %2195 = vmatpush1.msra.mxu0 0.0
        %2196 = vmatprep.subr.mxu0 0.0
        %2197 = vmatpush1.msra.mxu0 0.0
        %2198 = vmatprep.mubr.f32.mxu0 0.0
        %2199 = vmatmul.mubr.f32.gmra.mrb[0].mxu0 %v2132
        %v2200 = vpop.f32.mrb[0].mxu0
        %v2201 = vadd.f32 %v2129, %v2200
        %v2202 = vpop.f32.mrb[0].mxu0
        %v2203 = vadd.f32 %v2129, %v2202
        %2204 = vdwg.mxu0
        %2205 = vmatprep.subr.mxu0 %v2011
        %2206 = vmatpush1.msra.mxu0 %v2010
        %2207 = vmatprep.subr.mxu0 %v2027
        %2208 = vmatpush1.msra.mxu0 %v2026
        %2209 = vmatprep.subr.mxu0 %v2043
        %2210 = vmatpush1.msra.mxu0 %v2042
        %2211 = vmatprep.subr.mxu0 %v2059
        %2212 = vmatpush1.msra.mxu0 %v2058
        %2213 = vmatprep.subr.mxu0 %v1995
        %2214 = vmatpush1.msra.mxu0 %v1994
        %2215 = vmatprep.subr.mxu0 %v2075
        %2216 = vmatpush1.msra.mxu0 %v2074
        %2217 = vmatprep.subr.mxu0 %v2091
        %2218 = vmatpush1.msra.mxu0 %v2090
        %2219 = vmatprep.subr.mxu0 %v2107
        %2220 = vmatpush1.msra.mxu0 %v2106
        %2221 = vmatprep.subr.mxu0 %v2123
        %2222 = vmatpush1.msra.mxu0 %v2122
        %2223 = vmatprep.subr.mxu0 0.0
        %2224 = vmatpush1.msra.mxu0 0.0
        %2225 = vmatprep.subr.mxu0 0.0
        %2226 = vmatpush1.msra.mxu0 0.0
        %2227 = vmatprep.subr.mxu0 0.0
        %2228 = vmatpush1.msra.mxu0 0.0
        %2229 = vmatprep.subr.mxu0 0.0
        %2230 = vmatpush1.msra.mxu0 0.0
        %2231 = vmatprep.subr.mxu0 0.0
        %2232 = vmatpush1.msra.mxu0 0.0
        %2233 = vmatprep.subr.mxu0 0.0
        %2234 = vmatpush1.msra.mxu0 0.0
        %2235 = vmatprep.subr.mxu0 0.0
        %2236 = vmatpush1.msra.mxu0 0.0
        %2237 = vmatprep.subr.mxu0 0.0
        %2238 = vmatpush1.msra.mxu0 0.0
        %2239 = vmatprep.subr.mxu0 0.0
        %2240 = vmatpush1.msra.mxu0 0.0
        %2241 = vmatprep.subr.mxu0 0.0
        %2242 = vmatpush1.msra.mxu0 0.0
        %2243 = vmatprep.subr.mxu0 0.0
        %2244 = vmatpush1.msra.mxu0 0.0
        %2245 = vmatprep.subr.mxu0 0.0
        %2246 = vmatpush1.msra.mxu0 0.0
        %2247 = vmatprep.subr.mxu0 0.0
        %2248 = vmatpush1.msra.mxu0 0.0
        %2249 = vmatprep.subr.mxu0 0.0
        %2250 = vmatpush1.msra.mxu0 0.0
        %2251 = vmatprep.subr.mxu0 0.0
        %2252 = vmatpush1.msra.mxu0 0.0
        %2253 = vmatprep.subr.mxu0 0.0
        %2254 = vmatpush1.msra.mxu0 0.0
        %2255 = vmatprep.subr.mxu0 0.0
        %2256 = vmatpush1.msra.mxu0 0.0
        %2257 = vmatprep.subr.mxu0 0.0
        %2258 = vmatpush1.msra.mxu0 0.0
        %2259 = vmatprep.subr.mxu0 0.0
        %2260 = vmatpush1.msra.mxu0 0.0
        %2261 = vmatprep.subr.mxu0 0.0
        %2262 = vmatpush1.msra.mxu0 0.0
        %2263 = vmatprep.subr.mxu0 0.0
        %2264 = vmatpush1.msra.mxu0 0.0
        %2265 = vmatprep.subr.mxu0 0.0
        %2266 = vmatpush1.msra.mxu0 0.0
        %2267 = vmatprep.subr.mxu0 0.0
        %2268 = vmatpush1.msra.mxu0 0.0
        %2269 = vmatprep.mubr.f32.mxu0 0.0
        %2270 = vmatmul.mubr.f32.gmra.mrb[0].mxu0 %v2132
        %v2271 = vpop.f32.mrb[0].mxu0
        %v2272 = vadd.f32 %v2129, %v2271
        %v2273 = vpop.f32.mrb[0].mxu0
        %v2274 = vadd.f32 %v2129, %v2273
        %2275 = vdwg.mxu0
        %v2276 = vmax.f32 %v2201, 0.0
        %v2277 = vmax.f32 %v2203, 0.0
        %v2278 = vmax.f32 %v2272, 0.0
        %v2279 = vmax.f32 %v2274, 0.0
        %2280 = vrot.lane.b32.xlu0 %v2276, 17
        %v2281 = vpop.permute.xlu0 %2280
        %2282 = vrot.lane.b32.xlu0 %v2277, 17
        %v2283 = vpop.permute.xlu0 %2282
        %2284 = vrot.lane.b32.xlu0 %v2278, 17
        %v2285 = vpop.permute.xlu0 %2284
        %2286 = vrot.lane.b32.xlu0 %v2279, 17
        %v2287 = vpop.permute.xlu0 %2286
        %v2288 = vsel %vm1300, %v2285, %v2287
        %v2289 = vsel %vm1300, %v2283, %v2285
        %v2290 = vsel %vm1300, %v2281, %v2283
        %v2291 = vsel %vm1300, %v2287, %v2281
        %v2292 = vmul.f32 %v2291, %v1308
        %v2293 = vmul.f32 %v2290, %v1312
        %v2294 = vmul.f32 %v2289, %v1316
        %v2295 = vmul.f32 %v2288, %v1320
        %2296 = vrot.lane.b32.xlu0 %v2276, 16
        %v2297 = vpop.permute.xlu0 %2296
        %2298 = vrot.lane.b32.xlu0 %v2277, 16
        %v2299 = vpop.permute.xlu0 %2298
        %2300 = vrot.lane.b32.xlu0 %v2278, 16
        %v2301 = vpop.permute.xlu0 %2300
        %2302 = vrot.lane.b32.xlu0 %v2279, 16
        %v2303 = vpop.permute.xlu0 %2302
        %v2304 = vsel %vm1333, %v2301, %v2303
        %v2305 = vsel %vm1333, %v2299, %v2301
        %v2306 = vsel %vm1333, %v2297, %v2299
        %v2307 = vsel %vm1333, %v2303, %v2297
        %v2308 = vmul.f32 %v2307, %v1341
        %v2309 = vmul.f32 %v2306, %v1345
        %v2310 = vmul.f32 %v2305, %v1349
        %v2311 = vmul.f32 %v2304, %v1353
        %2312 = vrot.lane.b32.xlu0 %v2276, 15
        %v2313 = vpop.permute.xlu0 %2312
        %2314 = vrot.lane.b32.xlu0 %v2277, 15
        %v2315 = vpop.permute.xlu0 %2314
        %2316 = vrot.lane.b32.xlu0 %v2278, 15
        %v2317 = vpop.permute.xlu0 %2316
        %2318 = vrot.lane.b32.xlu0 %v2279, 15
        %v2319 = vpop.permute.xlu0 %2318
        %v2320 = vsel %vm1366, %v2317, %v2319
        %v2321 = vsel %vm1366, %v2315, %v2317
        %v2322 = vsel %vm1366, %v2313, %v2315
        %v2323 = vsel %vm1366, %v2319, %v2313
        %v2324 = vmul.f32 %v2323, %v1374
        %v2325 = vmul.f32 %v2322, %v1378
        %v2326 = vmul.f32 %v2321, %v1382
        %v2327 = vmul.f32 %v2320, %v1386
        %2328 = vrot.lane.b32.xlu0 %v2276, 1
        %v2329 = vpop.permute.xlu0 %2328
        %2330 = vrot.lane.b32.xlu0 %v2277, 1
        %v2331 = vpop.permute.xlu0 %2330
        %2332 = vrot.lane.b32.xlu0 %v2278, 1
        %v2333 = vpop.permute.xlu0 %2332
        %2334 = vrot.lane.b32.xlu0 %v2279, 1
        %v2335 = vpop.permute.xlu0 %2334
        %v2336 = vsel %vm1399, %v2333, %v2335
        %v2337 = vsel %vm1399, %v2331, %v2333
        %v2338 = vsel %vm1399, %v2329, %v2331
        %v2339 = vsel %vm1399, %v2335, %v2329
        %v2340 = vmul.f32 %v2339, %v1407
        %v2341 = vmul.f32 %v2338, %v1411
        %v2342 = vmul.f32 %v2337, %v1415
        %v2343 = vmul.f32 %v2336, %v1419
        %2344 = vrot.lane.b32.xlu0 %v2276, 127
        %v2345 = vpop.permute.xlu0 %2344
        %2346 = vrot.lane.b32.xlu0 %v2277, 127
        %v2347 = vpop.permute.xlu0 %2346
        %2348 = vrot.lane.b32.xlu0 %v2278, 127
        %v2349 = vpop.permute.xlu0 %2348
        %2350 = vrot.lane.b32.xlu0 %v2279, 127
        %v2351 = vpop.permute.xlu0 %2350
        %v2352 = vsel %vm1432, %v2349, %v2351
        %v2353 = vsel %vm1432, %v2347, %v2349
        %v2354 = vsel %vm1432, %v2345, %v2347
        %v2355 = vsel %vm1432, %v2351, %v2345
        %v2356 = vmul.f32 %v2354, %v1440
        %v2357 = vmul.f32 %v2353, %v1444
        %v2358 = vmul.f32 %v2352, %v1448
        %v2359 = vmul.f32 %v2355, %v1452
        %2360 = vrot.lane.b32.xlu0 %v2276, 113
        %v2361 = vpop.permute.xlu0 %2360
        %2362 = vrot.lane.b32.xlu0 %v2277, 113
        %v2363 = vpop.permute.xlu0 %2362
        %2364 = vrot.lane.b32.xlu0 %v2278, 113
        %v2365 = vpop.permute.xlu0 %2364
        %2366 = vrot.lane.b32.xlu0 %v2279, 113
        %v2367 = vpop.permute.xlu0 %2366
        %v2368 = vsel %vm1465, %v2365, %v2367
        %v2369 = vsel %vm1465, %v2363, %v2365
        %v2370 = vsel %vm1465, %v2361, %v2363
        %v2371 = vsel %vm1465, %v2367, %v2361
        %v2372 = vmul.f32 %v2370, %v1473
        %v2373 = vmul.f32 %v2369, %v1477
        %v2374 = vmul.f32 %v2368, %v1481
        %v2375 = vmul.f32 %v2371, %v1485
        %2376 = vrot.lane.b32.xlu0 %v2276, 112
        %v2377 = vpop.permute.xlu0 %2376
        %2378 = vrot.lane.b32.xlu0 %v2277, 112
        %v2379 = vpop.permute.xlu0 %2378
        %2380 = vrot.lane.b32.xlu0 %v2278, 112
        %v2381 = vpop.permute.xlu0 %2380
        %2382 = vrot.lane.b32.xlu0 %v2279, 112
        %v2383 = vpop.permute.xlu0 %2382
        %v2384 = vsel %vm1498, %v2381, %v2383
        %v2385 = vsel %vm1498, %v2379, %v2381
        %v2386 = vsel %vm1498, %v2377, %v2379
        %v2387 = vsel %vm1498, %v2383, %v2377
        %v2388 = vmul.f32 %v2386, %v1506
        %v2389 = vmul.f32 %v2385, %v1510
        %v2390 = vmul.f32 %v2384, %v1514
        %v2391 = vmul.f32 %v2387, %v1518
        %2392 = vrot.lane.b32.xlu0 %v2276, 111
        %v2393 = vpop.permute.xlu0 %2392
        %2394 = vrot.lane.b32.xlu0 %v2277, 111
        %v2395 = vpop.permute.xlu0 %2394
        %2396 = vrot.lane.b32.xlu0 %v2278, 111
        %v2397 = vpop.permute.xlu0 %2396
        %2398 = vrot.lane.b32.xlu0 %v2279, 111
        %v2399 = vpop.permute.xlu0 %2398
        %v2400 = vsel %vm1531, %v2397, %v2399
        %v2401 = vsel %vm1531, %v2395, %v2397
        %v2402 = vsel %vm1531, %v2393, %v2395
        %v2403 = vsel %vm1531, %v2399, %v2393
        %v2404 = vmul.f32 %v2402, %v1539
        %v2405 = vmul.f32 %v2401, %v1543
        %v2406 = vmul.f32 %v2400, %v1547
        %v2407 = vmul.f32 %v2403, %v1551
        %v2408 = vld [vmem:[%s16] sm:$0xff]
        %v2409 = vld [vmem:[%s17] sm:$0xff]
        %2411 = vset.pattern.permute.xlu0 0
        %2412 = vperm.xlu0 %2411, %v2409
        %v2413 = vpop.permute.xlu0 %2412
        %v2416 = vsel %vm1001, %v2408, 0
        %2418 = vmatprep.subr.mxu0 %v2293
        %2419 = vmatpush1.msra.mxu0 %v2292
        %2420 = vmatprep.subr.mxu0 %v2309
        %2421 = vmatpush1.msra.mxu0 %v2308
        %2422 = vmatprep.subr.mxu0 %v2325
        %2423 = vmatpush1.msra.mxu0 %v2324
        %2424 = vmatprep.subr.mxu0 %v2341
        %2425 = vmatpush1.msra.mxu0 %v2340
        %2426 = vmatprep.subr.mxu0 %v2277
        %2427 = vmatpush1.msra.mxu0 %v2276
        %2428 = vmatprep.subr.mxu0 %v2357
        %2429 = vmatpush1.msra.mxu0 %v2356
        %2430 = vmatprep.subr.mxu0 %v2373
        %2431 = vmatpush1.msra.mxu0 %v2372
        %2432 = vmatprep.subr.mxu0 %v2389
        %2433 = vmatpush1.msra.mxu0 %v2388
        %2434 = vmatprep.subr.mxu0 %v2405
        %2435 = vmatpush1.msra.mxu0 %v2404
        %2436 = vmatprep.subr.mxu0 0.0
        %2437 = vmatpush1.msra.mxu0 0.0
        %2438 = vmatprep.subr.mxu0 0.0
        %2439 = vmatpush1.msra.mxu0 0.0
        %2440 = vmatprep.subr.mxu0 0.0
        %2441 = vmatpush1.msra.mxu0 0.0
        %2442 = vmatprep.subr.mxu0 0.0
        %2443 = vmatpush1.msra.mxu0 0.0
        %2444 = vmatprep.subr.mxu0 0.0
        %2445 = vmatpush1.msra.mxu0 0.0
        %2446 = vmatprep.subr.mxu0 0.0
        %2447 = vmatpush1.msra.mxu0 0.0
        %2448 = vmatprep.subr.mxu0 0.0
        %2449 = vmatpush1.msra.mxu0 0.0
        %2450 = vmatprep.subr.mxu0 0.0
        %2451 = vmatpush1.msra.mxu0 0.0
        %2452 = vmatprep.subr.mxu0 0.0
        %2453 = vmatpush1.msra.mxu0 0.0
        %2454 = vmatprep.subr.mxu0 0.0
        %2455 = vmatpush1.msra.mxu0 0.0
        %2456 = vmatprep.subr.mxu0 0.0
        %2457 = vmatpush1.msra.mxu0 0.0
        %2458 = vmatprep.subr.mxu0 0.0
        %2459 = vmatpush1.msra.mxu0 0.0
        %2460 = vmatprep.subr.mxu0 0.0
        %2461 = vmatpush1.msra.mxu0 0.0
        %2462 = vmatprep.subr.mxu0 0.0
        %2463 = vmatpush1.msra.mxu0 0.0
        %2464 = vmatprep.subr.mxu0 0.0
        %2465 = vmatpush1.msra.mxu0 0.0
        %2466 = vmatprep.subr.mxu0 0.0
        %2467 = vmatpush1.msra.mxu0 0.0
        %2468 = vmatprep.subr.mxu0 0.0
        %2469 = vmatpush1.msra.mxu0 0.0
        %2470 = vmatprep.subr.mxu0 0.0
        %2471 = vmatpush1.msra.mxu0 0.0
        %2472 = vmatprep.subr.mxu0 0.0
        %2473 = vmatpush1.msra.mxu0 0.0
        %2474 = vmatprep.subr.mxu0 0.0
        %2475 = vmatpush1.msra.mxu0 0.0
        %2476 = vmatprep.subr.mxu0 0.0
        %2477 = vmatpush1.msra.mxu0 0.0
        %2478 = vmatprep.subr.mxu0 0.0
        %2479 = vmatpush1.msra.mxu0 0.0
        %2480 = vmatprep.subr.mxu0 0.0
        %2481 = vmatpush1.msra.mxu0 0.0
        %2482 = vmatprep.mubr.f32.mxu0 0.0
        %2483 = vmatmul.mubr.f32.gmra.mrb[0].mxu0 %v2416
        %v2484 = vpop.f32.mrb[0].mxu0
        %v2485 = vadd.f32 %v2413, %v2484
        %v2486 = vpop.f32.mrb[0].mxu0
        %v2487 = vadd.f32 %v2413, %v2486
        %2488 = vdwg.mxu0
        %2489 = vmatprep.subr.mxu0 %v2295
        %2490 = vmatpush1.msra.mxu0 %v2294
        %2491 = vmatprep.subr.mxu0 %v2311
        %2492 = vmatpush1.msra.mxu0 %v2310
        %2493 = vmatprep.subr.mxu0 %v2327
        %2494 = vmatpush1.msra.mxu0 %v2326
        %2495 = vmatprep.subr.mxu0 %v2343
        %2496 = vmatpush1.msra.mxu0 %v2342
        %2497 = vmatprep.subr.mxu0 %v2279
        %2498 = vmatpush1.msra.mxu0 %v2278
        %2499 = vmatprep.subr.mxu0 %v2359
        %2500 = vmatpush1.msra.mxu0 %v2358
        %2501 = vmatprep.subr.mxu0 %v2375
        %2502 = vmatpush1.msra.mxu0 %v2374
        %2503 = vmatprep.subr.mxu0 %v2391
        %2504 = vmatpush1.msra.mxu0 %v2390
        %2505 = vmatprep.subr.mxu0 %v2407
        %2506 = vmatpush1.msra.mxu0 %v2406
        %2507 = vmatprep.subr.mxu0 0.0
        %2508 = vmatpush1.msra.mxu0 0.0
        %2509 = vmatprep.subr.mxu0 0.0
        %2510 = vmatpush1.msra.mxu0 0.0
        %2511 = vmatprep.subr.mxu0 0.0
        %2512 = vmatpush1.msra.mxu0 0.0
        %2513 = vmatprep.subr.mxu0 0.0
        %2514 = vmatpush1.msra.mxu0 0.0
        %2515 = vmatprep.subr.mxu0 0.0
        %2516 = vmatpush1.msra.mxu0 0.0
        %2517 = vmatprep.subr.mxu0 0.0
        %2518 = vmatpush1.msra.mxu0 0.0
        %2519 = vmatprep.subr.mxu0 0.0
        %2520 = vmatpush1.msra.mxu0 0.0
        %2521 = vmatprep.subr.mxu0 0.0
        %2522 = vmatpush1.msra.mxu0 0.0
        %2523 = vmatprep.subr.mxu0 0.0
        %2524 = vmatpush1.msra.mxu0 0.0
        %2525 = vmatprep.subr.mxu0 0.0
        %2526 = vmatpush1.msra.mxu0 0.0
        %2527 = vmatprep.subr.mxu0 0.0
        %2528 = vmatpush1.msra.mxu0 0.0
        %2529 = vmatprep.subr.mxu0 0.0
        %2530 = vmatpush1.msra.mxu0 0.0
        %2531 = vmatprep.subr.mxu0 0.0
        %2532 = vmatpush1.msra.mxu0 0.0
        %2533 = vmatprep.subr.mxu0 0.0
        %2534 = vmatpush1.msra.mxu0 0.0
        %2535 = vmatprep.subr.mxu0 0.0
        %2536 = vmatpush1.msra.mxu0 0.0
        %2537 = vmatprep.subr.mxu0 0.0
        %2538 = vmatpush1.msra.mxu0 0.0
        %2539 = vmatprep.subr.mxu0 0.0
        %2540 = vmatpush1.msra.mxu0 0.0
        %2541 = vmatprep.subr.mxu0 0.0
        %2542 = vmatpush1.msra.mxu0 0.0
        %2543 = vmatprep.subr.mxu0 0.0
        %2544 = vmatpush1.msra.mxu0 0.0
        %2545 = vmatprep.subr.mxu0 0.0
        %2546 = vmatpush1.msra.mxu0 0.0
        %2547 = vmatprep.subr.mxu0 0.0
        %2548 = vmatpush1.msra.mxu0 0.0
        %2549 = vmatprep.subr.mxu0 0.0
        %2550 = vmatpush1.msra.mxu0 0.0
        %2551 = vmatprep.subr.mxu0 0.0
        %2552 = vmatpush1.msra.mxu0 0.0
        %2553 = vmatprep.mubr.f32.mxu0 0.0
        %2554 = vmatmul.mubr.f32.gmra.mrb[0].mxu0 %v2416
        %v2555 = vpop.f32.mrb[0].mxu0
        %v2556 = vadd.f32 %v2413, %v2555
        %v2557 = vpop.f32.mrb[0].mxu0
        %v2558 = vadd.f32 %v2413, %v2557
        %2559 = vdwg.mxu0
        %v2560 = vxor.u32 %v2485, 2147483648
        %v2561 = vxor.u32 %v2487, 2147483648
        %v2562 = vxor.u32 %v2556, 2147483648
        %v2563 = vxor.u32 %v2558, 2147483648
        %v2564 = vmul.f32 %v2560, 1.442695
        %v2565 = vpow.pop %v2564
        %v2566 = vmul.f32 %v2561, 1.442695
        %v2567 = vpow.pop %v2566
        %v2568 = vmul.f32 %v2562, 1.442695
        %v2569 = vpow.pop %v2568
        %v2570 = vmul.f32 %v2563, 1.442695
        %v2571 = vpow.pop %v2570
        %v2572 = vadd.f32 %v2565, 1.0
        %v2573 = vadd.f32 %v2567, 1.0
        %v2574 = vadd.f32 %v2569, 1.0
        %v2575 = vadd.f32 %v2571, 1.0
        %v2576 = vrcp.pop %v2572
        %v2577 = vmul.f32 1.0, %v2576
        %v2578 = vrcp.pop %v2573
        %v2579 = vmul.f32 1.0, %v2578
        %v2580 = vrcp.pop %v2574
        %v2581 = vmul.f32 1.0, %v2580
        %v2582 = vrcp.pop %v2575
        %v2583 = vmul.f32 1.0, %v2582
        %v2586 = vcombine.low %v2577, %v2579
        %2588 = vst [vmem:[%s640] sm:$0x77] %v2586
        %v2591 = vcombine.low %v2581, %v2583
        %s2593 = scalar_lea.vmem %s640, 8
        %2594 = vst [vmem:[%s2593] sm:$0x77] %v2591
        %s2595 = smul.u32 2, %s33
        %p2596 = scmp.lt.s32.totalorder %s2595, 3
        %s2597 = scalar_select %p2596, %s2595, 3
        %s2598 = smul.addr %s2597, 2
        %s2599 = smul.addr %s2598, 4
        %s2600 = scalar_lea.vmem %s18, %s2599
        // Predicated region
        $region117: #{tpu_custom_call.1} parent=91 // pred_check
          %p2601 = pneg %p429
        $region118: #{tpu_custom_call.1} parent=91 // pred_check_branch
          %2603 = sbr.rel (%p2601) target = $region120
        $region119: #{tpu_custom_call.1} parent=91 // pred_region
          %s2604 = smul.u32 2, %s33
        $region120: #{tpu_custom_call.1} parent=91 // pred_fallthru
          _
      $region92: #{tpu_custom_call.1} parent=5 // pred_fallthru
        _
      %p2605 = scmp.le.s32.totalorder 2, %s28
      // Predicated region
      $region121: #{tpu_custom_call.1} parent=5 // pred_check
        %p2606 = pneg %p2605
      $region122: #{tpu_custom_call.1} parent=5 // pred_check_branch
        %2608 = sbr.rel (%p2606) target = $region124
      $region123: #{tpu_custom_call.1} parent=5 // pred_region
        %s2609 = ssub.s32 %s28, 2
        // Predicated region
        $region125: #{tpu_custom_call.1} parent=123 // pred_check
          %p2610 = pneg %p435
        $region126: #{tpu_custom_call.1} parent=123 // pred_check_branch
          %2612 = sbr.rel (%p2610) target = $region128
        $region127: #{tpu_custom_call.1} parent=123 // pred_region
          %s2613 = smul.u32 2, %s34
          %p2614 = scmp.lt.s32.totalorder %s2613, 3
          %s2615 = scalar_select %p2614, %s2613, 3
          %s2616 = smul.addr %s2615, 2
          %s2617 = smul.addr %s2616, 4
          %s2618 = scalar_lea.vmem %s18, %s2617
        $region128: #{tpu_custom_call.1} parent=123 // pred_fallthru
          _
      $region124: #{tpu_custom_call.1} parent=5 // pred_fallthru
        _
    $region6: #{tpu_custom_call.1} parent=1 // loop_footer
      %s32 = sadd.s32 1, %s28
    $region7: #{tpu_custom_call.1} parent=1 // loop_footer_branch
      %27 = sbr.rel target = $region3
    $region8: #{tpu_custom_call.1} parent=1 // loop_exit
      _
    %2619 = vsyncpa [#allocation3], 1
    %s2620 = scalar_lea.sflag [#allocation3], 1
    %2621 = vsyncpa %s2620, 1
    %2622 = vsyncpa [#allocation7], 1
    %2623 = vsyncpa [#allocation10], 1
    %2624 = vsyncpa [#allocation4], 1
    %s2625 = scalar_lea.sflag [#allocation4], 1
    %2626 = vsyncpa %s2625, 1

</llo_original>
